<compile_context>
chip_gen: v7x
topology: tpu7x:2x2x1
jax: 0.10.0
libtpu: 0.0.40
codegen_flags: <defaults>
</compile_context>

<pallas_src>
import jax
import jax.numpy as jnp
from jax import lax
from jax.experimental import pallas as pl
from jax.experimental.pallas import tpu as pltpu

# ---- model hyper-parameters (small, consistent with VqaModel.__init__) ----
EMBED_SIZE     = 32
QST_VOCAB_SIZE = 64
ANS_VOCAB_SIZE = 16
WORD_EMBED     = 32          # word_embed_size
NUM_LAYERS     = 2
HIDDEN_SIZE    = 32
IN_FEATURES    = 64          # stand-in for VGG19 classifier[-1].in_features (4096)
K_TOP          = 512         # module-level `k`
IMG_C, IMG_H, IMG_W = 3, 16, 16
SEQ_LEN        = 8
BATCH          = 2

# torch.svd projection  V.T[:, :k] @ (feat.T @ V.T[:, :k]).T : for k >= the
# feature dim all right-singular vectors are kept, V^T V = I, and (for
# B <= EMBED_SIZE, the only batch size for which the torch matmuls even
# type-check) the whole thing is the identity.  K_TOP=512 >= EMBED_SIZE=32.
# TODO(synk): if K_TOP < EMBED_SIZE were ever needed, torch.svd has no Pallas
# equivalent; a jnp.linalg.svd would have to run between separate kernels.
assert K_TOP >= EMBED_SIZE
assert BATCH <= EMBED_SIZE
assert NUM_LAYERS == 2       # the fused kernel below hardcodes two LSTM layers

VMEM = pltpu.MemorySpace.VMEM


# ------------------------------ fused kernel -------------------------------

def vqa_fused_kernel(qst_ref,                       # [T*B, 1] int32 (time-major)
                     img_ref,                       # [B, C*H*W]
                     bb_w_ref, bb_b_ref,            # [CHW, F], [1, F]
                     imgfc_w_ref, imgfc_b_ref,      # [F, E],   [1, E]
                     emb_ref,                       # [V, D]
                     wih0_ref, whh0_ref, b0_ref,    # [D, 4H], [H, 4H], [1, 4H]
                     wih1_ref, whh1_ref, b1_ref,    # [H, 4H], [H, 4H], [1, 4H]
                     qstfc_w_ref, qstfc_b_ref,      # [2*L*H, E], [1, E]
                     fc1_w_ref, fc1_b_ref,          # [E, A], [1, A]
                     fc2_w_ref, fc2_b_ref,          # [A, A], [1, A]
                     out_ref):                      # [B, A]
    f32 = jnp.float32
    TB = qst_ref.shape[0]
    B = img_ref.shape[0]
    T = TB // B
    H = HIDDEN_SIZE
    V = emb_ref.shape[0]

    # ---------------- ImgEncoder ----------------
    # TODO(synk): pretrained torchvision VGG19 backbone cannot be loaded here
    # (no checkpoints / network); replaced by a deterministic flatten + linear
    # stand-in producing IN_FEATURES features.
    bb = (jnp.dot(img_ref[...], bb_w_ref[...], preferred_element_type=f32)
          + bb_b_ref[...])
    img_f = (jnp.dot(bb, imgfc_w_ref[...], preferred_element_type=f32)
             + imgfc_b_ref[...])
    # x / ||x||_2  ==  x * rsqrt(sum(x^2))  (matches torch; NaN for zero rows).
    img_f = img_f * lax.rsqrt(jnp.sum(img_f * img_f, axis=1, keepdims=True))

    # ---------------- QstEncoder ----------------
    # Embedding gather as one-hot @ table on the MXU: indices are already
    # time-major so row (t, b) of x0 sits at t*B + b, ready for the LSTM.
    lane_ids = lax.broadcasted_iota(jnp.int32, (TB, V), 1)
    one_hot = (lane_ids == qst_ref[...]).astype(f32)                 # [T*B, V]
    x0 = jnp.tanh(jnp.dot(one_hot, emb_ref[...],
                          preferred_element_type=f32))               # [T*B, D]

    def lstm_layer(x_flat, wih, whh, bias, collect_outputs):
        # Input projection hoisted out of the recurrence: one [T*B, Din] matmul
        # with the (b_ih + b_hh) bias folded in.
        g_pre = jnp.dot(x_flat, wih, preferred_element_type=f32) + bias  # [T*B, 4H]
        h = jnp.zeros((B, H), f32)
        c = jnp.zeros((B, H), f32)
        ys = []
        for t in range(T):                          # fully unrolled (T = 8, static)
            gates = g_pre[t * B:(t + 1) * B, :] + jnp.dot(
                h, whh, preferred_element_type=f32)
            i_g = jax.nn.sigmoid(gates[:, 0:H])     # PyTorch gate order i, f, g, o
            f_g = jax.nn.sigmoid(gates[:, H:2 * H])
            g_g = jnp.tanh(gates[:, 2 * H:3 * H])
            o_g = jax.nn.sigmoid(gates[:, 3 * H:4 * H])
            c = f_g * c + i_g * g_g
            h = o_g * jnp.tanh(c)
            if collect_outputs:
                ys.append(h)
        y = jnp.concatenate(ys, axis=0) if collect_outputs else None
        return y, h, c                               # [T*B, H] | None, [B, H], [B, H]

    y0, h0, c0 = lstm_layer(x0, wih0_ref[...], whh0_ref[...], b0_ref[...], True)
    _,  h1, c1 = lstm_layer(y0, wih1_ref[...], whh1_ref[...], b1_ref[...], False)

    # torch: cat((hidden, cell), 2).transpose(0, 1).reshape(B, -1)
    #   -> per row b: [h_0, c_0, h_1, c_1]   (2 * L * H = 128 lanes, lane-dense)
    qst_f = jnp.tanh(jnp.concatenate([h0, c0, h1, c1], axis=1))      # [B, 2*L*H]
    qst_f = (jnp.dot(qst_f, qstfc_w_ref[...], preferred_element_type=f32)
             + qstfc_b_ref[...])                                     # [B, E]

    # -------- SVD projection elided (identity for K_TOP >= EMBED_SIZE) -------

    # ---------------- fusion head (dropout = identity in eval) ----------------
    comb = jnp.tanh(img_f * qst_f)
    comb = jnp.tanh(jnp.dot(comb, fc1_w_ref[...], preferred_element_type=f32)
                    + fc1_b_ref[...])
    out_ref[...] = (jnp.dot(comb, fc2_w_ref[...], preferred_element_type=f32)
                    + fc2_b_ref[...])


# ------------------------------ call wrapper --------------------------------

def vqa_forward(params, img, qst):
    B = img.shape[0]
    T = qst.shape[1]
    img_flat = img.reshape(B, -1).astype(jnp.float32)        # NCHW flatten
    # Time-major flat indices (row t*B + b) -- layout plumbing done host-side
    # so the kernel never transposes.
    qst_tm = qst.astype(jnp.int32).T.reshape(T * B, 1)

    args = (
        qst_tm,
        img_flat,
        params["backbone_w"], params["backbone_b"].reshape(1, -1),
        params["img_fc_w"],   params["img_fc_b"].reshape(1, -1),
        params["word_emb"],
        params["lstm_wih"][0], params["lstm_whh"][0], params["lstm_b"][0],
        params["lstm_wih"][1], params["lstm_whh"][1], params["lstm_b"][1],
        params["qst_fc_w"], params["qst_fc_b"].reshape(1, -1),
        params["fc1_w"],    params["fc1_b"].reshape(1, -1),
        params["fc2_w"],    params["fc2_b"].reshape(1, -1),
    )
    return pl.pallas_call(
        vqa_fused_kernel,
        out_shape=jax.ShapeDtypeStruct((B, ANS_VOCAB_SIZE), jnp.float32),
        in_specs=[pl.BlockSpec(memory_space=VMEM) for _ in args],
        out_specs=pl.BlockSpec(memory_space=VMEM),
    )(*args)


# ------------------------------ parameters ----------------------------------

def init_params(key):
    ks = jax.random.split(key, 12)

    def lin(k, fan_in, fan_out):
        s = 1.0 / float(fan_in) ** 0.5
        kw, kb = jax.random.split(k)
        w = jax.random.uniform(kw, (fan_in, fan_out), jnp.float32, -s, s)
        b = jax.random.uniform(kb, (fan_out,), jnp.float32, -s, s)
        return w, b

    p = {}
    p["backbone_w"], p["backbone_b"] = lin(ks[0], IMG_C * IMG_H * IMG_W, IN_FEATURES)
    p["img_fc_w"], p["img_fc_b"] = lin(ks[1], IN_FEATURES, EMBED_SIZE)

    p["word_emb"] = jax.random.normal(ks[2], (QST_VOCAB_SIZE, WORD_EMBED),
                                      jnp.float32)         # nn.Embedding default N(0,1)
    wih, whh, bb = [], [], []
    for l in range(NUM_LAYERS):
        din = WORD_EMBED if l == 0 else HIDDEN_SIZE
        s = 1.0 / float(HIDDEN_SIZE) ** 0.5
        k1, k2, k3, k4 = jax.random.split(ks[3 + l], 4)
        wih.append(jax.random.uniform(k1, (din, 4 * HIDDEN_SIZE), jnp.float32, -s, s))
        whh.append(jax.random.uniform(k2, (HIDDEN_SIZE, 4 * HIDDEN_SIZE), jnp.float32, -s, s))
        b_ih = jax.random.uniform(k3, (4 * HIDDEN_SIZE,), jnp.float32, -s, s)
        b_hh = jax.random.uniform(k4, (4 * HIDDEN_SIZE,), jnp.float32, -s, s)
        bb.append((b_ih + b_hh).reshape(1, 4 * HIDDEN_SIZE))
    p["lstm_wih"], p["lstm_whh"], p["lstm_b"] = wih, whh, bb

    p["qst_fc_w"], p["qst_fc_b"] = lin(ks[6], 2 * NUM_LAYERS * HIDDEN_SIZE, EMBED_SIZE)
    p["fc1_w"], p["fc1_b"] = lin(ks[7], EMBED_SIZE, ANS_VOCAB_SIZE)
    p["fc2_w"], p["fc2_b"] = lin(ks[8], ANS_VOCAB_SIZE, ANS_VOCAB_SIZE)
    return p


if __name__ == "__main__":
    key = jax.random.PRNGKey(0)
    k_img, k_qst, k_par = jax.random.split(key, 3)
    img = jax.random.normal(k_img, (BATCH, IMG_C, IMG_H, IMG_W), jnp.float32)   # NCHW
    qst = jax.random.randint(k_qst, (BATCH, SEQ_LEN), 0, QST_VOCAB_SIZE, jnp.int32)
    params = init_params(k_par)

    out = jax.jit(vqa_forward)(params, img, qst)
    out = jax.block_until_ready(out)
    assert out.shape == (BATCH, ANS_VOCAB_SIZE)
    print("KERNEL_OK")
</pallas_src>

<mosaic_0001>
module attributes {stable_mosaic.version = 11 : i64} {
  func.func @vqa_fused_kernel(%arg0: memref<16x1xi32, #tpu.memory_space<vmem>>, %arg1: memref<2x768xf32, #tpu.memory_space<vmem>>, %arg2: memref<768x64xf32, #tpu.memory_space<vmem>>, %arg3: memref<1x64xf32, #tpu.memory_space<vmem>>, %arg4: memref<64x32xf32, #tpu.memory_space<vmem>>, %arg5: memref<1x32xf32, #tpu.memory_space<vmem>>, %arg6: memref<64x32xf32, #tpu.memory_space<vmem>>, %arg7: memref<32x128xf32, #tpu.memory_space<vmem>>, %arg8: memref<32x128xf32, #tpu.memory_space<vmem>>, %arg9: memref<1x128xf32, #tpu.memory_space<vmem>>, %arg10: memref<32x128xf32, #tpu.memory_space<vmem>>, %arg11: memref<32x128xf32, #tpu.memory_space<vmem>>, %arg12: memref<1x128xf32, #tpu.memory_space<vmem>>, %arg13: memref<128x32xf32, #tpu.memory_space<vmem>>, %arg14: memref<1x32xf32, #tpu.memory_space<vmem>>, %arg15: memref<32x16xf32, #tpu.memory_space<vmem>>, %arg16: memref<1x16xf32, #tpu.memory_space<vmem>>, %arg17: memref<16x16xf32, #tpu.memory_space<vmem>>, %arg18: memref<1x16xf32, #tpu.memory_space<vmem>>, %arg19: memref<2x16xf32, #tpu.memory_space<vmem>>) attributes {dimension_semantics = [], scalar_prefetch = 0 : i64, scratch_operands = 0 : i64, tpu.core_type = #tpu.core_type<tc>} {
    %c0 = arith.constant 0 : index
    %c0_0 = arith.constant 0 : index
    %0 = vector.load %arg1[%c0, %c0_0] : memref<2x768xf32, #tpu.memory_space<vmem>>, vector<2x768xf32>
    %c0_1 = arith.constant 0 : index
    %c0_2 = arith.constant 0 : index
    %1 = vector.load %arg2[%c0_1, %c0_2] : memref<768x64xf32, #tpu.memory_space<vmem>>, vector<768x64xf32>
    %cst = arith.constant dense<0.000000e+00> : vector<2x64xf32>
    %2 = tpu.matmul %0, %1, %cst {dimension_numbers = #tpu.dot_dimension_numbers<[1], [0], [0], [1], [0, 0, 1, 1], [], []>} : vector<2x768xf32>, vector<768x64xf32>, vector<2x64xf32> -> vector<2x64xf32>
    %c0_3 = arith.constant 0 : index
    %c0_4 = arith.constant 0 : index
    %3 = vector.load %arg3[%c0_3, %c0_4] : memref<1x64xf32, #tpu.memory_space<vmem>>, vector<1x64xf32>
    %4 = vector.broadcast %3 : vector<1x64xf32> to vector<2x64xf32>
    %5 = arith.addf %2, %4 : vector<2x64xf32>
    %c0_5 = arith.constant 0 : index
    %c0_6 = arith.constant 0 : index
    %6 = vector.load %arg4[%c0_5, %c0_6] : memref<64x32xf32, #tpu.memory_space<vmem>>, vector<64x32xf32>
    %cst_7 = arith.constant dense<0.000000e+00> : vector<2x32xf32>
    %7 = tpu.matmul %5, %6, %cst_7 {dimension_numbers = #tpu.dot_dimension_numbers<[1], [0], [0], [1], [0, 0, 1, 1], [], []>} : vector<2x64xf32>, vector<64x32xf32>, vector<2x32xf32> -> vector<2x32xf32>
    %c0_8 = arith.constant 0 : index
    %c0_9 = arith.constant 0 : index
    %8 = vector.load %arg5[%c0_8, %c0_9] : memref<1x32xf32, #tpu.memory_space<vmem>>, vector<1x32xf32>
    %9 = vector.broadcast %8 : vector<1x32xf32> to vector<2x32xf32>
    %10 = arith.addf %7, %9 : vector<2x32xf32>
    %11 = arith.mulf %10, %10 : vector<2x32xf32>
    %cst_10 = arith.constant dense<0.000000e+00> : vector<2xf32>
    %12 = vector.multi_reduction <add>, %11, %cst_10 [1] : vector<2x32xf32> to vector<2xf32>
    %13 = vector.shape_cast %12 : vector<2xf32> to vector<2x1xf32>
    %14 = math.rsqrt %13 : vector<2x1xf32>
    %15 = vector.broadcast %14 : vector<2x1xf32> to vector<2x32xf32>
    %16 = arith.mulf %10, %15 : vector<2x32xf32>
    %17 = tpu.iota {dimensions = array<i32: 1>} : vector<16x64xi32>
    %c0_11 = arith.constant 0 : index
    %c0_12 = arith.constant 0 : index
    %18 = vector.load %arg0[%c0_11, %c0_12] : memref<16x1xi32, #tpu.memory_space<vmem>>, vector<16x1xi32>
    %19 = vector.broadcast %18 : vector<16x1xi32> to vector<16x64xi32>
    %20 = arith.cmpi eq, %17, %19 : vector<16x64xi32>
    %21 = arith.extui %20 : vector<16x64xi1> to vector<16x64xi32>
    %22 = arith.sitofp %21 : vector<16x64xi32> to vector<16x64xf32>
    %c0_13 = arith.constant 0 : index
    %c0_14 = arith.constant 0 : index
    %23 = vector.load %arg6[%c0_13, %c0_14] : memref<64x32xf32, #tpu.memory_space<vmem>>, vector<64x32xf32>
    %cst_15 = arith.constant dense<0.000000e+00> : vector<16x32xf32>
    %24 = tpu.matmul %22, %23, %cst_15 {dimension_numbers = #tpu.dot_dimension_numbers<[1], [0], [0], [1], [0, 0, 1, 1], [], []>} : vector<16x64xf32>, vector<64x32xf32>, vector<16x32xf32> -> vector<16x32xf32>
    %25 = math.tanh %24 : vector<16x32xf32>
    %c0_16 = arith.constant 0 : index
    %c0_17 = arith.constant 0 : index
    %26 = vector.load %arg7[%c0_16, %c0_17] : memref<32x128xf32, #tpu.memory_space<vmem>>, vector<32x128xf32>
    %c0_18 = arith.constant 0 : index
    %c0_19 = arith.constant 0 : index
    %27 = vector.load %arg8[%c0_18, %c0_19] : memref<32x128xf32, #tpu.memory_space<vmem>>, vector<32x128xf32>
    %c0_20 = arith.constant 0 : index
    %c0_21 = arith.constant 0 : index
    %28 = vector.load %arg9[%c0_20, %c0_21] : memref<1x128xf32, #tpu.memory_space<vmem>>, vector<1x128xf32>
    %cst_22 = arith.constant dense<0.000000e+00> : vector<16x128xf32>
    %29 = tpu.matmul %25, %26, %cst_22 {dimension_numbers = #tpu.dot_dimension_numbers<[1], [0], [0], [1], [0, 0, 1, 1], [], []>} : vector<16x32xf32>, vector<32x128xf32>, vector<16x128xf32> -> vector<16x128xf32>
    %30 = vector.broadcast %28 : vector<1x128xf32> to vector<16x128xf32>
    %31 = arith.addf %29, %30 : vector<16x128xf32>
    %cst_23 = arith.constant 0.000000e+00 : f32
    %32 = vector.broadcast %cst_23 : f32 to vector<2x32xf32>
    %cst_24 = arith.constant 0.000000e+00 : f32
    %33 = vector.broadcast %cst_24 : f32 to vector<2x32xf32>
    %34 = vector.extract_strided_slice %31 {offsets = [0, 0], sizes = [2, 128], strides = [1, 1]} : vector<16x128xf32> to vector<2x128xf32>
    %cst_25 = arith.constant dense<0.000000e+00> : vector<2x128xf32>
    %35 = tpu.matmul %32, %27, %cst_25 {dimension_numbers = #tpu.dot_dimension_numbers<[1], [0], [0], [1], [0, 0, 1, 1], [], []>} : vector<2x32xf32>, vector<32x128xf32>, vector<2x128xf32> -> vector<2x128xf32>
    %36 = arith.addf %34, %35 : vector<2x128xf32>
    %37 = vector.extract_strided_slice %36 {offsets = [0, 0], sizes = [2, 32], strides = [1, 1]} : vector<2x128xf32> to vector<2x32xf32>
    %38 = arith.negf %37 : vector<2x32xf32>
    %39 = math.exp %38 : vector<2x32xf32>
    %cst_26 = arith.constant 1.000000e+00 : f32
    %40 = vector.broadcast %cst_26 : f32 to vector<2x32xf32>
    %41 = arith.addf %40, %39 : vector<2x32xf32>
    %42 = arith.divf %40, %41 : vector<2x32xf32>
    %43 = vector.extract_strided_slice %36 {offsets = [0, 32], sizes = [2, 32], strides = [1, 1]} : vector<2x128xf32> to vector<2x32xf32>
    %44 = arith.negf %43 : vector<2x32xf32>
    %45 = math.exp %44 : vector<2x32xf32>
    %cst_27 = arith.constant 1.000000e+00 : f32
    %46 = vector.broadcast %cst_27 : f32 to vector<2x32xf32>
    %47 = arith.addf %46, %45 : vector<2x32xf32>
    %48 = arith.divf %46, %47 : vector<2x32xf32>
    %49 = vector.extract_strided_slice %36 {offsets = [0, 64], sizes = [2, 32], strides = [1, 1]} : vector<2x128xf32> to vector<2x32xf32>
    %50 = math.tanh %49 : vector<2x32xf32>
    %51 = vector.extract_strided_slice %36 {offsets = [0, 96], sizes = [2, 32], strides = [1, 1]} : vector<2x128xf32> to vector<2x32xf32>
    %52 = arith.negf %51 : vector<2x32xf32>
    %53 = math.exp %52 : vector<2x32xf32>
    %cst_28 = arith.constant 1.000000e+00 : f32
    %54 = vector.broadcast %cst_28 : f32 to vector<2x32xf32>
    %55 = arith.addf %54, %53 : vector<2x32xf32>
    %56 = arith.divf %54, %55 : vector<2x32xf32>
    %57 = arith.mulf %48, %33 : vector<2x32xf32>
    %58 = arith.mulf %42, %50 : vector<2x32xf32>
    %59 = arith.addf %57, %58 : vector<2x32xf32>
    %60 = math.tanh %59 : vector<2x32xf32>
    %61 = arith.mulf %56, %60 : vector<2x32xf32>
    %62 = vector.extract_strided_slice %31 {offsets = [2, 0], sizes = [2, 128], strides = [1, 1]} : vector<16x128xf32> to vector<2x128xf32>
    %cst_29 = arith.constant dense<0.000000e+00> : vector<2x128xf32>
    %63 = tpu.matmul %61, %27, %cst_29 {dimension_numbers = #tpu.dot_dimension_numbers<[1], [0], [0], [1], [0, 0, 1, 1], [], []>} : vector<2x32xf32>, vector<32x128xf32>, vector<2x128xf32> -> vector<2x128xf32>
    %64 = arith.addf %62, %63 : vector<2x128xf32>
    %65 = vector.extract_strided_slice %64 {offsets = [0, 0], sizes = [2, 32], strides = [1, 1]} : vector<2x128xf32> to vector<2x32xf32>
    %66 = arith.negf %65 : vector<2x32xf32>
    %67 = math.exp %66 : vector<2x32xf32>
    %cst_30 = arith.constant 1.000000e+00 : f32
    %68 = vector.broadcast %cst_30 : f32 to vector<2x32xf32>
    %69 = arith.addf %68, %67 : vector<2x32xf32>
    %70 = arith.divf %68, %69 : vector<2x32xf32>
    %71 = vector.extract_strided_slice %64 {offsets = [0, 32], sizes = [2, 32], strides = [1, 1]} : vector<2x128xf32> to vector<2x32xf32>
    %72 = arith.negf %71 : vector<2x32xf32>
    %73 = math.exp %72 : vector<2x32xf32>
    %cst_31 = arith.constant 1.000000e+00 : f32
    %74 = vector.broadcast %cst_31 : f32 to vector<2x32xf32>
    %75 = arith.addf %74, %73 : vector<2x32xf32>
    %76 = arith.divf %74, %75 : vector<2x32xf32>
    %77 = vector.extract_strided_slice %64 {offsets = [0, 64], sizes = [2, 32], strides = [1, 1]} : vector<2x128xf32> to vector<2x32xf32>
    %78 = math.tanh %77 : vector<2x32xf32>
    %79 = vector.extract_strided_slice %64 {offsets = [0, 96], sizes = [2, 32], strides = [1, 1]} : vector<2x128xf32> to vector<2x32xf32>
    %80 = arith.negf %79 : vector<2x32xf32>
    %81 = math.exp %80 : vector<2x32xf32>
    %cst_32 = arith.constant 1.000000e+00 : f32
    %82 = vector.broadcast %cst_32 : f32 to vector<2x32xf32>
    %83 = arith.addf %82, %81 : vector<2x32xf32>
    %84 = arith.divf %82, %83 : vector<2x32xf32>
    %85 = arith.mulf %76, %59 : vector<2x32xf32>
    %86 = arith.mulf %70, %78 : vector<2x32xf32>
    %87 = arith.addf %85, %86 : vector<2x32xf32>
    %88 = math.tanh %87 : vector<2x32xf32>
    %89 = arith.mulf %84, %88 : vector<2x32xf32>
    %90 = vector.extract_strided_slice %31 {offsets = [4, 0], sizes = [2, 128], strides = [1, 1]} : vector<16x128xf32> to vector<2x128xf32>
    %cst_33 = arith.constant dense<0.000000e+00> : vector<2x128xf32>
    %91 = tpu.matmul %89, %27, %cst_33 {dimension_numbers = #tpu.dot_dimension_numbers<[1], [0], [0], [1], [0, 0, 1, 1], [], []>} : vector<2x32xf32>, vector<32x128xf32>, vector<2x128xf32> -> vector<2x128xf32>
    %92 = arith.addf %90, %91 : vector<2x128xf32>
    %93 = vector.extract_strided_slice %92 {offsets = [0, 0], sizes = [2, 32], strides = [1, 1]} : vector<2x128xf32> to vector<2x32xf32>
    %94 = arith.negf %93 : vector<2x32xf32>
    %95 = math.exp %94 : vector<2x32xf32>
    %cst_34 = arith.constant 1.000000e+00 : f32
    %96 = vector.broadcast %cst_34 : f32 to vector<2x32xf32>
    %97 = arith.addf %96, %95 : vector<2x32xf32>
    %98 = arith.divf %96, %97 : vector<2x32xf32>
    %99 = vector.extract_strided_slice %92 {offsets = [0, 32], sizes = [2, 32], strides = [1, 1]} : vector<2x128xf32> to vector<2x32xf32>
    %100 = arith.negf %99 : vector<2x32xf32>
    %101 = math.exp %100 : vector<2x32xf32>
    %cst_35 = arith.constant 1.000000e+00 : f32
    %102 = vector.broadcast %cst_35 : f32 to vector<2x32xf32>
    %103 = arith.addf %102, %101 : vector<2x32xf32>
    %104 = arith.divf %102, %103 : vector<2x32xf32>
    %105 = vector.extract_strided_slice %92 {offsets = [0, 64], sizes = [2, 32], strides = [1, 1]} : vector<2x128xf32> to vector<2x32xf32>
    %106 = math.tanh %105 : vector<2x32xf32>
    %107 = vector.extract_strided_slice %92 {offsets = [0, 96], sizes = [2, 32], strides = [1, 1]} : vector<2x128xf32> to vector<2x32xf32>
    %108 = arith.negf %107 : vector<2x32xf32>
    %109 = math.exp %108 : vector<2x32xf32>
    %cst_36 = arith.constant 1.000000e+00 : f32
    %110 = vector.broadcast %cst_36 : f32 to vector<2x32xf32>
    %111 = arith.addf %110, %109 : vector<2x32xf32>
    %112 = arith.divf %110, %111 : vector<2x32xf32>
    %113 = arith.mulf %104, %87 : vector<2x32xf32>
    %114 = arith.mulf %98, %106 : vector<2x32xf32>
    %115 = arith.addf %113, %114 : vector<2x32xf32>
    %116 = math.tanh %115 : vector<2x32xf32>
    %117 = arith.mulf %112, %116 : vector<2x32xf32>
    %118 = vector.extract_strided_slice %31 {offsets = [6, 0], sizes = [2, 128], strides = [1, 1]} : vector<16x128xf32> to vector<2x128xf32>
    %cst_37 = arith.constant dense<0.000000e+00> : vector<2x128xf32>
    %119 = tpu.matmul %117, %27, %cst_37 {dimension_numbers = #tpu.dot_dimension_numbers<[1], [0], [0], [1], [0, 0, 1, 1], [], []>} : vector<2x32xf32>, vector<32x128xf32>, vector<2x128xf32> -> vector<2x128xf32>
    %120 = arith.addf %118, %119 : vector<2x128xf32>
    %121 = vector.extract_strided_slice %120 {offsets = [0, 0], sizes = [2, 32], strides = [1, 1]} : vector<2x128xf32> to vector<2x32xf32>
    %122 = arith.negf %121 : vector<2x32xf32>
    %123 = math.exp %122 : vector<2x32xf32>
    %cst_38 = arith.constant 1.000000e+00 : f32
    %124 = vector.broadcast %cst_38 : f32 to vector<2x32xf32>
    %125 = arith.addf %124, %123 : vector<2x32xf32>
    %126 = arith.divf %124, %125 : vector<2x32xf32>
    %127 = vector.extract_strided_slice %120 {offsets = [0, 32], sizes = [2, 32], strides = [1, 1]} : vector<2x128xf32> to vector<2x32xf32>
    %128 = arith.negf %127 : vector<2x32xf32>
    %129 = math.exp %128 : vector<2x32xf32>
    %cst_39 = arith.constant 1.000000e+00 : f32
    %130 = vector.broadcast %cst_39 : f32 to vector<2x32xf32>
    %131 = arith.addf %130, %129 : vector<2x32xf32>
    %132 = arith.divf %130, %131 : vector<2x32xf32>
    %133 = vector.extract_strided_slice %120 {offsets = [0, 64], sizes = [2, 32], strides = [1, 1]} : vector<2x128xf32> to vector<2x32xf32>
    %134 = math.tanh %133 : vector<2x32xf32>
    %135 = vector.extract_strided_slice %120 {offsets = [0, 96], sizes = [2, 32], strides = [1, 1]} : vector<2x128xf32> to vector<2x32xf32>
    %136 = arith.negf %135 : vector<2x32xf32>
    %137 = math.exp %136 : vector<2x32xf32>
    %cst_40 = arith.constant 1.000000e+00 : f32
    %138 = vector.broadcast %cst_40 : f32 to vector<2x32xf32>
    %139 = arith.addf %138, %137 : vector<2x32xf32>
    %140 = arith.divf %138, %139 : vector<2x32xf32>
    %141 = arith.mulf %132, %115 : vector<2x32xf32>
    %142 = arith.mulf %126, %134 : vector<2x32xf32>
    %143 = arith.addf %141, %142 : vector<2x32xf32>
    %144 = math.tanh %143 : vector<2x32xf32>
    %145 = arith.mulf %140, %144 : vector<2x32xf32>
    %146 = vector.extract_strided_slice %31 {offsets = [8, 0], sizes = [2, 128], strides = [1, 1]} : vector<16x128xf32> to vector<2x128xf32>
    %cst_41 = arith.constant dense<0.000000e+00> : vector<2x128xf32>
    %147 = tpu.matmul %145, %27, %cst_41 {dimension_numbers = #tpu.dot_dimension_numbers<[1], [0], [0], [1], [0, 0, 1, 1], [], []>} : vector<2x32xf32>, vector<32x128xf32>, vector<2x128xf32> -> vector<2x128xf32>
    %148 = arith.addf %146, %147 : vector<2x128xf32>
    %149 = vector.extract_strided_slice %148 {offsets = [0, 0], sizes = [2, 32], strides = [1, 1]} : vector<2x128xf32> to vector<2x32xf32>
    %150 = arith.negf %149 : vector<2x32xf32>
    %151 = math.exp %150 : vector<2x32xf32>
    %cst_42 = arith.constant 1.000000e+00 : f32
    %152 = vector.broadcast %cst_42 : f32 to vector<2x32xf32>
    %153 = arith.addf %152, %151 : vector<2x32xf32>
    %154 = arith.divf %152, %153 : vector<2x32xf32>
    %155 = vector.extract_strided_slice %148 {offsets = [0, 32], sizes = [2, 32], strides = [1, 1]} : vector<2x128xf32> to vector<2x32xf32>
    %156 = arith.negf %155 : vector<2x32xf32>
    %157 = math.exp %156 : vector<2x32xf32>
    %cst_43 = arith.constant 1.000000e+00 : f32
    %158 = vector.broadcast %cst_43 : f32 to vector<2x32xf32>
    %159 = arith.addf %158, %157 : vector<2x32xf32>
    %160 = arith.divf %158, %159 : vector<2x32xf32>
    %161 = vector.extract_strided_slice %148 {offsets = [0, 64], sizes = [2, 32], strides = [1, 1]} : vector<2x128xf32> to vector<2x32xf32>
    %162 = math.tanh %161 : vector<2x32xf32>
    %163 = vector.extract_strided_slice %148 {offsets = [0, 96], sizes = [2, 32], strides = [1, 1]} : vector<2x128xf32> to vector<2x32xf32>
    %164 = arith.negf %163 : vector<2x32xf32>
    %165 = math.exp %164 : vector<2x32xf32>
    %cst_44 = arith.constant 1.000000e+00 : f32
    %166 = vector.broadcast %cst_44 : f32 to vector<2x32xf32>
    %167 = arith.addf %166, %165 : vector<2x32xf32>
    %168 = arith.divf %166, %167 : vector<2x32xf32>
    %169 = arith.mulf %160, %143 : vector<2x32xf32>
    %170 = arith.mulf %154, %162 : vector<2x32xf32>
    %171 = arith.addf %169, %170 : vector<2x32xf32>
    %172 = math.tanh %171 : vector<2x32xf32>
    %173 = arith.mulf %168, %172 : vector<2x32xf32>
    %174 = vector.extract_strided_slice %31 {offsets = [10, 0], sizes = [2, 128], strides = [1, 1]} : vector<16x128xf32> to vector<2x128xf32>
    %cst_45 = arith.constant dense<0.000000e+00> : vector<2x128xf32>
    %175 = tpu.matmul %173, %27, %cst_45 {dimension_numbers = #tpu.dot_dimension_numbers<[1], [0], [0], [1], [0, 0, 1, 1], [], []>} : vector<2x32xf32>, vector<32x128xf32>, vector<2x128xf32> -> vector<2x128xf32>
    %176 = arith.addf %174, %175 : vector<2x128xf32>
    %177 = vector.extract_strided_slice %176 {offsets = [0, 0], sizes = [2, 32], strides = [1, 1]} : vector<2x128xf32> to vector<2x32xf32>
    %178 = arith.negf %177 : vector<2x32xf32>
    %179 = math.exp %178 : vector<2x32xf32>
    %cst_46 = arith.constant 1.000000e+00 : f32
    %180 = vector.broadcast %cst_46 : f32 to vector<2x32xf32>
    %181 = arith.addf %180, %179 : vector<2x32xf32>
    %182 = arith.divf %180, %181 : vector<2x32xf32>
    %183 = vector.extract_strided_slice %176 {offsets = [0, 32], sizes = [2, 32], strides = [1, 1]} : vector<2x128xf32> to vector<2x32xf32>
    %184 = arith.negf %183 : vector<2x32xf32>
    %185 = math.exp %184 : vector<2x32xf32>
    %cst_47 = arith.constant 1.000000e+00 : f32
    %186 = vector.broadcast %cst_47 : f32 to vector<2x32xf32>
    %187 = arith.addf %186, %185 : vector<2x32xf32>
    %188 = arith.divf %186, %187 : vector<2x32xf32>
    %189 = vector.extract_strided_slice %176 {offsets = [0, 64], sizes = [2, 32], strides = [1, 1]} : vector<2x128xf32> to vector<2x32xf32>
    %190 = math.tanh %189 : vector<2x32xf32>
    %191 = vector.extract_strided_slice %176 {offsets = [0, 96], sizes = [2, 32], strides = [1, 1]} : vector<2x128xf32> to vector<2x32xf32>
    %192 = arith.negf %191 : vector<2x32xf32>
    %193 = math.exp %192 : vector<2x32xf32>
    %cst_48 = arith.constant 1.000000e+00 : f32
    %194 = vector.broadcast %cst_48 : f32 to vector<2x32xf32>
    %195 = arith.addf %194, %193 : vector<2x32xf32>
    %196 = arith.divf %194, %195 : vector<2x32xf32>
    %197 = arith.mulf %188, %171 : vector<2x32xf32>
    %198 = arith.mulf %182, %190 : vector<2x32xf32>
    %199 = arith.addf %197, %198 : vector<2x32xf32>
    %200 = math.tanh %199 : vector<2x32xf32>
    %201 = arith.mulf %196, %200 : vector<2x32xf32>
    %202 = vector.extract_strided_slice %31 {offsets = [12, 0], sizes = [2, 128], strides = [1, 1]} : vector<16x128xf32> to vector<2x128xf32>
    %cst_49 = arith.constant dense<0.000000e+00> : vector<2x128xf32>
    %203 = tpu.matmul %201, %27, %cst_49 {dimension_numbers = #tpu.dot_dimension_numbers<[1], [0], [0], [1], [0, 0, 1, 1], [], []>} : vector<2x32xf32>, vector<32x128xf32>, vector<2x128xf32> -> vector<2x128xf32>
    %204 = arith.addf %202, %203 : vector<2x128xf32>
    %205 = vector.extract_strided_slice %204 {offsets = [0, 0], sizes = [2, 32], strides = [1, 1]} : vector<2x128xf32> to vector<2x32xf32>
    %206 = arith.negf %205 : vector<2x32xf32>
    %207 = math.exp %206 : vector<2x32xf32>
    %cst_50 = arith.constant 1.000000e+00 : f32
    %208 = vector.broadcast %cst_50 : f32 to vector<2x32xf32>
    %209 = arith.addf %208, %207 : vector<2x32xf32>
    %210 = arith.divf %208, %209 : vector<2x32xf32>
    %211 = vector.extract_strided_slice %204 {offsets = [0, 32], sizes = [2, 32], strides = [1, 1]} : vector<2x128xf32> to vector<2x32xf32>
    %212 = arith.negf %211 : vector<2x32xf32>
    %213 = math.exp %212 : vector<2x32xf32>
    %cst_51 = arith.constant 1.000000e+00 : f32
    %214 = vector.broadcast %cst_51 : f32 to vector<2x32xf32>
    %215 = arith.addf %214, %213 : vector<2x32xf32>
    %216 = arith.divf %214, %215 : vector<2x32xf32>
    %217 = vector.extract_strided_slice %204 {offsets = [0, 64], sizes = [2, 32], strides = [1, 1]} : vector<2x128xf32> to vector<2x32xf32>
    %218 = math.tanh %217 : vector<2x32xf32>
    %219 = vector.extract_strided_slice %204 {offsets = [0, 96], sizes = [2, 32], strides = [1, 1]} : vector<2x128xf32> to vector<2x32xf32>
    %220 = arith.negf %219 : vector<2x32xf32>
    %221 = math.exp %220 : vector<2x32xf32>
    %cst_52 = arith.constant 1.000000e+00 : f32
    %222 = vector.broadcast %cst_52 : f32 to vector<2x32xf32>
    %223 = arith.addf %222, %221 : vector<2x32xf32>
    %224 = arith.divf %222, %223 : vector<2x32xf32>
    %225 = arith.mulf %216, %199 : vector<2x32xf32>
    %226 = arith.mulf %210, %218 : vector<2x32xf32>
    %227 = arith.addf %225, %226 : vector<2x32xf32>
    %228 = math.tanh %227 : vector<2x32xf32>
    %229 = arith.mulf %224, %228 : vector<2x32xf32>
    %230 = vector.extract_strided_slice %31 {offsets = [14, 0], sizes = [2, 128], strides = [1, 1]} : vector<16x128xf32> to vector<2x128xf32>
    %cst_53 = arith.constant dense<0.000000e+00> : vector<2x128xf32>
    %231 = tpu.matmul %229, %27, %cst_53 {dimension_numbers = #tpu.dot_dimension_numbers<[1], [0], [0], [1], [0, 0, 1, 1], [], []>} : vector<2x32xf32>, vector<32x128xf32>, vector<2x128xf32> -> vector<2x128xf32>
    %232 = arith.addf %230, %231 : vector<2x128xf32>
    %233 = vector.extract_strided_slice %232 {offsets = [0, 0], sizes = [2, 32], strides = [1, 1]} : vector<2x128xf32> to vector<2x32xf32>
    %234 = arith.negf %233 : vector<2x32xf32>
    %235 = math.exp %234 : vector<2x32xf32>
    %cst_54 = arith.constant 1.000000e+00 : f32
    %236 = vector.broadcast %cst_54 : f32 to vector<2x32xf32>
    %237 = arith.addf %236, %235 : vector<2x32xf32>
    %238 = arith.divf %236, %237 : vector<2x32xf32>
    %239 = vector.extract_strided_slice %232 {offsets = [0, 32], sizes = [2, 32], strides = [1, 1]} : vector<2x128xf32> to vector<2x32xf32>
    %240 = arith.negf %239 : vector<2x32xf32>
    %241 = math.exp %240 : vector<2x32xf32>
    %cst_55 = arith.constant 1.000000e+00 : f32
    %242 = vector.broadcast %cst_55 : f32 to vector<2x32xf32>
    %243 = arith.addf %242, %241 : vector<2x32xf32>
    %244 = arith.divf %242, %243 : vector<2x32xf32>
    %245 = vector.extract_strided_slice %232 {offsets = [0, 64], sizes = [2, 32], strides = [1, 1]} : vector<2x128xf32> to vector<2x32xf32>
    %246 = math.tanh %245 : vector<2x32xf32>
    %247 = vector.extract_strided_slice %232 {offsets = [0, 96], sizes = [2, 32], strides = [1, 1]} : vector<2x128xf32> to vector<2x32xf32>
    %248 = arith.negf %247 : vector<2x32xf32>
    %249 = math.exp %248 : vector<2x32xf32>
    %cst_56 = arith.constant 1.000000e+00 : f32
    %250 = vector.broadcast %cst_56 : f32 to vector<2x32xf32>
    %251 = arith.addf %250, %249 : vector<2x32xf32>
    %252 = arith.divf %250, %251 : vector<2x32xf32>
    %253 = arith.mulf %244, %227 : vector<2x32xf32>
    %254 = arith.mulf %238, %246 : vector<2x32xf32>
    %255 = arith.addf %253, %254 : vector<2x32xf32>
    %256 = math.tanh %255 : vector<2x32xf32>
    %257 = arith.mulf %252, %256 : vector<2x32xf32>
    %258 = tpu.concatenate %61, %89, %117, %145, %173, %201, %229, %257 in 0 : vector<2x32xf32>, vector<2x32xf32>, vector<2x32xf32>, vector<2x32xf32>, vector<2x32xf32>, vector<2x32xf32>, vector<2x32xf32>, vector<2x32xf32> -> vector<16x32xf32>
    %c0_57 = arith.constant 0 : index
    %c0_58 = arith.constant 0 : index
    %259 = vector.load %arg10[%c0_57, %c0_58] : memref<32x128xf32, #tpu.memory_space<vmem>>, vector<32x128xf32>
    %c0_59 = arith.constant 0 : index
    %c0_60 = arith.constant 0 : index
    %260 = vector.load %arg11[%c0_59, %c0_60] : memref<32x128xf32, #tpu.memory_space<vmem>>, vector<32x128xf32>
    %c0_61 = arith.constant 0 : index
    %c0_62 = arith.constant 0 : index
    %261 = vector.load %arg12[%c0_61, %c0_62] : memref<1x128xf32, #tpu.memory_space<vmem>>, vector<1x128xf32>
    %cst_63 = arith.constant dense<0.000000e+00> : vector<16x128xf32>
    %262 = tpu.matmul %258, %259, %cst_63 {dimension_numbers = #tpu.dot_dimension_numbers<[1], [0], [0], [1], [0, 0, 1, 1], [], []>} : vector<16x32xf32>, vector<32x128xf32>, vector<16x128xf32> -> vector<16x128xf32>
    %263 = vector.broadcast %261 : vector<1x128xf32> to vector<16x128xf32>
    %264 = arith.addf %262, %263 : vector<16x128xf32>
    %cst_64 = arith.constant 0.000000e+00 : f32
    %265 = vector.broadcast %cst_64 : f32 to vector<2x32xf32>
    %cst_65 = arith.constant 0.000000e+00 : f32
    %266 = vector.broadcast %cst_65 : f32 to vector<2x32xf32>
    %267 = vector.extract_strided_slice %264 {offsets = [0, 0], sizes = [2, 128], strides = [1, 1]} : vector<16x128xf32> to vector<2x128xf32>
    %cst_66 = arith.constant dense<0.000000e+00> : vector<2x128xf32>
    %268 = tpu.matmul %265, %260, %cst_66 {dimension_numbers = #tpu.dot_dimension_numbers<[1], [0], [0], [1], [0, 0, 1, 1], [], []>} : vector<2x32xf32>, vector<32x128xf32>, vector<2x128xf32> -> vector<2x128xf32>
    %269 = arith.addf %267, %268 : vector<2x128xf32>
    %270 = vector.extract_strided_slice %269 {offsets = [0, 0], sizes = [2, 32], strides = [1, 1]} : vector<2x128xf32> to vector<2x32xf32>
    %271 = arith.negf %270 : vector<2x32xf32>
    %272 = math.exp %271 : vector<2x32xf32>
    %cst_67 = arith.constant 1.000000e+00 : f32
    %273 = vector.broadcast %cst_67 : f32 to vector<2x32xf32>
    %274 = arith.addf %273, %272 : vector<2x32xf32>
    %275 = arith.divf %273, %274 : vector<2x32xf32>
    %276 = vector.extract_strided_slice %269 {offsets = [0, 32], sizes = [2, 32], strides = [1, 1]} : vector<2x128xf32> to vector<2x32xf32>
    %277 = arith.negf %276 : vector<2x32xf32>
    %278 = math.exp %277 : vector<2x32xf32>
    %cst_68 = arith.constant 1.000000e+00 : f32
    %279 = vector.broadcast %cst_68 : f32 to vector<2x32xf32>
    %280 = arith.addf %279, %278 : vector<2x32xf32>
    %281 = arith.divf %279, %280 : vector<2x32xf32>
    %282 = vector.extract_strided_slice %269 {offsets = [0, 64], sizes = [2, 32], strides = [1, 1]} : vector<2x128xf32> to vector<2x32xf32>
    %283 = math.tanh %282 : vector<2x32xf32>
    %284 = vector.extract_strided_slice %269 {offsets = [0, 96], sizes = [2, 32], strides = [1, 1]} : vector<2x128xf32> to vector<2x32xf32>
    %285 = arith.negf %284 : vector<2x32xf32>
    %286 = math.exp %285 : vector<2x32xf32>
    %cst_69 = arith.constant 1.000000e+00 : f32
    %287 = vector.broadcast %cst_69 : f32 to vector<2x32xf32>
    %288 = arith.addf %287, %286 : vector<2x32xf32>
    %289 = arith.divf %287, %288 : vector<2x32xf32>
    %290 = arith.mulf %281, %266 : vector<2x32xf32>
    %291 = arith.mulf %275, %283 : vector<2x32xf32>
    %292 = arith.addf %290, %291 : vector<2x32xf32>
    %293 = math.tanh %292 : vector<2x32xf32>
    %294 = arith.mulf %289, %293 : vector<2x32xf32>
    %295 = vector.extract_strided_slice %264 {offsets = [2, 0], sizes = [2, 128], strides = [1, 1]} : vector<16x128xf32> to vector<2x128xf32>
    %cst_70 = arith.constant dense<0.000000e+00> : vector<2x128xf32>
    %296 = tpu.matmul %294, %260, %cst_70 {dimension_numbers = #tpu.dot_dimension_numbers<[1], [0], [0], [1], [0, 0, 1, 1], [], []>} : vector<2x32xf32>, vector<32x128xf32>, vector<2x128xf32> -> vector<2x128xf32>
    %297 = arith.addf %295, %296 : vector<2x128xf32>
    %298 = vector.extract_strided_slice %297 {offsets = [0, 0], sizes = [2, 32], strides = [1, 1]} : vector<2x128xf32> to vector<2x32xf32>
    %299 = arith.negf %298 : vector<2x32xf32>
    %300 = math.exp %299 : vector<2x32xf32>
    %cst_71 = arith.constant 1.000000e+00 : f32
    %301 = vector.broadcast %cst_71 : f32 to vector<2x32xf32>
    %302 = arith.addf %301, %300 : vector<2x32xf32>
    %303 = arith.divf %301, %302 : vector<2x32xf32>
    %304 = vector.extract_strided_slice %297 {offsets = [0, 32], sizes = [2, 32], strides = [1, 1]} : vector<2x128xf32> to vector<2x32xf32>
    %305 = arith.negf %304 : vector<2x32xf32>
    %306 = math.exp %305 : vector<2x32xf32>
    %cst_72 = arith.constant 1.000000e+00 : f32
    %307 = vector.broadcast %cst_72 : f32 to vector<2x32xf32>
    %308 = arith.addf %307, %306 : vector<2x32xf32>
    %309 = arith.divf %307, %308 : vector<2x32xf32>
    %310 = vector.extract_strided_slice %297 {offsets = [0, 64], sizes = [2, 32], strides = [1, 1]} : vector<2x128xf32> to vector<2x32xf32>
    %311 = math.tanh %310 : vector<2x32xf32>
    %312 = vector.extract_strided_slice %297 {offsets = [0, 96], sizes = [2, 32], strides = [1, 1]} : vector<2x128xf32> to vector<2x32xf32>
    %313 = arith.negf %312 : vector<2x32xf32>
    %314 = math.exp %313 : vector<2x32xf32>
    %cst_73 = arith.constant 1.000000e+00 : f32
    %315 = vector.broadcast %cst_73 : f32 to vector<2x32xf32>
    %316 = arith.addf %315, %314 : vector<2x32xf32>
    %317 = arith.divf %315, %316 : vector<2x32xf32>
    %318 = arith.mulf %309, %292 : vector<2x32xf32>
    %319 = arith.mulf %303, %311 : vector<2x32xf32>
    %320 = arith.addf %318, %319 : vector<2x32xf32>
    %321 = math.tanh %320 : vector<2x32xf32>
    %322 = arith.mulf %317, %321 : vector<2x32xf32>
    %323 = vector.extract_strided_slice %264 {offsets = [4, 0], sizes = [2, 128], strides = [1, 1]} : vector<16x128xf32> to vector<2x128xf32>
    %cst_74 = arith.constant dense<0.000000e+00> : vector<2x128xf32>
    %324 = tpu.matmul %322, %260, %cst_74 {dimension_numbers = #tpu.dot_dimension_numbers<[1], [0], [0], [1], [0, 0, 1, 1], [], []>} : vector<2x32xf32>, vector<32x128xf32>, vector<2x128xf32> -> vector<2x128xf32>
    %325 = arith.addf %323, %324 : vector<2x128xf32>
    %326 = vector.extract_strided_slice %325 {offsets = [0, 0], sizes = [2, 32], strides = [1, 1]} : vector<2x128xf32> to vector<2x32xf32>
    %327 = arith.negf %326 : vector<2x32xf32>
    %328 = math.exp %327 : vector<2x32xf32>
    %cst_75 = arith.constant 1.000000e+00 : f32
    %329 = vector.broadcast %cst_75 : f32 to vector<2x32xf32>
    %330 = arith.addf %329, %328 : vector<2x32xf32>
    %331 = arith.divf %329, %330 : vector<2x32xf32>
    %332 = vector.extract_strided_slice %325 {offsets = [0, 32], sizes = [2, 32], strides = [1, 1]} : vector<2x128xf32> to vector<2x32xf32>
    %333 = arith.negf %332 : vector<2x32xf32>
    %334 = math.exp %333 : vector<2x32xf32>
    %cst_76 = arith.constant 1.000000e+00 : f32
    %335 = vector.broadcast %cst_76 : f32 to vector<2x32xf32>
    %336 = arith.addf %335, %334 : vector<2x32xf32>
    %337 = arith.divf %335, %336 : vector<2x32xf32>
    %338 = vector.extract_strided_slice %325 {offsets = [0, 64], sizes = [2, 32], strides = [1, 1]} : vector<2x128xf32> to vector<2x32xf32>
    %339 = math.tanh %338 : vector<2x32xf32>
    %340 = vector.extract_strided_slice %325 {offsets = [0, 96], sizes = [2, 32], strides = [1, 1]} : vector<2x128xf32> to vector<2x32xf32>
    %341 = arith.negf %340 : vector<2x32xf32>
    %342 = math.exp %341 : vector<2x32xf32>
    %cst_77 = arith.constant 1.000000e+00 : f32
    %343 = vector.broadcast %cst_77 : f32 to vector<2x32xf32>
    %344 = arith.addf %343, %342 : vector<2x32xf32>
    %345 = arith.divf %343, %344 : vector<2x32xf32>
    %346 = arith.mulf %337, %320 : vector<2x32xf32>
    %347 = arith.mulf %331, %339 : vector<2x32xf32>
    %348 = arith.addf %346, %347 : vector<2x32xf32>
    %349 = math.tanh %348 : vector<2x32xf32>
    %350 = arith.mulf %345, %349 : vector<2x32xf32>
    %351 = vector.extract_strided_slice %264 {offsets = [6, 0], sizes = [2, 128], strides = [1, 1]} : vector<16x128xf32> to vector<2x128xf32>
    %cst_78 = arith.constant dense<0.000000e+00> : vector<2x128xf32>
    %352 = tpu.matmul %350, %260, %cst_78 {dimension_numbers = #tpu.dot_dimension_numbers<[1], [0], [0], [1], [0, 0, 1, 1], [], []>} : vector<2x32xf32>, vector<32x128xf32>, vector<2x128xf32> -> vector<2x128xf32>
    %353 = arith.addf %351, %352 : vector<2x128xf32>
    %354 = vector.extract_strided_slice %353 {offsets = [0, 0], sizes = [2, 32], strides = [1, 1]} : vector<2x128xf32> to vector<2x32xf32>
    %355 = arith.negf %354 : vector<2x32xf32>
    %356 = math.exp %355 : vector<2x32xf32>
    %cst_79 = arith.constant 1.000000e+00 : f32
    %357 = vector.broadcast %cst_79 : f32 to vector<2x32xf32>
    %358 = arith.addf %357, %356 : vector<2x32xf32>
    %359 = arith.divf %357, %358 : vector<2x32xf32>
    %360 = vector.extract_strided_slice %353 {offsets = [0, 32], sizes = [2, 32], strides = [1, 1]} : vector<2x128xf32> to vector<2x32xf32>
    %361 = arith.negf %360 : vector<2x32xf32>
    %362 = math.exp %361 : vector<2x32xf32>
    %cst_80 = arith.constant 1.000000e+00 : f32
    %363 = vector.broadcast %cst_80 : f32 to vector<2x32xf32>
    %364 = arith.addf %363, %362 : vector<2x32xf32>
    %365 = arith.divf %363, %364 : vector<2x32xf32>
    %366 = vector.extract_strided_slice %353 {offsets = [0, 64], sizes = [2, 32], strides = [1, 1]} : vector<2x128xf32> to vector<2x32xf32>
    %367 = math.tanh %366 : vector<2x32xf32>
    %368 = vector.extract_strided_slice %353 {offsets = [0, 96], sizes = [2, 32], strides = [1, 1]} : vector<2x128xf32> to vector<2x32xf32>
    %369 = arith.negf %368 : vector<2x32xf32>
    %370 = math.exp %369 : vector<2x32xf32>
    %cst_81 = arith.constant 1.000000e+00 : f32
    %371 = vector.broadcast %cst_81 : f32 to vector<2x32xf32>
    %372 = arith.addf %371, %370 : vector<2x32xf32>
    %373 = arith.divf %371, %372 : vector<2x32xf32>
    %374 = arith.mulf %365, %348 : vector<2x32xf32>
    %375 = arith.mulf %359, %367 : vector<2x32xf32>
    %376 = arith.addf %374, %375 : vector<2x32xf32>
    %377 = math.tanh %376 : vector<2x32xf32>
    %378 = arith.mulf %373, %377 : vector<2x32xf32>
    %379 = vector.extract_strided_slice %264 {offsets = [8, 0], sizes = [2, 128], strides = [1, 1]} : vector<16x128xf32> to vector<2x128xf32>
    %cst_82 = arith.constant dense<0.000000e+00> : vector<2x128xf32>
    %380 = tpu.matmul %378, %260, %cst_82 {dimension_numbers = #tpu.dot_dimension_numbers<[1], [0], [0], [1], [0, 0, 1, 1], [], []>} : vector<2x32xf32>, vector<32x128xf32>, vector<2x128xf32> -> vector<2x128xf32>
    %381 = arith.addf %379, %380 : vector<2x128xf32>
    %382 = vector.extract_strided_slice %381 {offsets = [0, 0], sizes = [2, 32], strides = [1, 1]} : vector<2x128xf32> to vector<2x32xf32>
    %383 = arith.negf %382 : vector<2x32xf32>
    %384 = math.exp %383 : vector<2x32xf32>
    %cst_83 = arith.constant 1.000000e+00 : f32
    %385 = vector.broadcast %cst_83 : f32 to vector<2x32xf32>
    %386 = arith.addf %385, %384 : vector<2x32xf32>
    %387 = arith.divf %385, %386 : vector<2x32xf32>
    %388 = vector.extract_strided_slice %381 {offsets = [0, 32], sizes = [2, 32], strides = [1, 1]} : vector<2x128xf32> to vector<2x32xf32>
    %389 = arith.negf %388 : vector<2x32xf32>
    %390 = math.exp %389 : vector<2x32xf32>
    %cst_84 = arith.constant 1.000000e+00 : f32
    %391 = vector.broadcast %cst_84 : f32 to vector<2x32xf32>
    %392 = arith.addf %391, %390 : vector<2x32xf32>
    %393 = arith.divf %391, %392 : vector<2x32xf32>
    %394 = vector.extract_strided_slice %381 {offsets = [0, 64], sizes = [2, 32], strides = [1, 1]} : vector<2x128xf32> to vector<2x32xf32>
    %395 = math.tanh %394 : vector<2x32xf32>
    %396 = vector.extract_strided_slice %381 {offsets = [0, 96], sizes = [2, 32], strides = [1, 1]} : vector<2x128xf32> to vector<2x32xf32>
    %397 = arith.negf %396 : vector<2x32xf32>
    %398 = math.exp %397 : vector<2x32xf32>
    %cst_85 = arith.constant 1.000000e+00 : f32
    %399 = vector.broadcast %cst_85 : f32 to vector<2x32xf32>
    %400 = arith.addf %399, %398 : vector<2x32xf32>
    %401 = arith.divf %399, %400 : vector<2x32xf32>
    %402 = arith.mulf %393, %376 : vector<2x32xf32>
    %403 = arith.mulf %387, %395 : vector<2x32xf32>
    %404 = arith.addf %402, %403 : vector<2x32xf32>
    %405 = math.tanh %404 : vector<2x32xf32>
    %406 = arith.mulf %401, %405 : vector<2x32xf32>
    %407 = vector.extract_strided_slice %264 {offsets = [10, 0], sizes = [2, 128], strides = [1, 1]} : vector<16x128xf32> to vector<2x128xf32>
    %cst_86 = arith.constant dense<0.000000e+00> : vector<2x128xf32>
    %408 = tpu.matmul %406, %260, %cst_86 {dimension_numbers = #tpu.dot_dimension_numbers<[1], [0], [0], [1], [0, 0, 1, 1], [], []>} : vector<2x32xf32>, vector<32x128xf32>, vector<2x128xf32> -> vector<2x128xf32>
    %409 = arith.addf %407, %408 : vector<2x128xf32>
    %410 = vector.extract_strided_slice %409 {offsets = [0, 0], sizes = [2, 32], strides = [1, 1]} : vector<2x128xf32> to vector<2x32xf32>
    %411 = arith.negf %410 : vector<2x32xf32>
    %412 = math.exp %411 : vector<2x32xf32>
    %cst_87 = arith.constant 1.000000e+00 : f32
    %413 = vector.broadcast %cst_87 : f32 to vector<2x32xf32>
    %414 = arith.addf %413, %412 : vector<2x32xf32>
    %415 = arith.divf %413, %414 : vector<2x32xf32>
    %416 = vector.extract_strided_slice %409 {offsets = [0, 32], sizes = [2, 32], strides = [1, 1]} : vector<2x128xf32> to vector<2x32xf32>
    %417 = arith.negf %416 : vector<2x32xf32>
    %418 = math.exp %417 : vector<2x32xf32>
    %cst_88 = arith.constant 1.000000e+00 : f32
    %419 = vector.broadcast %cst_88 : f32 to vector<2x32xf32>
    %420 = arith.addf %419, %418 : vector<2x32xf32>
    %421 = arith.divf %419, %420 : vector<2x32xf32>
    %422 = vector.extract_strided_slice %409 {offsets = [0, 64], sizes = [2, 32], strides = [1, 1]} : vector<2x128xf32> to vector<2x32xf32>
    %423 = math.tanh %422 : vector<2x32xf32>
    %424 = vector.extract_strided_slice %409 {offsets = [0, 96], sizes = [2, 32], strides = [1, 1]} : vector<2x128xf32> to vector<2x32xf32>
    %425 = arith.negf %424 : vector<2x32xf32>
    %426 = math.exp %425 : vector<2x32xf32>
    %cst_89 = arith.constant 1.000000e+00 : f32
    %427 = vector.broadcast %cst_89 : f32 to vector<2x32xf32>
    %428 = arith.addf %427, %426 : vector<2x32xf32>
    %429 = arith.divf %427, %428 : vector<2x32xf32>
    %430 = arith.mulf %421, %404 : vector<2x32xf32>
    %431 = arith.mulf %415, %423 : vector<2x32xf32>
    %432 = arith.addf %430, %431 : vector<2x32xf32>
    %433 = math.tanh %432 : vector<2x32xf32>
    %434 = arith.mulf %429, %433 : vector<2x32xf32>
    %435 = vector.extract_strided_slice %264 {offsets = [12, 0], sizes = [2, 128], strides = [1, 1]} : vector<16x128xf32> to vector<2x128xf32>
    %cst_90 = arith.constant dense<0.000000e+00> : vector<2x128xf32>
    %436 = tpu.matmul %434, %260, %cst_90 {dimension_numbers = #tpu.dot_dimension_numbers<[1], [0], [0], [1], [0, 0, 1, 1], [], []>} : vector<2x32xf32>, vector<32x128xf32>, vector<2x128xf32> -> vector<2x128xf32>
    %437 = arith.addf %435, %436 : vector<2x128xf32>
    %438 = vector.extract_strided_slice %437 {offsets = [0, 0], sizes = [2, 32], strides = [1, 1]} : vector<2x128xf32> to vector<2x32xf32>
    %439 = arith.negf %438 : vector<2x32xf32>
    %440 = math.exp %439 : vector<2x32xf32>
    %cst_91 = arith.constant 1.000000e+00 : f32
    %441 = vector.broadcast %cst_91 : f32 to vector<2x32xf32>
    %442 = arith.addf %441, %440 : vector<2x32xf32>
    %443 = arith.divf %441, %442 : vector<2x32xf32>
    %444 = vector.extract_strided_slice %437 {offsets = [0, 32], sizes = [2, 32], strides = [1, 1]} : vector<2x128xf32> to vector<2x32xf32>
    %445 = arith.negf %444 : vector<2x32xf32>
    %446 = math.exp %445 : vector<2x32xf32>
    %cst_92 = arith.constant 1.000000e+00 : f32
    %447 = vector.broadcast %cst_92 : f32 to vector<2x32xf32>
    %448 = arith.addf %447, %446 : vector<2x32xf32>
    %449 = arith.divf %447, %448 : vector<2x32xf32>
    %450 = vector.extract_strided_slice %437 {offsets = [0, 64], sizes = [2, 32], strides = [1, 1]} : vector<2x128xf32> to vector<2x32xf32>
    %451 = math.tanh %450 : vector<2x32xf32>
    %452 = vector.extract_strided_slice %437 {offsets = [0, 96], sizes = [2, 32], strides = [1, 1]} : vector<2x128xf32> to vector<2x32xf32>
    %453 = arith.negf %452 : vector<2x32xf32>
    %454 = math.exp %453 : vector<2x32xf32>
    %cst_93 = arith.constant 1.000000e+00 : f32
    %455 = vector.broadcast %cst_93 : f32 to vector<2x32xf32>
    %456 = arith.addf %455, %454 : vector<2x32xf32>
    %457 = arith.divf %455, %456 : vector<2x32xf32>
    %458 = arith.mulf %449, %432 : vector<2x32xf32>
    %459 = arith.mulf %443, %451 : vector<2x32xf32>
    %460 = arith.addf %458, %459 : vector<2x32xf32>
    %461 = math.tanh %460 : vector<2x32xf32>
    %462 = arith.mulf %457, %461 : vector<2x32xf32>
    %463 = vector.extract_strided_slice %264 {offsets = [14, 0], sizes = [2, 128], strides = [1, 1]} : vector<16x128xf32> to vector<2x128xf32>
    %cst_94 = arith.constant dense<0.000000e+00> : vector<2x128xf32>
    %464 = tpu.matmul %462, %260, %cst_94 {dimension_numbers = #tpu.dot_dimension_numbers<[1], [0], [0], [1], [0, 0, 1, 1], [], []>} : vector<2x32xf32>, vector<32x128xf32>, vector<2x128xf32> -> vector<2x128xf32>
    %465 = arith.addf %463, %464 : vector<2x128xf32>
    %466 = vector.extract_strided_slice %465 {offsets = [0, 0], sizes = [2, 32], strides = [1, 1]} : vector<2x128xf32> to vector<2x32xf32>
    %467 = arith.negf %466 : vector<2x32xf32>
    %468 = math.exp %467 : vector<2x32xf32>
    %cst_95 = arith.constant 1.000000e+00 : f32
    %469 = vector.broadcast %cst_95 : f32 to vector<2x32xf32>
    %470 = arith.addf %469, %468 : vector<2x32xf32>
    %471 = arith.divf %469, %470 : vector<2x32xf32>
    %472 = vector.extract_strided_slice %465 {offsets = [0, 32], sizes = [2, 32], strides = [1, 1]} : vector<2x128xf32> to vector<2x32xf32>
    %473 = arith.negf %472 : vector<2x32xf32>
    %474 = math.exp %473 : vector<2x32xf32>
    %cst_96 = arith.constant 1.000000e+00 : f32
    %475 = vector.broadcast %cst_96 : f32 to vector<2x32xf32>
    %476 = arith.addf %475, %474 : vector<2x32xf32>
    %477 = arith.divf %475, %476 : vector<2x32xf32>
    %478 = vector.extract_strided_slice %465 {offsets = [0, 64], sizes = [2, 32], strides = [1, 1]} : vector<2x128xf32> to vector<2x32xf32>
    %479 = math.tanh %478 : vector<2x32xf32>
    %480 = vector.extract_strided_slice %465 {offsets = [0, 96], sizes = [2, 32], strides = [1, 1]} : vector<2x128xf32> to vector<2x32xf32>
    %481 = arith.negf %480 : vector<2x32xf32>
    %482 = math.exp %481 : vector<2x32xf32>
    %cst_97 = arith.constant 1.000000e+00 : f32
    %483 = vector.broadcast %cst_97 : f32 to vector<2x32xf32>
    %484 = arith.addf %483, %482 : vector<2x32xf32>
    %485 = arith.divf %483, %484 : vector<2x32xf32>
    %486 = arith.mulf %477, %460 : vector<2x32xf32>
    %487 = arith.mulf %471, %479 : vector<2x32xf32>
    %488 = arith.addf %486, %487 : vector<2x32xf32>
    %489 = math.tanh %488 : vector<2x32xf32>
    %490 = arith.mulf %485, %489 : vector<2x32xf32>
    %491 = tpu.concatenate %257, %255, %490, %488 in 1 : vector<2x32xf32>, vector<2x32xf32>, vector<2x32xf32>, vector<2x32xf32> -> vector<2x128xf32>
    %492 = math.tanh %491 : vector<2x128xf32>
    %c0_98 = arith.constant 0 : index
    %c0_99 = arith.constant 0 : index
    %493 = vector.load %arg13[%c0_98, %c0_99] : memref<128x32xf32, #tpu.memory_space<vmem>>, vector<128x32xf32>
    %cst_100 = arith.constant dense<0.000000e+00> : vector<2x32xf32>
    %494 = tpu.matmul %492, %493, %cst_100 {dimension_numbers = #tpu.dot_dimension_numbers<[1], [0], [0], [1], [0, 0, 1, 1], [], []>} : vector<2x128xf32>, vector<128x32xf32>, vector<2x32xf32> -> vector<2x32xf32>
    %c0_101 = arith.constant 0 : index
    %c0_102 = arith.constant 0 : index
    %495 = vector.load %arg14[%c0_101, %c0_102] : memref<1x32xf32, #tpu.memory_space<vmem>>, vector<1x32xf32>
    %496 = vector.broadcast %495 : vector<1x32xf32> to vector<2x32xf32>
    %497 = arith.addf %494, %496 : vector<2x32xf32>
    %498 = arith.mulf %16, %497 : vector<2x32xf32>
    %499 = math.tanh %498 : vector<2x32xf32>
    %c0_103 = arith.constant 0 : index
    %c0_104 = arith.constant 0 : index
    %500 = vector.load %arg15[%c0_103, %c0_104] : memref<32x16xf32, #tpu.memory_space<vmem>>, vector<32x16xf32>
    %cst_105 = arith.constant dense<0.000000e+00> : vector<2x16xf32>
    %501 = tpu.matmul %499, %500, %cst_105 {dimension_numbers = #tpu.dot_dimension_numbers<[1], [0], [0], [1], [0, 0, 1, 1], [], []>} : vector<2x32xf32>, vector<32x16xf32>, vector<2x16xf32> -> vector<2x16xf32>
    %c0_106 = arith.constant 0 : index
    %c0_107 = arith.constant 0 : index
    %502 = vector.load %arg16[%c0_106, %c0_107] : memref<1x16xf32, #tpu.memory_space<vmem>>, vector<1x16xf32>
    %503 = vector.broadcast %502 : vector<1x16xf32> to vector<2x16xf32>
    %504 = arith.addf %501, %503 : vector<2x16xf32>
    %505 = math.tanh %504 : vector<2x16xf32>
    %c0_108 = arith.constant 0 : index
    %c0_109 = arith.constant 0 : index
    %506 = vector.load %arg17[%c0_108, %c0_109] : memref<16x16xf32, #tpu.memory_space<vmem>>, vector<16x16xf32>
    %cst_110 = arith.constant dense<0.000000e+00> : vector<2x16xf32>
    %507 = tpu.matmul %505, %506, %cst_110 {dimension_numbers = #tpu.dot_dimension_numbers<[1], [0], [0], [1], [0, 0, 1, 1], [], []>} : vector<2x16xf32>, vector<16x16xf32>, vector<2x16xf32> -> vector<2x16xf32>
    %c0_111 = arith.constant 0 : index
    %c0_112 = arith.constant 0 : index
    %508 = vector.load %arg18[%c0_111, %c0_112] : memref<1x16xf32, #tpu.memory_space<vmem>>, vector<1x16xf32>
    %509 = vector.broadcast %508 : vector<1x16xf32> to vector<2x16xf32>
    %510 = arith.addf %507, %509 : vector<2x16xf32>
    %c0_113 = arith.constant 0 : index
    %c0_114 = arith.constant 0 : index
    %511 = vector.load %arg19[%c0_113, %c0_114] : memref<2x16xf32, #tpu.memory_space<vmem>>, vector<2x16xf32>
    tpu.vector_store %arg19[%c0_113, %c0_114], %510 {strides = array<i32>} : memref<2x16xf32, #tpu.memory_space<vmem>>, vector<2x16xf32>,
    return
  }
}

</mosaic_0001>

<llo_original>
// kernel: vqa_forward.1
$region0: #{vqa_forward.1}
  #allocation0 [shape = 'u32[]', space=smem, size = 0x4, offset = 0x4, fixed_abs, tag = 'smem constant byte address 0x4 - core index']
  #allocation1 [shape = 'u32[144,128]{1,0:T(1,128)}', space=vmem, size = 0x12000, scoped, tag = 'internal scratch']
  %s0 = inlined_call_operand.vmem [shape: s32[16,1], index: 0, kind: input, shape index: {}]
  %s1 = inlined_call_operand.vmem [shape: f32[2,768], index: 1, kind: input, shape index: {}]
  %s2 = inlined_call_operand.vmem [shape: f32[768,64], index: 2, kind: input, shape index: {}]
  %s3 = inlined_call_operand.vmem [shape: f32[1,64], index: 3, kind: input, shape index: {}]
  %s4 = inlined_call_operand.vmem [shape: f32[64,32], index: 4, kind: input, shape index: {}]
  %s5 = inlined_call_operand.vmem [shape: f32[1,32], index: 5, kind: input, shape index: {}]
  %s6 = inlined_call_operand.vmem [shape: f32[64,32], index: 6, kind: input, shape index: {}]
  %s7 = inlined_call_operand.vmem [shape: f32[32,128], index: 7, kind: input, shape index: {}]
  %s8 = inlined_call_operand.vmem [shape: f32[32,128], index: 8, kind: input, shape index: {}]
  %s9 = inlined_call_operand.vmem [shape: f32[1,128], index: 9, kind: input, shape index: {}]
  %s10 = inlined_call_operand.vmem [shape: f32[32,128], index: 10, kind: input, shape index: {}]
  %s11 = inlined_call_operand.vmem [shape: f32[32,128], index: 11, kind: input, shape index: {}]
  %s12 = inlined_call_operand.vmem [shape: f32[1,128], index: 12, kind: input, shape index: {}]
  %s13 = inlined_call_operand.vmem [shape: f32[128,32], index: 13, kind: input, shape index: {}]
  %s14 = inlined_call_operand.vmem [shape: f32[1,32], index: 14, kind: input, shape index: {}]
  %s15 = inlined_call_operand.vmem [shape: f32[32,16], index: 15, kind: input, shape index: {}]
  %s16 = inlined_call_operand.vmem [shape: f32[1,16], index: 16, kind: input, shape index: {}]
  %s17 = inlined_call_operand.vmem [shape: f32[16,16], index: 17, kind: input, shape index: {}]
  %s18 = inlined_call_operand.vmem [shape: f32[1,16], index: 18, kind: input, shape index: {}]
  %s19 = inlined_call_operand.hbm [shape: f32[2,16], index: 19, kind: output, shape index: {}]
  %s20 = sld [smem:[#allocation0]]
  $region86: #{vqa_forward.1} parent=0
    _
  %s22 = ssub.s32 1, %s20
  %s23 = scalar_select 0, %s22, %s20
  $region1: #{vqa_forward.1} parent=0
    #allocation2 [shape = 'u8[1024]{0}', space=vmem, size = 0x400, scoped, tag = 'output window, operand 0, single buffered']
    #allocation3 [shape = 's32[1]{0}', space=sflag, size = 0x4, scoped, tag = 'scoped memory for vqa_forward.1']
    %24 = vsyncpa [#allocation3], 0
    // Predicated region
    $region2: #{vqa_forward.1} parent=1 // pred_check
      _
    $region3: #{vqa_forward.1} parent=1 // pred_check_branch
      %26 = sbr.rel (0) target = $region5
    $region4: #{vqa_forward.1} parent=1 // pred_region
      _
    $region5: #{vqa_forward.1} parent=1 // pred_fallthru
      _
    // Predicated region
    $region6: #{vqa_forward.1} parent=1 // pred_check
      _
    $region7: #{vqa_forward.1} parent=1 // pred_check_branch
      %28 = sbr.rel (0) target = $region9
    $region8: #{vqa_forward.1} parent=1 // pred_region
      _
    $region9: #{vqa_forward.1} parent=1 // pred_fallthru
      _
    // Predicated region
    $region10: #{vqa_forward.1} parent=1 // pred_check
      _
    $region11: #{vqa_forward.1} parent=1 // pred_check_branch
      %30 = sbr.rel (0) target = $region13
    $region12: #{vqa_forward.1} parent=1 // pred_region
      _
    $region13: #{vqa_forward.1} parent=1 // pred_fallthru
      _
    // Predicated region
    $region14: #{vqa_forward.1} parent=1 // pred_check
      _
    $region15: #{vqa_forward.1} parent=1 // pred_check_branch
      %32 = sbr.rel (0) target = $region17
    $region16: #{vqa_forward.1} parent=1 // pred_region
      _
    $region17: #{vqa_forward.1} parent=1 // pred_fallthru
      _
    // Predicated region
    $region18: #{vqa_forward.1} parent=1 // pred_check
      _
    $region19: #{vqa_forward.1} parent=1 // pred_check_branch
      %34 = sbr.rel (0) target = $region21
    $region20: #{vqa_forward.1} parent=1 // pred_region
      _
    $region21: #{vqa_forward.1} parent=1 // pred_fallthru
      _
    // Predicated region
    $region22: #{vqa_forward.1} parent=1 // pred_check
      _
    $region23: #{vqa_forward.1} parent=1 // pred_check_branch
      %36 = sbr.rel (0) target = $region25
    $region24: #{vqa_forward.1} parent=1 // pred_region
      _
    $region25: #{vqa_forward.1} parent=1 // pred_fallthru
      _
    // Predicated region
    $region26: #{vqa_forward.1} parent=1 // pred_check
      _
    $region27: #{vqa_forward.1} parent=1 // pred_check_branch
      %38 = sbr.rel (0) target = $region29
    $region28: #{vqa_forward.1} parent=1 // pred_region
      _
    $region29: #{vqa_forward.1} parent=1 // pred_fallthru
      _
    // Predicated region
    $region30: #{vqa_forward.1} parent=1 // pred_check
      _
    $region31: #{vqa_forward.1} parent=1 // pred_check_branch
      %40 = sbr.rel (0) target = $region33
    $region32: #{vqa_forward.1} parent=1 // pred_region
      _
    $region33: #{vqa_forward.1} parent=1 // pred_fallthru
      _
    // Predicated region
    $region34: #{vqa_forward.1} parent=1 // pred_check
      _
    $region35: #{vqa_forward.1} parent=1 // pred_check_branch
      %42 = sbr.rel (0) target = $region37
    $region36: #{vqa_forward.1} parent=1 // pred_region
      _
    $region37: #{vqa_forward.1} parent=1 // pred_fallthru
      _
    // Predicated region
    $region38: #{vqa_forward.1} parent=1 // pred_check
      _
    $region39: #{vqa_forward.1} parent=1 // pred_check_branch
      %44 = sbr.rel (0) target = $region41
    $region40: #{vqa_forward.1} parent=1 // pred_region
      _
    $region41: #{vqa_forward.1} parent=1 // pred_fallthru
      _
    // Predicated region
    $region42: #{vqa_forward.1} parent=1 // pred_check
      _
    $region43: #{vqa_forward.1} parent=1 // pred_check_branch
      %46 = sbr.rel (0) target = $region45
    $region44: #{vqa_forward.1} parent=1 // pred_region
      _
    $region45: #{vqa_forward.1} parent=1 // pred_fallthru
      _
    // Predicated region
    $region46: #{vqa_forward.1} parent=1 // pred_check
      _
    $region47: #{vqa_forward.1} parent=1 // pred_check_branch
      %48 = sbr.rel (0) target = $region49
    $region48: #{vqa_forward.1} parent=1 // pred_region
      _
    $region49: #{vqa_forward.1} parent=1 // pred_fallthru
      _
    // Predicated region
    $region50: #{vqa_forward.1} parent=1 // pred_check
      _
    $region51: #{vqa_forward.1} parent=1 // pred_check_branch
      %50 = sbr.rel (0) target = $region53
    $region52: #{vqa_forward.1} parent=1 // pred_region
      _
    $region53: #{vqa_forward.1} parent=1 // pred_fallthru
      _
    // Predicated region
    $region54: #{vqa_forward.1} parent=1 // pred_check
      _
    $region55: #{vqa_forward.1} parent=1 // pred_check_branch
      %52 = sbr.rel (0) target = $region57
    $region56: #{vqa_forward.1} parent=1 // pred_region
      _
    $region57: #{vqa_forward.1} parent=1 // pred_fallthru
      _
    // Predicated region
    $region58: #{vqa_forward.1} parent=1 // pred_check
      _
    $region59: #{vqa_forward.1} parent=1 // pred_check_branch
      %54 = sbr.rel (0) target = $region61
    $region60: #{vqa_forward.1} parent=1 // pred_region
      _
    $region61: #{vqa_forward.1} parent=1 // pred_fallthru
      _
    // Predicated region
    $region62: #{vqa_forward.1} parent=1 // pred_check
      _
    $region63: #{vqa_forward.1} parent=1 // pred_check_branch
      %56 = sbr.rel (0) target = $region65
    $region64: #{vqa_forward.1} parent=1 // pred_region
      _
    $region65: #{vqa_forward.1} parent=1 // pred_fallthru
      _
    // Predicated region
    $region66: #{vqa_forward.1} parent=1 // pred_check
      _
    $region67: #{vqa_forward.1} parent=1 // pred_check_branch
      %58 = sbr.rel (0) target = $region69
    $region68: #{vqa_forward.1} parent=1 // pred_region
      _
    $region69: #{vqa_forward.1} parent=1 // pred_fallthru
      _
    // Predicated region
    $region70: #{vqa_forward.1} parent=1 // pred_check
      _
    $region71: #{vqa_forward.1} parent=1 // pred_check_branch
      %60 = sbr.rel (0) target = $region73
    $region72: #{vqa_forward.1} parent=1 // pred_region
      _
    $region73: #{vqa_forward.1} parent=1 // pred_fallthru
      _
    // Predicated region
    $region74: #{vqa_forward.1} parent=1 // pred_check
      _
    $region75: #{vqa_forward.1} parent=1 // pred_check_branch
      %62 = sbr.rel (0) target = $region77
    $region76: #{vqa_forward.1} parent=1 // pred_region
      _
    $region77: #{vqa_forward.1} parent=1 // pred_fallthru
      _
    %v63 = vld [vmem:[%s1] sm:$0xff]
    %v64 = vld [vmem:[%s1 + $0x8] sm:$0xf]
    %v65 = vld [vmem:[%s2] sm:$0xff]
    %v66 = vld [vmem:[%s2 + $0x8] sm:$0xff]
    %v67 = vld [vmem:[%s2 + $0x10] sm:$0xff]
    %v68 = vld [vmem:[%s2 + $0x18] sm:$0xff]
    %v69 = vld [vmem:[%s2 + $0x20] sm:$0xff]
    %v70 = vld [vmem:[%s2 + $0x28] sm:$0xff]
    %v71 = vld [vmem:[%s2 + $0x30] sm:$0xff]
    %v72 = vld [vmem:[%s2 + $0x38] sm:$0xff]
    %v73 = vld [vmem:[%s2 + $0x40] sm:$0xff]
    %v74 = vld [vmem:[%s2 + $0x48] sm:$0xff]
    %v75 = vld [vmem:[%s2 + $0x50] sm:$0xff]
    %v76 = vld [vmem:[%s2 + $0x58] sm:$0xff]
    %v77 = vld [vmem:[%s2 + $0x60] sm:$0xff]
    %v78 = vld [vmem:[%s2 + $0x68] sm:$0xff]
    %v79 = vld [vmem:[%s2 + $0x70] sm:$0xff]
    %v80 = vld [vmem:[%s2 + $0x78] sm:$0xff]
    %v81 = vld [vmem:[%s2 + $0x80] sm:$0xff]
    %v82 = vld [vmem:[%s2 + $0x88] sm:$0xff]
    %v83 = vld [vmem:[%s2 + $0x90] sm:$0xff]
    %v84 = vld [vmem:[%s2 + $0x98] sm:$0xff]
    %v85 = vld [vmem:[%s2 + $0xa0] sm:$0xff]
    %v86 = vld [vmem:[%s2 + $0xa8] sm:$0xff]
    %v87 = vld [vmem:[%s2 + $0xb0] sm:$0xff]
    %v88 = vld [vmem:[%s2 + $0xb8] sm:$0xff]
    %v89 = vld [vmem:[%s2 + $0xc0] sm:$0xff]
    %v90 = vld [vmem:[%s2 + $0xc8] sm:$0xff]
    %v91 = vld [vmem:[%s2 + $0xd0] sm:$0xff]
    %v92 = vld [vmem:[%s2 + $0xd8] sm:$0xff]
    %v93 = vld [vmem:[%s2 + $0xe0] sm:$0xff]
    %v94 = vld [vmem:[%s2 + $0xe8] sm:$0xff]
    %v95 = vld [vmem:[%s2 + $0xf0] sm:$0xff]
    %v96 = vld [vmem:[%s2 + $0xf8] sm:$0xff]
    %v97 = vld [vmem:[%s2 + $0x100] sm:$0xff]
    %v98 = vld [vmem:[%s2 + $0x108] sm:$0xff]
    %v99 = vld [vmem:[%s2 + $0x110] sm:$0xff]
    %v100 = vld [vmem:[%s2 + $0x118] sm:$0xff]
    %v101 = vld [vmem:[%s2 + $0x120] sm:$0xff]
    %v102 = vld [vmem:[%s2 + $0x128] sm:$0xff]
    %v103 = vld [vmem:[%s2 + $0x130] sm:$0xff]
    %v104 = vld [vmem:[%s2 + $0x138] sm:$0xff]
    %v105 = vld [vmem:[%s2 + $0x140] sm:$0xff]
    %v106 = vld [vmem:[%s2 + $0x148] sm:$0xff]
    %v107 = vld [vmem:[%s2 + $0x150] sm:$0xff]
    %v108 = vld [vmem:[%s2 + $0x158] sm:$0xff]
    %v109 = vld [vmem:[%s2 + $0x160] sm:$0xff]
    %v110 = vld [vmem:[%s2 + $0x168] sm:$0xff]
    %v111 = vld [vmem:[%s2 + $0x170] sm:$0xff]
    %v112 = vld [vmem:[%s2 + $0x178] sm:$0xff]
    %v113 = vld [vmem:[%s2 + $0x180] sm:$0xff]
    %v114 = vld [vmem:[%s2 + $0x188] sm:$0xff]
    %v115 = vld [vmem:[%s2 + $0x190] sm:$0xff]
    %v116 = vld [vmem:[%s2 + $0x198] sm:$0xff]
    %v117 = vld [vmem:[%s2 + $0x1a0] sm:$0xff]
    %v118 = vld [vmem:[%s2 + $0x1a8] sm:$0xff]
    %v119 = vld [vmem:[%s2 + $0x1b0] sm:$0xff]
    %v120 = vld [vmem:[%s2 + $0x1b8] sm:$0xff]
    %v121 = vld [vmem:[%s2 + $0x1c0] sm:$0xff]
    %v122 = vld [vmem:[%s2 + $0x1c8] sm:$0xff]
    %v123 = vld [vmem:[%s2 + $0x1d0] sm:$0xff]
    %v124 = vld [vmem:[%s2 + $0x1d8] sm:$0xff]
    %v125 = vld [vmem:[%s2 + $0x1e0] sm:$0xff]
    %v126 = vld [vmem:[%s2 + $0x1e8] sm:$0xff]
    %v127 = vld [vmem:[%s2 + $0x1f0] sm:$0xff]
    %v128 = vld [vmem:[%s2 + $0x1f8] sm:$0xff]
    %v129 = vld [vmem:[%s2 + $0x200] sm:$0xff]
    %v130 = vld [vmem:[%s2 + $0x208] sm:$0xff]
    %v131 = vld [vmem:[%s2 + $0x210] sm:$0xff]
    %v132 = vld [vmem:[%s2 + $0x218] sm:$0xff]
    %v133 = vld [vmem:[%s2 + $0x220] sm:$0xff]
    %v134 = vld [vmem:[%s2 + $0x228] sm:$0xff]
    %v135 = vld [vmem:[%s2 + $0x230] sm:$0xff]
    %v136 = vld [vmem:[%s2 + $0x238] sm:$0xff]
    %v137 = vld [vmem:[%s2 + $0x240] sm:$0xff]
    %v138 = vld [vmem:[%s2 + $0x248] sm:$0xff]
    %v139 = vld [vmem:[%s2 + $0x250] sm:$0xff]
    %v140 = vld [vmem:[%s2 + $0x258] sm:$0xff]
    %v141 = vld [vmem:[%s2 + $0x260] sm:$0xff]
    %v142 = vld [vmem:[%s2 + $0x268] sm:$0xff]
    %v143 = vld [vmem:[%s2 + $0x270] sm:$0xff]
    %v144 = vld [vmem:[%s2 + $0x278] sm:$0xff]
    %v145 = vld [vmem:[%s2 + $0x280] sm:$0xff]
    %v146 = vld [vmem:[%s2 + $0x288] sm:$0xff]
    %v147 = vld [vmem:[%s2 + $0x290] sm:$0xff]
    %v148 = vld [vmem:[%s2 + $0x298] sm:$0xff]
    %v149 = vld [vmem:[%s2 + $0x2a0] sm:$0xff]
    %v150 = vld [vmem:[%s2 + $0x2a8] sm:$0xff]
    %v151 = vld [vmem:[%s2 + $0x2b0] sm:$0xff]
    %v152 = vld [vmem:[%s2 + $0x2b8] sm:$0xff]
    %v153 = vld [vmem:[%s2 + $0x2c0] sm:$0xff]
    %v154 = vld [vmem:[%s2 + $0x2c8] sm:$0xff]
    %v155 = vld [vmem:[%s2 + $0x2d0] sm:$0xff]
    %v156 = vld [vmem:[%s2 + $0x2d8] sm:$0xff]
    %v157 = vld [vmem:[%s2 + $0x2e0] sm:$0xff]
    %v158 = vld [vmem:[%s2 + $0x2e8] sm:$0xff]
    %v159 = vld [vmem:[%s2 + $0x2f0] sm:$0xff]
    %v160 = vld [vmem:[%s2 + $0x2f8] sm:$0xff]
    %v161 = vld [vmem:[%s3] sm:$0x1]
    %v163 = vlaneseq
    %v164 = vshrl.u32 %v163, 7
    %v165 = vsub.s32 0, %v164
    %v166 = vrot.slane %v161, %v165
    %v170 = vcombine.high %v63, %v63
    %v172 = vunpack.c.l.s4 1983009808
    %v173 = vunpack.c.0.s8 %v172
    %v174 = vlaneseq
    %v175 = vshrl.u32 %v174, 7
    %v176 = vsub.s32 %v173, %v175
    %v177 = vrot.slane %v63, %v176
    %v179 = vunpack.c.l.s4 1983009808
    %v180 = vunpack.c.0.s8 %v179
    %v181 = vlaneseq
    %v182 = vshrl.u32 %v181, 7
    %v183 = vsub.s32 %v180, %v182
    %v184 = vrot.slane %v170, %v183
    %v185 = vcombine.high %v177, %v177
    %v186 = vcombine.high %v184, %v184
    %v188 = vunpack.c.l.s4 1983009808
    %v189 = vunpack.c.0.s8 %v188
    %v190 = vlaneseq
    %v191 = vshrl.u32 %v190, 7
    %v192 = vsub.s32 %v189, %v191
    %v193 = vrot.slane %v64, %v192
    %v194 = vcombine.high %v193, %v193
    %201 = vmatprep.subr.mxu0 0.0
    %202 = vmatpush1.msra.mxu0 %v65
    %203 = vmatprep.subr.mxu0 0.0
    %204 = vmatpush1.msra.mxu0 %v66
    %205 = vmatprep.subr.mxu0 0.0
    %206 = vmatpush1.msra.mxu0 %v67
    %207 = vmatprep.subr.mxu0 0.0
    %208 = vmatpush1.msra.mxu0 %v68
    %209 = vmatprep.subr.mxu0 0.0
    %210 = vmatpush1.msra.mxu0 %v69
    %211 = vmatprep.subr.mxu0 0.0
    %212 = vmatpush1.msra.mxu0 %v70
    %213 = vmatprep.subr.mxu0 0.0
    %214 = vmatpush1.msra.mxu0 %v71
    %215 = vmatprep.subr.mxu0 0.0
    %216 = vmatpush1.msra.mxu0 %v72
    %217 = vmatprep.subr.mxu0 0.0
    %218 = vmatpush1.msra.mxu0 %v73
    %219 = vmatprep.subr.mxu0 0.0
    %220 = vmatpush1.msra.mxu0 %v74
    %221 = vmatprep.subr.mxu0 0.0
    %222 = vmatpush1.msra.mxu0 %v75
    %223 = vmatprep.subr.mxu0 0.0
    %224 = vmatpush1.msra.mxu0 %v76
    %225 = vmatprep.subr.mxu0 0.0
    %226 = vmatpush1.msra.mxu0 %v77
    %227 = vmatprep.subr.mxu0 0.0
    %228 = vmatpush1.msra.mxu0 %v78
    %229 = vmatprep.subr.mxu0 0.0
    %230 = vmatpush1.msra.mxu0 %v79
    %231 = vmatprep.subr.mxu0 0.0
    %232 = vmatpush1.msra.mxu0 %v80
    %233 = vmatprep.subr.mxu0 0.0
    %234 = vmatpush1.msra.mxu0 %v81
    %235 = vmatprep.subr.mxu0 0.0
    %236 = vmatpush1.msra.mxu0 %v82
    %237 = vmatprep.subr.mxu0 0.0
    %238 = vmatpush1.msra.mxu0 %v83
    %239 = vmatprep.subr.mxu0 0.0
    %240 = vmatpush1.msra.mxu0 %v84
    %241 = vmatprep.subr.mxu0 0.0
    %242 = vmatpush1.msra.mxu0 %v85
    %243 = vmatprep.subr.mxu0 0.0
    %244 = vmatpush1.msra.mxu0 %v86
    %245 = vmatprep.subr.mxu0 0.0
    %246 = vmatpush1.msra.mxu0 %v87
    %247 = vmatprep.subr.mxu0 0.0
    %248 = vmatpush1.msra.mxu0 %v88
    %249 = vmatprep.subr.mxu0 0.0
    %250 = vmatpush1.msra.mxu0 %v89
    %251 = vmatprep.subr.mxu0 0.0
    %252 = vmatpush1.msra.mxu0 %v90
    %253 = vmatprep.subr.mxu0 0.0
    %254 = vmatpush1.msra.mxu0 %v91
    %255 = vmatprep.subr.mxu0 0.0
    %256 = vmatpush1.msra.mxu0 %v92
    %257 = vmatprep.subr.mxu0 0.0
    %258 = vmatpush1.msra.mxu0 %v93
    %259 = vmatprep.subr.mxu0 0.0
    %260 = vmatpush1.msra.mxu0 %v94
    %261 = vmatprep.subr.mxu0 0.0
    %262 = vmatpush1.msra.mxu0 %v95
    %263 = vmatprep.subr.mxu0 0.0
    %264 = vmatpush1.msra.mxu0 %v96
    %265 = vmatprep.mubr.f32.mxu0 %v185
    %266 = vmatmul.mubr.f32.gmra.mrb[0].mxu0 %v177
    %v267 = vpop.f32.mrb[0].mxu0
    %v268 = vadd.f32 %v166, %v267
    %v269 = vpop.f32.mrb[0].mxu0
    %270 = vdwg.mxu0
    %271 = vmatprep.subr.mxu0 0.0
    %272 = vmatpush1.msra.mxu0 %v97
    %273 = vmatprep.subr.mxu0 0.0
    %274 = vmatpush1.msra.mxu0 %v98
    %275 = vmatprep.subr.mxu0 0.0
    %276 = vmatpush1.msra.mxu0 %v99
    %277 = vmatprep.subr.mxu0 0.0
    %278 = vmatpush1.msra.mxu0 %v100
    %279 = vmatprep.subr.mxu0 0.0
    %280 = vmatpush1.msra.mxu0 %v101
    %281 = vmatprep.subr.mxu0 0.0
    %282 = vmatpush1.msra.mxu0 %v102
    %283 = vmatprep.subr.mxu0 0.0
    %284 = vmatpush1.msra.mxu0 %v103
    %285 = vmatprep.subr.mxu0 0.0
    %286 = vmatpush1.msra.mxu0 %v104
    %287 = vmatprep.subr.mxu0 0.0
    %288 = vmatpush1.msra.mxu0 %v105
    %289 = vmatprep.subr.mxu0 0.0
    %290 = vmatpush1.msra.mxu0 %v106
    %291 = vmatprep.subr.mxu0 0.0
    %292 = vmatpush1.msra.mxu0 %v107
    %293 = vmatprep.subr.mxu0 0.0
    %294 = vmatpush1.msra.mxu0 %v108
    %295 = vmatprep.subr.mxu0 0.0
    %296 = vmatpush1.msra.mxu0 %v109
    %297 = vmatprep.subr.mxu0 0.0
    %298 = vmatpush1.msra.mxu0 %v110
    %299 = vmatprep.subr.mxu0 0.0
    %300 = vmatpush1.msra.mxu0 %v111
    %301 = vmatprep.subr.mxu0 0.0
    %302 = vmatpush1.msra.mxu0 %v112
    %303 = vmatprep.subr.mxu0 0.0
    %304 = vmatpush1.msra.mxu0 %v113
    %305 = vmatprep.subr.mxu0 0.0
    %306 = vmatpush1.msra.mxu0 %v114
    %307 = vmatprep.subr.mxu0 0.0
    %308 = vmatpush1.msra.mxu0 %v115
    %309 = vmatprep.subr.mxu0 0.0
    %310 = vmatpush1.msra.mxu0 %v116
    %311 = vmatprep.subr.mxu0 0.0
    %312 = vmatpush1.msra.mxu0 %v117
    %313 = vmatprep.subr.mxu0 0.0
    %314 = vmatpush1.msra.mxu0 %v118
    %315 = vmatprep.subr.mxu0 0.0
    %316 = vmatpush1.msra.mxu0 %v119
    %317 = vmatprep.subr.mxu0 0.0
    %318 = vmatpush1.msra.mxu0 %v120
    %319 = vmatprep.subr.mxu0 0.0
    %320 = vmatpush1.msra.mxu0 %v121
    %321 = vmatprep.subr.mxu0 0.0
    %322 = vmatpush1.msra.mxu0 %v122
    %323 = vmatprep.subr.mxu0 0.0
    %324 = vmatpush1.msra.mxu0 %v123
    %325 = vmatprep.subr.mxu0 0.0
    %326 = vmatpush1.msra.mxu0 %v124
    %327 = vmatprep.subr.mxu0 0.0
    %328 = vmatpush1.msra.mxu0 %v125
    %329 = vmatprep.subr.mxu0 0.0
    %330 = vmatpush1.msra.mxu0 %v126
    %331 = vmatprep.subr.mxu0 0.0
    %332 = vmatpush1.msra.mxu0 %v127
    %333 = vmatprep.subr.mxu0 0.0
    %334 = vmatpush1.msra.mxu0 %v128
    %335 = vmatprep.mubr.f32.mxu0 %v186
    %336 = vmatmul.mubr.f32.gmra.mrb[0].mxu0 %v184
    %v337 = vpop.f32.mrb[0].mxu0
    %v338 = vadd.f32 %v268, %v337
    %v339 = vpop.f32.mrb[0].mxu0
    %340 = vdwg.mxu0
    %341 = vmatprep.subr.mxu0 0.0
    %342 = vmatpush1.msra.mxu0 %v129
    %343 = vmatprep.subr.mxu0 0.0
    %344 = vmatpush1.msra.mxu0 %v130
    %345 = vmatprep.subr.mxu0 0.0
    %346 = vmatpush1.msra.mxu0 %v131
    %347 = vmatprep.subr.mxu0 0.0
    %348 = vmatpush1.msra.mxu0 %v132
    %349 = vmatprep.subr.mxu0 0.0
    %350 = vmatpush1.msra.mxu0 %v133
    %351 = vmatprep.subr.mxu0 0.0
    %352 = vmatpush1.msra.mxu0 %v134
    %353 = vmatprep.subr.mxu0 0.0
    %354 = vmatpush1.msra.mxu0 %v135
    %355 = vmatprep.subr.mxu0 0.0
    %356 = vmatpush1.msra.mxu0 %v136
    %357 = vmatprep.subr.mxu0 0.0
    %358 = vmatpush1.msra.mxu0 %v137
    %359 = vmatprep.subr.mxu0 0.0
    %360 = vmatpush1.msra.mxu0 %v138
    %361 = vmatprep.subr.mxu0 0.0
    %362 = vmatpush1.msra.mxu0 %v139
    %363 = vmatprep.subr.mxu0 0.0
    %364 = vmatpush1.msra.mxu0 %v140
    %365 = vmatprep.subr.mxu0 0.0
    %366 = vmatpush1.msra.mxu0 %v141
    %367 = vmatprep.subr.mxu0 0.0
    %368 = vmatpush1.msra.mxu0 %v142
    %369 = vmatprep.subr.mxu0 0.0
    %370 = vmatpush1.msra.mxu0 %v143
    %371 = vmatprep.subr.mxu0 0.0
    %372 = vmatpush1.msra.mxu0 %v144
    %373 = vmatprep.subr.mxu0 0.0
    %374 = vmatpush1.msra.mxu0 %v145
    %375 = vmatprep.subr.mxu0 0.0
    %376 = vmatpush1.msra.mxu0 %v146
    %377 = vmatprep.subr.mxu0 0.0
    %378 = vmatpush1.msra.mxu0 %v147
    %379 = vmatprep.subr.mxu0 0.0
    %380 = vmatpush1.msra.mxu0 %v148
    %381 = vmatprep.subr.mxu0 0.0
    %382 = vmatpush1.msra.mxu0 %v149
    %383 = vmatprep.subr.mxu0 0.0
    %384 = vmatpush1.msra.mxu0 %v150
    %385 = vmatprep.subr.mxu0 0.0
    %386 = vmatpush1.msra.mxu0 %v151
    %387 = vmatprep.subr.mxu0 0.0
    %388 = vmatpush1.msra.mxu0 %v152
    %389 = vmatprep.subr.mxu0 0.0
    %390 = vmatpush1.msra.mxu0 %v153
    %391 = vmatprep.subr.mxu0 0.0
    %392 = vmatpush1.msra.mxu0 %v154
    %393 = vmatprep.subr.mxu0 0.0
    %394 = vmatpush1.msra.mxu0 %v155
    %395 = vmatprep.subr.mxu0 0.0
    %396 = vmatpush1.msra.mxu0 %v156
    %397 = vmatprep.subr.mxu0 0.0
    %398 = vmatpush1.msra.mxu0 %v157
    %399 = vmatprep.subr.mxu0 0.0
    %400 = vmatpush1.msra.mxu0 %v158
    %401 = vmatprep.subr.mxu0 0.0
    %402 = vmatpush1.msra.mxu0 %v159
    %403 = vmatprep.subr.mxu0 0.0
    %404 = vmatpush1.msra.mxu0 %v160
    %405 = vmatprep.mubr.f32.mxu0 %v194
    %406 = vmatmul.mubr.f32.gmra.mrb[0].mxu0 %v193
    %v407 = vpop.f32.mrb[0].mxu0
    %v408 = vadd.f32 %v338, %v407
    %v409 = vpop.f32.mrb[0].mxu0
    %410 = vdwg.mxu0
    %v411 = vld [vmem:[%s4] sm:$0xff]
    %v412 = vld [vmem:[%s4 + $0x8] sm:$0xff]
    %v413 = vld [vmem:[%s4 + $0x10] sm:$0xff]
    %v414 = vld [vmem:[%s4 + $0x18] sm:$0xff]
    %v415 = vld [vmem:[%s4 + $0x20] sm:$0xff]
    %v416 = vld [vmem:[%s4 + $0x28] sm:$0xff]
    %v417 = vld [vmem:[%s4 + $0x30] sm:$0xff]
    %v418 = vld [vmem:[%s4 + $0x38] sm:$0xff]
    %v419 = vld [vmem:[%s5] sm:$0x1]
    %v421 = vlaneseq
    %v422 = vshrl.u32 %v421, 7
    %v423 = vsub.s32 0, %v422
    %v424 = vrot.slane %v419, %v423
    %vm426 = vcmask 523264
    %v428 = vsel %vm426, %v408, 0
    %430 = vmatprep.subr.mxu0 0.0
    %431 = vmatpush1.msra.mxu0 %v411
    %432 = vmatprep.subr.mxu0 0.0
    %433 = vmatpush1.msra.mxu0 %v412
    %434 = vmatprep.subr.mxu0 0.0
    %435 = vmatpush1.msra.mxu0 %v413
    %436 = vmatprep.subr.mxu0 0.0
    %437 = vmatpush1.msra.mxu0 %v414
    %438 = vmatprep.subr.mxu0 0.0
    %439 = vmatpush1.msra.mxu0 %v415
    %440 = vmatprep.subr.mxu0 0.0
    %441 = vmatpush1.msra.mxu0 %v416
    %442 = vmatprep.subr.mxu0 0.0
    %443 = vmatpush1.msra.mxu0 %v417
    %444 = vmatprep.subr.mxu0 0.0
    %445 = vmatpush1.msra.mxu0 %v418
    %446 = vmatprep.subr.mxu0 0.0
    %447 = vmatpush1.msra.mxu0 0.0
    %448 = vmatprep.subr.mxu0 0.0
    %449 = vmatpush1.msra.mxu0 0.0
    %450 = vmatprep.subr.mxu0 0.0
    %451 = vmatpush1.msra.mxu0 0.0
    %452 = vmatprep.subr.mxu0 0.0
    %453 = vmatpush1.msra.mxu0 0.0
    %454 = vmatprep.subr.mxu0 0.0
    %455 = vmatpush1.msra.mxu0 0.0
    %456 = vmatprep.subr.mxu0 0.0
    %457 = vmatpush1.msra.mxu0 0.0
    %458 = vmatprep.subr.mxu0 0.0
    %459 = vmatpush1.msra.mxu0 0.0
    %460 = vmatprep.subr.mxu0 0.0
    %461 = vmatpush1.msra.mxu0 0.0
    %462 = vmatprep.subr.mxu0 0.0
    %463 = vmatpush1.msra.mxu0 0.0
    %464 = vmatprep.subr.mxu0 0.0
    %465 = vmatpush1.msra.mxu0 0.0
    %466 = vmatprep.subr.mxu0 0.0
    %467 = vmatpush1.msra.mxu0 0.0
    %468 = vmatprep.subr.mxu0 0.0
    %469 = vmatpush1.msra.mxu0 0.0
    %470 = vmatprep.subr.mxu0 0.0
    %471 = vmatpush1.msra.mxu0 0.0
    %472 = vmatprep.subr.mxu0 0.0
    %473 = vmatpush1.msra.mxu0 0.0
    %474 = vmatprep.subr.mxu0 0.0
    %475 = vmatpush1.msra.mxu0 0.0
    %476 = vmatprep.subr.mxu0 0.0
    %477 = vmatpush1.msra.mxu0 0.0
    %478 = vmatprep.subr.mxu0 0.0
    %479 = vmatpush1.msra.mxu0 0.0
    %480 = vmatprep.subr.mxu0 0.0
    %481 = vmatpush1.msra.mxu0 0.0
    %482 = vmatprep.subr.mxu0 0.0
    %483 = vmatpush1.msra.mxu0 0.0
    %484 = vmatprep.subr.mxu0 0.0
    %485 = vmatpush1.msra.mxu0 0.0
    %486 = vmatprep.subr.mxu0 0.0
    %487 = vmatpush1.msra.mxu0 0.0
    %488 = vmatprep.subr.mxu0 0.0
    %489 = vmatpush1.msra.mxu0 0.0
    %490 = vmatprep.subr.mxu0 0.0
    %491 = vmatpush1.msra.mxu0 0.0
    %492 = vmatprep.subr.mxu0 0.0
    %493 = vmatpush1.msra.mxu0 0.0
    %494 = vmatprep.mubr.f32.mxu0 0.0
    %495 = vmatmul.mubr.f32.gmra.mrb[0].mxu0 %v428
    %v496 = vpop.f32.mrb[0].mxu0
    %v497 = vadd.f32 %v424, %v496
    %v498 = vpop.f32.mrb[0].mxu0
    %499 = vdwg.mxu0
    %v500 = vmul.f32 %v497, %v497
    %vm501 = vcmask 254976
    %v502 = vsel %vm501, %v500, 0.0
    %503 = vadd.xlane.f32.xlu0 %v502
    %v504 = vpop.xlane.xlu0 %503
    %v505 = vrsqrt.pop %v504
    %v506 = vmul.f32 %v497, %v505
    %v507 = vlaneseq
    %v508 = vand.u32 %v507, 127
    %v509 = vld [vmem:[%s0] sm:$0xff]
    %v510 = vld [vmem:[%s0 + $0x8] sm:$0xff]
    %511 = vset.pattern.permute.xlu0 0
    %512 = vperm.xlu0 %511, %v509
    %v513 = vpop.permute.xlu0 %512
    %514 = vset.pattern.permute.xlu0 0
    %515 = vperm.xlu0 %514, %v510
    %v516 = vpop.permute.xlu0 %515
    %vm517 = vcmp.eq.s32.totalorder %v508, %v513
    %vm518 = vcmp.eq.s32.totalorder %v508, %v516
    %v519 = vsel %vm517, 1, 0
    %v520 = vsel %vm518, 1, 0
    %v521 = vcvt.s32.f32 %v519
    %v522 = vcvt.s32.f32 %v520
    %v523 = vld [vmem:[%s6] sm:$0xff]
    %v524 = vld [vmem:[%s6 + $0x8] sm:$0xff]
    %v525 = vld [vmem:[%s6 + $0x10] sm:$0xff]
    %v526 = vld [vmem:[%s6 + $0x18] sm:$0xff]
    %v527 = vld [vmem:[%s6 + $0x20] sm:$0xff]
    %v528 = vld [vmem:[%s6 + $0x28] sm:$0xff]
    %v529 = vld [vmem:[%s6 + $0x30] sm:$0xff]
    %v530 = vld [vmem:[%s6 + $0x38] sm:$0xff]
    %v532 = vsel %vm426, %v521, 0
    %v535 = vsel %vm426, %v522, 0
    %537 = vmatprep.subr.mxu0 0.0
    %538 = vmatpush1.msra.mxu0 %v523
    %539 = vmatprep.subr.mxu0 0.0
    %540 = vmatpush1.msra.mxu0 %v524
    %541 = vmatprep.subr.mxu0 0.0
    %542 = vmatpush1.msra.mxu0 %v525
    %543 = vmatprep.subr.mxu0 0.0
    %544 = vmatpush1.msra.mxu0 %v526
    %545 = vmatprep.subr.mxu0 0.0
    %546 = vmatpush1.msra.mxu0 %v527
    %547 = vmatprep.subr.mxu0 0.0
    %548 = vmatpush1.msra.mxu0 %v528
    %549 = vmatprep.subr.mxu0 0.0
    %550 = vmatpush1.msra.mxu0 %v529
    %551 = vmatprep.subr.mxu0 0.0
    %552 = vmatpush1.msra.mxu0 %v530
    %553 = vmatprep.subr.mxu0 0.0
    %554 = vmatpush1.msra.mxu0 0.0
    %555 = vmatprep.subr.mxu0 0.0
    %556 = vmatpush1.msra.mxu0 0.0
    %557 = vmatprep.subr.mxu0 0.0
    %558 = vmatpush1.msra.mxu0 0.0
    %559 = vmatprep.subr.mxu0 0.0
    %560 = vmatpush1.msra.mxu0 0.0
    %561 = vmatprep.subr.mxu0 0.0
    %562 = vmatpush1.msra.mxu0 0.0
    %563 = vmatprep.subr.mxu0 0.0
    %564 = vmatpush1.msra.mxu0 0.0
    %565 = vmatprep.subr.mxu0 0.0
    %566 = vmatpush1.msra.mxu0 0.0
    %567 = vmatprep.subr.mxu0 0.0
    %568 = vmatpush1.msra.mxu0 0.0
    %569 = vmatprep.subr.mxu0 0.0
    %570 = vmatpush1.msra.mxu0 0.0
    %571 = vmatprep.subr.mxu0 0.0
    %572 = vmatpush1.msra.mxu0 0.0
    %573 = vmatprep.subr.mxu0 0.0
    %574 = vmatpush1.msra.mxu0 0.0
    %575 = vmatprep.subr.mxu0 0.0
    %576 = vmatpush1.msra.mxu0 0.0
    %577 = vmatprep.subr.mxu0 0.0
    %578 = vmatpush1.msra.mxu0 0.0
    %579 = vmatprep.subr.mxu0 0.0
    %580 = vmatpush1.msra.mxu0 0.0
    %581 = vmatprep.subr.mxu0 0.0
    %582 = vmatpush1.msra.mxu0 0.0
    %583 = vmatprep.subr.mxu0 0.0
    %584 = vmatpush1.msra.mxu0 0.0
    %585 = vmatprep.subr.mxu0 0.0
    %586 = vmatpush1.msra.mxu0 0.0
    %587 = vmatprep.subr.mxu0 0.0
    %588 = vmatpush1.msra.mxu0 0.0
    %589 = vmatprep.subr.mxu0 0.0
    %590 = vmatpush1.msra.mxu0 0.0
    %591 = vmatprep.subr.mxu0 0.0
    %592 = vmatpush1.msra.mxu0 0.0
    %593 = vmatprep.subr.mxu0 0.0
    %594 = vmatpush1.msra.mxu0 0.0
    %595 = vmatprep.subr.mxu0 0.0
    %596 = vmatpush1.msra.mxu0 0.0
    %597 = vmatprep.subr.mxu0 0.0
    %598 = vmatpush1.msra.mxu0 0.0
    %599 = vmatprep.subr.mxu0 0.0
    %600 = vmatpush1.msra.mxu0 0.0
    %601 = vmatprep.mubr.f32.mxu0 0.0
    %602 = vmatmul.mubr.f32.gmra.mrb[0].mxu0 %v532
    %v603 = vpop.f32.mrb[0].mxu0
    %v604 = vadd.f32 0.0, %v603
    %v605 = vpop.f32.mrb[0].mxu0
    %606 = vmatprep.mubr.f32.mxu0 0.0
    %607 = vmatmul.mubr.f32.gmra.mrb[0].mxu0 %v535
    %v608 = vpop.f32.mrb[0].mxu0
    %v609 = vadd.f32 0.0, %v608
    %v610 = vpop.f32.mrb[0].mxu0
    %611 = vdwg.mxu0
    %v612 = vtanh.pop %v604
    %v613 = vtanh.pop %v609
    %v614 = vld [vmem:[%s7] sm:$0xff]
    %v615 = vld [vmem:[%s7 + $0x8] sm:$0xff]
    %v616 = vld [vmem:[%s7 + $0x10] sm:$0xff]
    %v617 = vld [vmem:[%s7 + $0x18] sm:$0xff]
    %v618 = vld [vmem:[%s8] sm:$0xff]
    %v619 = vld [vmem:[%s8 + $0x8] sm:$0xff]
    %v620 = vld [vmem:[%s8 + $0x10] sm:$0xff]
    %v621 = vld [vmem:[%s8 + $0x18] sm:$0xff]
    %v622 = vld [vmem:[%s9] sm:$0x1]
    %v624 = vlaneseq
    %v625 = vshrl.u32 %v624, 7
    %v626 = vsub.s32 0, %v625
    %v627 = vrot.slane %v622, %v626
    %vm629 = vcmask 261120
    %v631 = vsel %vm629, %v612, 0
    %v634 = vsel %vm629, %v613, 0
    %636 = vmatprep.subr.mxu0 0.0
    %637 = vmatpush1.msra.mxu0 %v614
    %638 = vmatprep.subr.mxu0 0.0
    %639 = vmatpush1.msra.mxu0 %v615
    %640 = vmatprep.subr.mxu0 0.0
    %641 = vmatpush1.msra.mxu0 %v616
    %642 = vmatprep.subr.mxu0 0.0
    %643 = vmatpush1.msra.mxu0 %v617
    %644 = vmatprep.subr.mxu0 0.0
    %645 = vmatpush1.msra.mxu0 0.0
    %646 = vmatprep.subr.mxu0 0.0
    %647 = vmatpush1.msra.mxu0 0.0
    %648 = vmatprep.subr.mxu0 0.0
    %649 = vmatpush1.msra.mxu0 0.0
    %650 = vmatprep.subr.mxu0 0.0
    %651 = vmatpush1.msra.mxu0 0.0
    %652 = vmatprep.subr.mxu0 0.0
    %653 = vmatpush1.msra.mxu0 0.0
    %654 = vmatprep.subr.mxu0 0.0
    %655 = vmatpush1.msra.mxu0 0.0
    %656 = vmatprep.subr.mxu0 0.0
    %657 = vmatpush1.msra.mxu0 0.0
    %658 = vmatprep.subr.mxu0 0.0
    %659 = vmatpush1.msra.mxu0 0.0
    %660 = vmatprep.subr.mxu0 0.0
    %661 = vmatpush1.msra.mxu0 0.0
    %662 = vmatprep.subr.mxu0 0.0
    %663 = vmatpush1.msra.mxu0 0.0
    %664 = vmatprep.subr.mxu0 0.0
    %665 = vmatpush1.msra.mxu0 0.0
    %666 = vmatprep.subr.mxu0 0.0
    %667 = vmatpush1.msra.mxu0 0.0
    %668 = vmatprep.subr.mxu0 0.0
    %669 = vmatpush1.msra.mxu0 0.0
    %670 = vmatprep.subr.mxu0 0.0
    %671 = vmatpush1.msra.mxu0 0.0
    %672 = vmatprep.subr.mxu0 0.0
    %673 = vmatpush1.msra.mxu0 0.0
    %674 = vmatprep.subr.mxu0 0.0
    %675 = vmatpush1.msra.mxu0 0.0
    %676 = vmatprep.subr.mxu0 0.0
    %677 = vmatpush1.msra.mxu0 0.0
    %678 = vmatprep.subr.mxu0 0.0
    %679 = vmatpush1.msra.mxu0 0.0
    %680 = vmatprep.subr.mxu0 0.0
    %681 = vmatpush1.msra.mxu0 0.0
    %682 = vmatprep.subr.mxu0 0.0
    %683 = vmatpush1.msra.mxu0 0.0
    %684 = vmatprep.subr.mxu0 0.0
    %685 = vmatpush1.msra.mxu0 0.0
    %686 = vmatprep.subr.mxu0 0.0
    %687 = vmatpush1.msra.mxu0 0.0
    %688 = vmatprep.subr.mxu0 0.0
    %689 = vmatpush1.msra.mxu0 0.0
    %690 = vmatprep.subr.mxu0 0.0
    %691 = vmatpush1.msra.mxu0 0.0
    %692 = vmatprep.subr.mxu0 0.0
    %693 = vmatpush1.msra.mxu0 0.0
    %694 = vmatprep.subr.mxu0 0.0
    %695 = vmatpush1.msra.mxu0 0.0
    %696 = vmatprep.subr.mxu0 0.0
    %697 = vmatpush1.msra.mxu0 0.0
    %698 = vmatprep.subr.mxu0 0.0
    %699 = vmatpush1.msra.mxu0 0.0
    %700 = vmatprep.mubr.f32.mxu0 0.0
    %701 = vmatmul.mubr.f32.gmra.mrb[0].mxu0 %v631
    %v702 = vpop.f32.mrb[0].mxu0
    %v703 = vadd.f32 %v627, %v702
    %v704 = vpop.f32.mrb[0].mxu0
    %705 = vmatprep.mubr.f32.mxu0 0.0
    %706 = vmatmul.mubr.f32.gmra.mrb[0].mxu0 %v634
    %v707 = vpop.f32.mrb[0].mxu0
    %v708 = vadd.f32 %v627, %v707
    %v709 = vpop.f32.mrb[0].mxu0
    %710 = vdwg.mxu0
    %v712 = vsel %vm629, 0.0, 0
    %714 = vmatprep.subr.mxu0 0.0
    %715 = vmatpush1.msra.mxu0 %v618
    %716 = vmatprep.subr.mxu0 0.0
    %717 = vmatpush1.msra.mxu0 %v619
    %718 = vmatprep.subr.mxu0 0.0
    %719 = vmatpush1.msra.mxu0 %v620
    %720 = vmatprep.subr.mxu0 0.0
    %721 = vmatpush1.msra.mxu0 %v621
    %722 = vmatprep.subr.mxu0 0.0
    %723 = vmatpush1.msra.mxu0 0.0
    %724 = vmatprep.subr.mxu0 0.0
    %725 = vmatpush1.msra.mxu0 0.0
    %726 = vmatprep.subr.mxu0 0.0
    %727 = vmatpush1.msra.mxu0 0.0
    %728 = vmatprep.subr.mxu0 0.0
    %729 = vmatpush1.msra.mxu0 0.0
    %730 = vmatprep.subr.mxu0 0.0
    %731 = vmatpush1.msra.mxu0 0.0
    %732 = vmatprep.subr.mxu0 0.0
    %733 = vmatpush1.msra.mxu0 0.0
    %734 = vmatprep.subr.mxu0 0.0
    %735 = vmatpush1.msra.mxu0 0.0
    %736 = vmatprep.subr.mxu0 0.0
    %737 = vmatpush1.msra.mxu0 0.0
    %738 = vmatprep.subr.mxu0 0.0
    %739 = vmatpush1.msra.mxu0 0.0
    %740 = vmatprep.subr.mxu0 0.0
    %741 = vmatpush1.msra.mxu0 0.0
    %742 = vmatprep.subr.mxu0 0.0
    %743 = vmatpush1.msra.mxu0 0.0
    %744 = vmatprep.subr.mxu0 0.0
    %745 = vmatpush1.msra.mxu0 0.0
    %746 = vmatprep.subr.mxu0 0.0
    %747 = vmatpush1.msra.mxu0 0.0
    %748 = vmatprep.subr.mxu0 0.0
    %749 = vmatpush1.msra.mxu0 0.0
    %750 = vmatprep.subr.mxu0 0.0
    %751 = vmatpush1.msra.mxu0 0.0
    %752 = vmatprep.subr.mxu0 0.0
    %753 = vmatpush1.msra.mxu0 0.0
    %754 = vmatprep.subr.mxu0 0.0
    %755 = vmatpush1.msra.mxu0 0.0
    %756 = vmatprep.subr.mxu0 0.0
    %757 = vmatpush1.msra.mxu0 0.0
    %758 = vmatprep.subr.mxu0 0.0
    %759 = vmatpush1.msra.mxu0 0.0
    %760 = vmatprep.subr.mxu0 0.0
    %761 = vmatpush1.msra.mxu0 0.0
    %762 = vmatprep.subr.mxu0 0.0
    %763 = vmatpush1.msra.mxu0 0.0
    %764 = vmatprep.subr.mxu0 0.0
    %765 = vmatpush1.msra.mxu0 0.0
    %766 = vmatprep.subr.mxu0 0.0
    %767 = vmatpush1.msra.mxu0 0.0
    %768 = vmatprep.subr.mxu0 0.0
    %769 = vmatpush1.msra.mxu0 0.0
    %770 = vmatprep.subr.mxu0 0.0
    %771 = vmatpush1.msra.mxu0 0.0
    %772 = vmatprep.subr.mxu0 0.0
    %773 = vmatpush1.msra.mxu0 0.0
    %774 = vmatprep.subr.mxu0 0.0
    %775 = vmatpush1.msra.mxu0 0.0
    %776 = vmatprep.subr.mxu0 0.0
    %777 = vmatpush1.msra.mxu0 0.0
    %778 = vmatprep.mubr.f32.mxu0 0.0
    %779 = vmatmul.mubr.f32.gmra.mrb[0].mxu0 %v712
    %v780 = vpop.f32.mrb[0].mxu0
    %v781 = vadd.f32 0.0, %v780
    %v782 = vpop.f32.mrb[0].mxu0
    %783 = vdwg.mxu0
    %v784 = vadd.f32 %v703, %v781
    %v785 = vxor.u32 %v784, 2147483648
    %v786 = vmul.f32 %v785, 1.442695
    %v787 = vpow.pop %v786
    %v788 = vadd.f32 %v787, 1.0
    %v789 = vrcp.pop %v788
    %v790 = vmul.f32 1.0, %v789
    %v791 = vtanh.pop %v784
    %v792 = vmul.f32 %v790, 0.0
    %794 = vrot.lane.b32.xlu0 %v791, 64
    %v795 = vpop.permute.xlu0 %794
    %v797 = vmul.f32 %v790, %v795
    %799 = vrot.lane.b32.xlu0 %v797, 32
    %v800 = vpop.permute.xlu0 %799
    %v802 = vadd.f32 %v792, %v800
    %v803 = vtanh.pop %v802
    %805 = vrot.lane.b32.xlu0 %v803, 64
    %v806 = vpop.permute.xlu0 %805
    %v808 = vmul.f32 %v790, %v806
    %810 = vrot.lane.b32.xlu0 %v808, 32
    %v811 = vpop.permute.xlu0 %810
    %v812 = vsel %vm629, %v811, 0
    %814 = vmatprep.subr.mxu0 0.0
    %815 = vmatpush1.msra.mxu0 %v618
    %816 = vmatprep.subr.mxu0 0.0
    %817 = vmatpush1.msra.mxu0 %v619
    %818 = vmatprep.subr.mxu0 0.0
    %819 = vmatpush1.msra.mxu0 %v620
    %820 = vmatprep.subr.mxu0 0.0
    %821 = vmatpush1.msra.mxu0 %v621
    %822 = vmatprep.subr.mxu0 0.0
    %823 = vmatpush1.msra.mxu0 0.0
    %824 = vmatprep.subr.mxu0 0.0
    %825 = vmatpush1.msra.mxu0 0.0
    %826 = vmatprep.subr.mxu0 0.0
    %827 = vmatpush1.msra.mxu0 0.0
    %828 = vmatprep.subr.mxu0 0.0
    %829 = vmatpush1.msra.mxu0 0.0
    %830 = vmatprep.subr.mxu0 0.0
    %831 = vmatpush1.msra.mxu0 0.0
    %832 = vmatprep.subr.mxu0 0.0
    %833 = vmatpush1.msra.mxu0 0.0
    %834 = vmatprep.subr.mxu0 0.0
    %835 = vmatpush1.msra.mxu0 0.0
    %836 = vmatprep.subr.mxu0 0.0
    %837 = vmatpush1.msra.mxu0 0.0
    %838 = vmatprep.subr.mxu0 0.0
    %839 = vmatpush1.msra.mxu0 0.0
    %840 = vmatprep.subr.mxu0 0.0
    %841 = vmatpush1.msra.mxu0 0.0
    %842 = vmatprep.subr.mxu0 0.0
    %843 = vmatpush1.msra.mxu0 0.0
    %844 = vmatprep.subr.mxu0 0.0
    %845 = vmatpush1.msra.mxu0 0.0
    %846 = vmatprep.subr.mxu0 0.0
    %847 = vmatpush1.msra.mxu0 0.0
    %848 = vmatprep.subr.mxu0 0.0
    %849 = vmatpush1.msra.mxu0 0.0
    %850 = vmatprep.subr.mxu0 0.0
    %851 = vmatpush1.msra.mxu0 0.0
    %852 = vmatprep.subr.mxu0 0.0
    %853 = vmatpush1.msra.mxu0 0.0
    %854 = vmatprep.subr.mxu0 0.0
    %855 = vmatpush1.msra.mxu0 0.0
    %856 = vmatprep.subr.mxu0 0.0
    %857 = vmatpush1.msra.mxu0 0.0
    %858 = vmatprep.subr.mxu0 0.0
    %859 = vmatpush1.msra.mxu0 0.0
    %860 = vmatprep.subr.mxu0 0.0
    %861 = vmatpush1.msra.mxu0 0.0
    %862 = vmatprep.subr.mxu0 0.0
    %863 = vmatpush1.msra.mxu0 0.0
    %864 = vmatprep.subr.mxu0 0.0
    %865 = vmatpush1.msra.mxu0 0.0
    %866 = vmatprep.subr.mxu0 0.0
    %867 = vmatpush1.msra.mxu0 0.0
    %868 = vmatprep.subr.mxu0 0.0
    %869 = vmatpush1.msra.mxu0 0.0
    %870 = vmatprep.subr.mxu0 0.0
    %871 = vmatpush1.msra.mxu0 0.0
    %872 = vmatprep.subr.mxu0 0.0
    %873 = vmatpush1.msra.mxu0 0.0
    %874 = vmatprep.subr.mxu0 0.0
    %875 = vmatpush1.msra.mxu0 0.0
    %876 = vmatprep.subr.mxu0 0.0
    %877 = vmatpush1.msra.mxu0 0.0
    %878 = vmatprep.mubr.f32.mxu0 0.0
    %879 = vmatmul.mubr.f32.gmra.mrb[0].mxu0 %v812
    %v880 = vpop.f32.mrb[0].mxu0
    %v881 = vadd.f32 0.0, %v880
    %v882 = vpop.f32.mrb[0].mxu0
    %883 = vdwg.mxu0
    %v885 = vrot.slane %v881, 6
    %v887 = vadd.f32 %v703, %v885
    %v888 = vxor.u32 %v887, 2147483648
    %v889 = vmul.f32 %v888, 1.442695
    %v890 = vpow.pop %v889
    %v891 = vadd.f32 %v890, 1.0
    %v892 = vrcp.pop %v891
    %v893 = vmul.f32 1.0, %v892
    %v894 = vtanh.pop %v887
    %v896 = vrot.slane %v802, 6
    %v898 = vmul.f32 %v893, %v896
    %900 = vrot.lane.b32.xlu0 %v894, 64
    %v901 = vpop.permute.xlu0 %900
    %v903 = vmul.f32 %v893, %v901
    %905 = vrot.lane.b32.xlu0 %v903, 32
    %v906 = vpop.permute.xlu0 %905
    %v908 = vadd.f32 %v898, %v906
    %v909 = vtanh.pop %v908
    %911 = vrot.lane.b32.xlu0 %v909, 64
    %v912 = vpop.permute.xlu0 %911
    %v914 = vmul.f32 %v893, %v912
    %v916 = vrot.slane %v914, 2
    %917 = vrot.lane.b32.xlu0 %v916, 32
    %v918 = vpop.permute.xlu0 %917
    %v919 = vsel %vm629, %v918, 0
    %921 = vmatprep.subr.mxu0 0.0
    %922 = vmatpush1.msra.mxu0 %v618
    %923 = vmatprep.subr.mxu0 0.0
    %924 = vmatpush1.msra.mxu0 %v619
    %925 = vmatprep.subr.mxu0 0.0
    %926 = vmatpush1.msra.mxu0 %v620
    %927 = vmatprep.subr.mxu0 0.0
    %928 = vmatpush1.msra.mxu0 %v621
    %929 = vmatprep.subr.mxu0 0.0
    %930 = vmatpush1.msra.mxu0 0.0
    %931 = vmatprep.subr.mxu0 0.0
    %932 = vmatpush1.msra.mxu0 0.0
    %933 = vmatprep.subr.mxu0 0.0
    %934 = vmatpush1.msra.mxu0 0.0
    %935 = vmatprep.subr.mxu0 0.0
    %936 = vmatpush1.msra.mxu0 0.0
    %937 = vmatprep.subr.mxu0 0.0
    %938 = vmatpush1.msra.mxu0 0.0
    %939 = vmatprep.subr.mxu0 0.0
    %940 = vmatpush1.msra.mxu0 0.0
    %941 = vmatprep.subr.mxu0 0.0
    %942 = vmatpush1.msra.mxu0 0.0
    %943 = vmatprep.subr.mxu0 0.0
    %944 = vmatpush1.msra.mxu0 0.0
    %945 = vmatprep.subr.mxu0 0.0
    %946 = vmatpush1.msra.mxu0 0.0
    %947 = vmatprep.subr.mxu0 0.0
    %948 = vmatpush1.msra.mxu0 0.0
    %949 = vmatprep.subr.mxu0 0.0
    %950 = vmatpush1.msra.mxu0 0.0
    %951 = vmatprep.subr.mxu0 0.0
    %952 = vmatpush1.msra.mxu0 0.0
    %953 = vmatprep.subr.mxu0 0.0
    %954 = vmatpush1.msra.mxu0 0.0
    %955 = vmatprep.subr.mxu0 0.0
    %956 = vmatpush1.msra.mxu0 0.0
    %957 = vmatprep.subr.mxu0 0.0
    %958 = vmatpush1.msra.mxu0 0.0
    %959 = vmatprep.subr.mxu0 0.0
    %960 = vmatpush1.msra.mxu0 0.0
    %961 = vmatprep.subr.mxu0 0.0
    %962 = vmatpush1.msra.mxu0 0.0
    %963 = vmatprep.subr.mxu0 0.0
    %964 = vmatpush1.msra.mxu0 0.0
    %965 = vmatprep.subr.mxu0 0.0
    %966 = vmatpush1.msra.mxu0 0.0
    %967 = vmatprep.subr.mxu0 0.0
    %968 = vmatpush1.msra.mxu0 0.0
    %969 = vmatprep.subr.mxu0 0.0
    %970 = vmatpush1.msra.mxu0 0.0
    %971 = vmatprep.subr.mxu0 0.0
    %972 = vmatpush1.msra.mxu0 0.0
    %973 = vmatprep.subr.mxu0 0.0
    %974 = vmatpush1.msra.mxu0 0.0
    %975 = vmatprep.subr.mxu0 0.0
    %976 = vmatpush1.msra.mxu0 0.0
    %977 = vmatprep.subr.mxu0 0.0
    %978 = vmatpush1.msra.mxu0 0.0
    %979 = vmatprep.subr.mxu0 0.0
    %980 = vmatpush1.msra.mxu0 0.0
    %981 = vmatprep.subr.mxu0 0.0
    %982 = vmatpush1.msra.mxu0 0.0
    %983 = vmatprep.subr.mxu0 0.0
    %984 = vmatpush1.msra.mxu0 0.0
    %985 = vmatprep.mubr.f32.mxu0 0.0
    %986 = vmatmul.mubr.f32.gmra.mrb[0].mxu0 %v919
    %v987 = vpop.f32.mrb[0].mxu0
    %v988 = vadd.f32 0.0, %v987
    %v989 = vpop.f32.mrb[0].mxu0
    %990 = vdwg.mxu0
    %v992 = vrot.slane %v988, 4
    %v994 = vadd.f32 %v703, %v992
    %v995 = vxor.u32 %v994, 2147483648
    %v996 = vmul.f32 %v995, 1.442695
    %v997 = vpow.pop %v996
    %v998 = vadd.f32 %v997, 1.0
    %v999 = vrcp.pop %v998
    %v1000 = vmul.f32 1.0, %v999
    %v1001 = vtanh.pop %v994
    %v1003 = vrot.slane %v908, 6
    %v1005 = vmul.f32 %v1000, %v1003
    %1007 = vrot.lane.b32.xlu0 %v1001, 64
    %v1008 = vpop.permute.xlu0 %1007
    %v1010 = vmul.f32 %v1000, %v1008
    %1012 = vrot.lane.b32.xlu0 %v1010, 32
    %v1013 = vpop.permute.xlu0 %1012
    %v1015 = vadd.f32 %v1005, %v1013
    %v1016 = vtanh.pop %v1015
    %1018 = vrot.lane.b32.xlu0 %v1016, 64
    %v1019 = vpop.permute.xlu0 %1018
    %v1021 = vmul.f32 %v1000, %v1019
    %v1023 = vrot.slane %v1021, 4
    %1024 = vrot.lane.b32.xlu0 %v1023, 32
    %v1025 = vpop.permute.xlu0 %1024
    %v1026 = vsel %vm629, %v1025, 0
    %1028 = vmatprep.subr.mxu0 0.0
    %1029 = vmatpush1.msra.mxu0 %v618
    %1030 = vmatprep.subr.mxu0 0.0
    %1031 = vmatpush1.msra.mxu0 %v619
    %1032 = vmatprep.subr.mxu0 0.0
    %1033 = vmatpush1.msra.mxu0 %v620
    %1034 = vmatprep.subr.mxu0 0.0
    %1035 = vmatpush1.msra.mxu0 %v621
    %1036 = vmatprep.subr.mxu0 0.0
    %1037 = vmatpush1.msra.mxu0 0.0
    %1038 = vmatprep.subr.mxu0 0.0
    %1039 = vmatpush1.msra.mxu0 0.0
    %1040 = vmatprep.subr.mxu0 0.0
    %1041 = vmatpush1.msra.mxu0 0.0
    %1042 = vmatprep.subr.mxu0 0.0
    %1043 = vmatpush1.msra.mxu0 0.0
    %1044 = vmatprep.subr.mxu0 0.0
    %1045 = vmatpush1.msra.mxu0 0.0
    %1046 = vmatprep.subr.mxu0 0.0
    %1047 = vmatpush1.msra.mxu0 0.0
    %1048 = vmatprep.subr.mxu0 0.0
    %1049 = vmatpush1.msra.mxu0 0.0
    %1050 = vmatprep.subr.mxu0 0.0
    %1051 = vmatpush1.msra.mxu0 0.0
    %1052 = vmatprep.subr.mxu0 0.0
    %1053 = vmatpush1.msra.mxu0 0.0
    %1054 = vmatprep.subr.mxu0 0.0
    %1055 = vmatpush1.msra.mxu0 0.0
    %1056 = vmatprep.subr.mxu0 0.0
    %1057 = vmatpush1.msra.mxu0 0.0
    %1058 = vmatprep.subr.mxu0 0.0
    %1059 = vmatpush1.msra.mxu0 0.0
    %1060 = vmatprep.subr.mxu0 0.0
    %1061 = vmatpush1.msra.mxu0 0.0
    %1062 = vmatprep.subr.mxu0 0.0
    %1063 = vmatpush1.msra.mxu0 0.0
    %1064 = vmatprep.subr.mxu0 0.0
    %1065 = vmatpush1.msra.mxu0 0.0
    %1066 = vmatprep.subr.mxu0 0.0
    %1067 = vmatpush1.msra.mxu0 0.0
    %1068 = vmatprep.subr.mxu0 0.0
    %1069 = vmatpush1.msra.mxu0 0.0
    %1070 = vmatprep.subr.mxu0 0.0
    %1071 = vmatpush1.msra.mxu0 0.0
    %1072 = vmatprep.subr.mxu0 0.0
    %1073 = vmatpush1.msra.mxu0 0.0
    %1074 = vmatprep.subr.mxu0 0.0
    %1075 = vmatpush1.msra.mxu0 0.0
    %1076 = vmatprep.subr.mxu0 0.0
    %1077 = vmatpush1.msra.mxu0 0.0
    %1078 = vmatprep.subr.mxu0 0.0
    %1079 = vmatpush1.msra.mxu0 0.0
    %1080 = vmatprep.subr.mxu0 0.0
    %1081 = vmatpush1.msra.mxu0 0.0
    %1082 = vmatprep.subr.mxu0 0.0
    %1083 = vmatpush1.msra.mxu0 0.0
    %1084 = vmatprep.subr.mxu0 0.0
    %1085 = vmatpush1.msra.mxu0 0.0
    %1086 = vmatprep.subr.mxu0 0.0
    %1087 = vmatpush1.msra.mxu0 0.0
    %1088 = vmatprep.subr.mxu0 0.0
    %1089 = vmatpush1.msra.mxu0 0.0
    %1090 = vmatprep.subr.mxu0 0.0
    %1091 = vmatpush1.msra.mxu0 0.0
    %1092 = vmatprep.mubr.f32.mxu0 0.0
    %1093 = vmatmul.mubr.f32.gmra.mrb[0].mxu0 %v1026
    %v1094 = vpop.f32.mrb[0].mxu0
    %v1095 = vadd.f32 0.0, %v1094
    %v1096 = vpop.f32.mrb[0].mxu0
    %1097 = vdwg.mxu0
    %v1099 = vrot.slane %v1095, 2
    %v1101 = vadd.f32 %v703, %v1099
    %v1102 = vxor.u32 %v1101, 2147483648
    %v1103 = vmul.f32 %v1102, 1.442695
    %v1104 = vpow.pop %v1103
    %v1105 = vadd.f32 %v1104, 1.0
    %v1106 = vrcp.pop %v1105
    %v1107 = vmul.f32 1.0, %v1106
    %v1108 = vtanh.pop %v1101
    %v1110 = vrot.slane %v1015, 6
    %v1112 = vmul.f32 %v1107, %v1110
    %1114 = vrot.lane.b32.xlu0 %v1108, 64
    %v1115 = vpop.permute.xlu0 %1114
    %v1117 = vmul.f32 %v1107, %v1115
    %1119 = vrot.lane.b32.xlu0 %v1117, 32
    %v1120 = vpop.permute.xlu0 %1119
    %v1122 = vadd.f32 %v1112, %v1120
    %v1123 = vtanh.pop %v1122
    %1125 = vrot.lane.b32.xlu0 %v1123, 64
    %v1126 = vpop.permute.xlu0 %1125
    %v1128 = vmul.f32 %v1107, %v1126
    %v1130 = vrot.slane %v1128, 6
    %1131 = vrot.lane.b32.xlu0 %v1130, 32
    %v1132 = vpop.permute.xlu0 %1131
    %v1133 = vsel %vm629, %v1132, 0
    %1135 = vmatprep.subr.mxu0 0.0
    %1136 = vmatpush1.msra.mxu0 %v618
    %1137 = vmatprep.subr.mxu0 0.0
    %1138 = vmatpush1.msra.mxu0 %v619
    %1139 = vmatprep.subr.mxu0 0.0
    %1140 = vmatpush1.msra.mxu0 %v620
    %1141 = vmatprep.subr.mxu0 0.0
    %1142 = vmatpush1.msra.mxu0 %v621
    %1143 = vmatprep.subr.mxu0 0.0
    %1144 = vmatpush1.msra.mxu0 0.0
    %1145 = vmatprep.subr.mxu0 0.0
    %1146 = vmatpush1.msra.mxu0 0.0
    %1147 = vmatprep.subr.mxu0 0.0
    %1148 = vmatpush1.msra.mxu0 0.0
    %1149 = vmatprep.subr.mxu0 0.0
    %1150 = vmatpush1.msra.mxu0 0.0
    %1151 = vmatprep.subr.mxu0 0.0
    %1152 = vmatpush1.msra.mxu0 0.0
    %1153 = vmatprep.subr.mxu0 0.0
    %1154 = vmatpush1.msra.mxu0 0.0
    %1155 = vmatprep.subr.mxu0 0.0
    %1156 = vmatpush1.msra.mxu0 0.0
    %1157 = vmatprep.subr.mxu0 0.0
    %1158 = vmatpush1.msra.mxu0 0.0
    %1159 = vmatprep.subr.mxu0 0.0
    %1160 = vmatpush1.msra.mxu0 0.0
    %1161 = vmatprep.subr.mxu0 0.0
    %1162 = vmatpush1.msra.mxu0 0.0
    %1163 = vmatprep.subr.mxu0 0.0
    %1164 = vmatpush1.msra.mxu0 0.0
    %1165 = vmatprep.subr.mxu0 0.0
    %1166 = vmatpush1.msra.mxu0 0.0
    %1167 = vmatprep.subr.mxu0 0.0
    %1168 = vmatpush1.msra.mxu0 0.0
    %1169 = vmatprep.subr.mxu0 0.0
    %1170 = vmatpush1.msra.mxu0 0.0
    %1171 = vmatprep.subr.mxu0 0.0
    %1172 = vmatpush1.msra.mxu0 0.0
    %1173 = vmatprep.subr.mxu0 0.0
    %1174 = vmatpush1.msra.mxu0 0.0
    %1175 = vmatprep.subr.mxu0 0.0
    %1176 = vmatpush1.msra.mxu0 0.0
    %1177 = vmatprep.subr.mxu0 0.0
    %1178 = vmatpush1.msra.mxu0 0.0
    %1179 = vmatprep.subr.mxu0 0.0
    %1180 = vmatpush1.msra.mxu0 0.0
    %1181 = vmatprep.subr.mxu0 0.0
    %1182 = vmatpush1.msra.mxu0 0.0
    %1183 = vmatprep.subr.mxu0 0.0
    %1184 = vmatpush1.msra.mxu0 0.0
    %1185 = vmatprep.subr.mxu0 0.0
    %1186 = vmatpush1.msra.mxu0 0.0
    %1187 = vmatprep.subr.mxu0 0.0
    %1188 = vmatpush1.msra.mxu0 0.0
    %1189 = vmatprep.subr.mxu0 0.0
    %1190 = vmatpush1.msra.mxu0 0.0
    %1191 = vmatprep.subr.mxu0 0.0
    %1192 = vmatpush1.msra.mxu0 0.0
    %1193 = vmatprep.subr.mxu0 0.0
    %1194 = vmatpush1.msra.mxu0 0.0
    %1195 = vmatprep.subr.mxu0 0.0
    %1196 = vmatpush1.msra.mxu0 0.0
    %1197 = vmatprep.subr.mxu0 0.0
    %1198 = vmatpush1.msra.mxu0 0.0
    %1199 = vmatprep.mubr.f32.mxu0 0.0
    %1200 = vmatmul.mubr.f32.gmra.mrb[0].mxu0 %v1133
    %v1201 = vpop.f32.mrb[0].mxu0
    %v1202 = vadd.f32 0.0, %v1201
    %v1203 = vpop.f32.mrb[0].mxu0
    %1204 = vdwg.mxu0
    %v1205 = vadd.f32 %v708, %v1202
    %v1206 = vxor.u32 %v1205, 2147483648
    %v1207 = vmul.f32 %v1206, 1.442695
    %v1208 = vpow.pop %v1207
    %v1209 = vadd.f32 %v1208, 1.0
    %v1210 = vrcp.pop %v1209
    %v1211 = vmul.f32 1.0, %v1210
    %v1212 = vtanh.pop %v1205
    %v1214 = vrot.slane %v1122, 6
    %v1216 = vmul.f32 %v1211, %v1214
    %1218 = vrot.lane.b32.xlu0 %v1212, 64
    %v1219 = vpop.permute.xlu0 %1218
    %v1221 = vmul.f32 %v1211, %v1219
    %1223 = vrot.lane.b32.xlu0 %v1221, 32
    %v1224 = vpop.permute.xlu0 %1223
    %v1226 = vadd.f32 %v1216, %v1224
    %v1227 = vtanh.pop %v1226
    %1229 = vrot.lane.b32.xlu0 %v1227, 64
    %v1230 = vpop.permute.xlu0 %1229
    %v1232 = vmul.f32 %v1211, %v1230
    %1234 = vrot.lane.b32.xlu0 %v1232, 32
    %v1235 = vpop.permute.xlu0 %1234
    %v1236 = vsel %vm629, %v1235, 0
    %1238 = vmatprep.subr.mxu0 0.0
    %1239 = vmatpush1.msra.mxu0 %v618
    %1240 = vmatprep.subr.mxu0 0.0
    %1241 = vmatpush1.msra.mxu0 %v619
    %1242 = vmatprep.subr.mxu0 0.0
    %1243 = vmatpush1.msra.mxu0 %v620
    %1244 = vmatprep.subr.mxu0 0.0
    %1245 = vmatpush1.msra.mxu0 %v621
    %1246 = vmatprep.subr.mxu0 0.0
    %1247 = vmatpush1.msra.mxu0 0.0
    %1248 = vmatprep.subr.mxu0 0.0
    %1249 = vmatpush1.msra.mxu0 0.0
    %1250 = vmatprep.subr.mxu0 0.0
    %1251 = vmatpush1.msra.mxu0 0.0
    %1252 = vmatprep.subr.mxu0 0.0
    %1253 = vmatpush1.msra.mxu0 0.0
    %1254 = vmatprep.subr.mxu0 0.0
    %1255 = vmatpush1.msra.mxu0 0.0
    %1256 = vmatprep.subr.mxu0 0.0
    %1257 = vmatpush1.msra.mxu0 0.0
    %1258 = vmatprep.subr.mxu0 0.0
    %1259 = vmatpush1.msra.mxu0 0.0
    %1260 = vmatprep.subr.mxu0 0.0
    %1261 = vmatpush1.msra.mxu0 0.0
    %1262 = vmatprep.subr.mxu0 0.0
    %1263 = vmatpush1.msra.mxu0 0.0
    %1264 = vmatprep.subr.mxu0 0.0
    %1265 = vmatpush1.msra.mxu0 0.0
    %1266 = vmatprep.subr.mxu0 0.0
    %1267 = vmatpush1.msra.mxu0 0.0
    %1268 = vmatprep.subr.mxu0 0.0
    %1269 = vmatpush1.msra.mxu0 0.0
    %1270 = vmatprep.subr.mxu0 0.0
    %1271 = vmatpush1.msra.mxu0 0.0
    %1272 = vmatprep.subr.mxu0 0.0
    %1273 = vmatpush1.msra.mxu0 0.0
    %1274 = vmatprep.subr.mxu0 0.0
    %1275 = vmatpush1.msra.mxu0 0.0
    %1276 = vmatprep.subr.mxu0 0.0
    %1277 = vmatpush1.msra.mxu0 0.0
    %1278 = vmatprep.subr.mxu0 0.0
    %1279 = vmatpush1.msra.mxu0 0.0
    %1280 = vmatprep.subr.mxu0 0.0
    %1281 = vmatpush1.msra.mxu0 0.0
    %1282 = vmatprep.subr.mxu0 0.0
    %1283 = vmatpush1.msra.mxu0 0.0
    %1284 = vmatprep.subr.mxu0 0.0
    %1285 = vmatpush1.msra.mxu0 0.0
    %1286 = vmatprep.subr.mxu0 0.0
    %1287 = vmatpush1.msra.mxu0 0.0
    %1288 = vmatprep.subr.mxu0 0.0
    %1289 = vmatpush1.msra.mxu0 0.0
    %1290 = vmatprep.subr.mxu0 0.0
    %1291 = vmatpush1.msra.mxu0 0.0
    %1292 = vmatprep.subr.mxu0 0.0
    %1293 = vmatpush1.msra.mxu0 0.0
    %1294 = vmatprep.subr.mxu0 0.0
    %1295 = vmatpush1.msra.mxu0 0.0
    %1296 = vmatprep.subr.mxu0 0.0
    %1297 = vmatpush1.msra.mxu0 0.0
    %1298 = vmatprep.subr.mxu0 0.0
    %1299 = vmatpush1.msra.mxu0 0.0
    %1300 = vmatprep.subr.mxu0 0.0
    %1301 = vmatpush1.msra.mxu0 0.0
    %1302 = vmatprep.mubr.f32.mxu0 0.0
    %1303 = vmatmul.mubr.f32.gmra.mrb[0].mxu0 %v1236
    %v1304 = vpop.f32.mrb[0].mxu0
    %v1305 = vadd.f32 0.0, %v1304
    %v1306 = vpop.f32.mrb[0].mxu0
    %1307 = vdwg.mxu0
    %v1309 = vrot.slane %v1305, 6
    %v1311 = vadd.f32 %v708, %v1309
    %v1312 = vxor.u32 %v1311, 2147483648
    %v1313 = vmul.f32 %v1312, 1.442695
    %v1314 = vpow.pop %v1313
    %v1315 = vadd.f32 %v1314, 1.0
    %v1316 = vrcp.pop %v1315
    %v1317 = vmul.f32 1.0, %v1316
    %v1318 = vtanh.pop %v1311
    %v1320 = vrot.slane %v1226, 6
    %v1322 = vmul.f32 %v1317, %v1320
    %1324 = vrot.lane.b32.xlu0 %v1318, 64
    %v1325 = vpop.permute.xlu0 %1324
    %v1327 = vmul.f32 %v1317, %v1325
    %1329 = vrot.lane.b32.xlu0 %v1327, 32
    %v1330 = vpop.permute.xlu0 %1329
    %v1332 = vadd.f32 %v1322, %v1330
    %v1333 = vtanh.pop %v1332
    %1335 = vrot.lane.b32.xlu0 %v1333, 64
    %v1336 = vpop.permute.xlu0 %1335
    %v1338 = vmul.f32 %v1317, %v1336
    %v1340 = vrot.slane %v1338, 2
    %1341 = vrot.lane.b32.xlu0 %v1340, 32
    %v1342 = vpop.permute.xlu0 %1341
    %v1343 = vsel %vm629, %v1342, 0
    %1345 = vmatprep.subr.mxu0 0.0
    %1346 = vmatpush1.msra.mxu0 %v618
    %1347 = vmatprep.subr.mxu0 0.0
    %1348 = vmatpush1.msra.mxu0 %v619
    %1349 = vmatprep.subr.mxu0 0.0
    %1350 = vmatpush1.msra.mxu0 %v620
    %1351 = vmatprep.subr.mxu0 0.0
    %1352 = vmatpush1.msra.mxu0 %v621
    %1353 = vmatprep.subr.mxu0 0.0
    %1354 = vmatpush1.msra.mxu0 0.0
    %1355 = vmatprep.subr.mxu0 0.0
    %1356 = vmatpush1.msra.mxu0 0.0
    %1357 = vmatprep.subr.mxu0 0.0
    %1358 = vmatpush1.msra.mxu0 0.0
    %1359 = vmatprep.subr.mxu0 0.0
    %1360 = vmatpush1.msra.mxu0 0.0
    %1361 = vmatprep.subr.mxu0 0.0
    %1362 = vmatpush1.msra.mxu0 0.0
    %1363 = vmatprep.subr.mxu0 0.0
    %1364 = vmatpush1.msra.mxu0 0.0
    %1365 = vmatprep.subr.mxu0 0.0
    %1366 = vmatpush1.msra.mxu0 0.0
    %1367 = vmatprep.subr.mxu0 0.0
    %1368 = vmatpush1.msra.mxu0 0.0
    %1369 = vmatprep.subr.mxu0 0.0
    %1370 = vmatpush1.msra.mxu0 0.0
    %1371 = vmatprep.subr.mxu0 0.0
    %1372 = vmatpush1.msra.mxu0 0.0
    %1373 = vmatprep.subr.mxu0 0.0
    %1374 = vmatpush1.msra.mxu0 0.0
    %1375 = vmatprep.subr.mxu0 0.0
    %1376 = vmatpush1.msra.mxu0 0.0
    %1377 = vmatprep.subr.mxu0 0.0
    %1378 = vmatpush1.msra.mxu0 0.0
    %1379 = vmatprep.subr.mxu0 0.0
    %1380 = vmatpush1.msra.mxu0 0.0
    %1381 = vmatprep.subr.mxu0 0.0
    %1382 = vmatpush1.msra.mxu0 0.0
    %1383 = vmatprep.subr.mxu0 0.0
    %1384 = vmatpush1.msra.mxu0 0.0
    %1385 = vmatprep.subr.mxu0 0.0
    %1386 = vmatpush1.msra.mxu0 0.0
    %1387 = vmatprep.subr.mxu0 0.0
    %1388 = vmatpush1.msra.mxu0 0.0
    %1389 = vmatprep.subr.mxu0 0.0
    %1390 = vmatpush1.msra.mxu0 0.0
    %1391 = vmatprep.subr.mxu0 0.0
    %1392 = vmatpush1.msra.mxu0 0.0
    %1393 = vmatprep.subr.mxu0 0.0
    %1394 = vmatpush1.msra.mxu0 0.0
    %1395 = vmatprep.subr.mxu0 0.0
    %1396 = vmatpush1.msra.mxu0 0.0
    %1397 = vmatprep.subr.mxu0 0.0
    %1398 = vmatpush1.msra.mxu0 0.0
    %1399 = vmatprep.subr.mxu0 0.0
    %1400 = vmatpush1.msra.mxu0 0.0
    %1401 = vmatprep.subr.mxu0 0.0
    %1402 = vmatpush1.msra.mxu0 0.0
    %1403 = vmatprep.subr.mxu0 0.0
    %1404 = vmatpush1.msra.mxu0 0.0
    %1405 = vmatprep.subr.mxu0 0.0
    %1406 = vmatpush1.msra.mxu0 0.0
    %1407 = vmatprep.subr.mxu0 0.0
    %1408 = vmatpush1.msra.mxu0 0.0
    %1409 = vmatprep.mubr.f32.mxu0 0.0
    %1410 = vmatmul.mubr.f32.gmra.mrb[0].mxu0 %v1343
    %v1411 = vpop.f32.mrb[0].mxu0
    %v1412 = vadd.f32 0.0, %v1411
    %v1413 = vpop.f32.mrb[0].mxu0
    %1414 = vdwg.mxu0
    %v1416 = vrot.slane %v1412, 4
    %v1418 = vadd.f32 %v708, %v1416
    %v1419 = vxor.u32 %v1418, 2147483648
    %v1420 = vmul.f32 %v1419, 1.442695
    %v1421 = vpow.pop %v1420
    %v1422 = vadd.f32 %v1421, 1.0
    %v1423 = vrcp.pop %v1422
    %v1424 = vmul.f32 1.0, %v1423
    %v1425 = vtanh.pop %v1418
    %v1427 = vrot.slane %v1332, 6
    %v1429 = vmul.f32 %v1424, %v1427
    %1431 = vrot.lane.b32.xlu0 %v1425, 64
    %v1432 = vpop.permute.xlu0 %1431
    %v1434 = vmul.f32 %v1424, %v1432
    %1436 = vrot.lane.b32.xlu0 %v1434, 32
    %v1437 = vpop.permute.xlu0 %1436
    %v1439 = vadd.f32 %v1429, %v1437
    %v1440 = vtanh.pop %v1439
    %1442 = vrot.lane.b32.xlu0 %v1440, 64
    %v1443 = vpop.permute.xlu0 %1442
    %v1445 = vmul.f32 %v1424, %v1443
    %v1447 = vrot.slane %v1445, 4
    %1448 = vrot.lane.b32.xlu0 %v1447, 32
    %v1449 = vpop.permute.xlu0 %1448
    %v1450 = vsel %vm629, %v1449, 0
    %1452 = vmatprep.subr.mxu0 0.0
    %1453 = vmatpush1.msra.mxu0 %v618
    %1454 = vmatprep.subr.mxu0 0.0
    %1455 = vmatpush1.msra.mxu0 %v619
    %1456 = vmatprep.subr.mxu0 0.0
    %1457 = vmatpush1.msra.mxu0 %v620
    %1458 = vmatprep.subr.mxu0 0.0
    %1459 = vmatpush1.msra.mxu0 %v621
    %1460 = vmatprep.subr.mxu0 0.0
    %1461 = vmatpush1.msra.mxu0 0.0
    %1462 = vmatprep.subr.mxu0 0.0
    %1463 = vmatpush1.msra.mxu0 0.0
    %1464 = vmatprep.subr.mxu0 0.0
    %1465 = vmatpush1.msra.mxu0 0.0
    %1466 = vmatprep.subr.mxu0 0.0
    %1467 = vmatpush1.msra.mxu0 0.0
    %1468 = vmatprep.subr.mxu0 0.0
    %1469 = vmatpush1.msra.mxu0 0.0
    %1470 = vmatprep.subr.mxu0 0.0
    %1471 = vmatpush1.msra.mxu0 0.0
    %1472 = vmatprep.subr.mxu0 0.0
    %1473 = vmatpush1.msra.mxu0 0.0
    %1474 = vmatprep.subr.mxu0 0.0
    %1475 = vmatpush1.msra.mxu0 0.0
    %1476 = vmatprep.subr.mxu0 0.0
    %1477 = vmatpush1.msra.mxu0 0.0
    %1478 = vmatprep.subr.mxu0 0.0
    %1479 = vmatpush1.msra.mxu0 0.0
    %1480 = vmatprep.subr.mxu0 0.0
    %1481 = vmatpush1.msra.mxu0 0.0
    %1482 = vmatprep.subr.mxu0 0.0
    %1483 = vmatpush1.msra.mxu0 0.0
    %1484 = vmatprep.subr.mxu0 0.0
    %1485 = vmatpush1.msra.mxu0 0.0
    %1486 = vmatprep.subr.mxu0 0.0
    %1487 = vmatpush1.msra.mxu0 0.0
    %1488 = vmatprep.subr.mxu0 0.0
    %1489 = vmatpush1.msra.mxu0 0.0
    %1490 = vmatprep.subr.mxu0 0.0
    %1491 = vmatpush1.msra.mxu0 0.0
    %1492 = vmatprep.subr.mxu0 0.0
    %1493 = vmatpush1.msra.mxu0 0.0
    %1494 = vmatprep.subr.mxu0 0.0
    %1495 = vmatpush1.msra.mxu0 0.0
    %1496 = vmatprep.subr.mxu0 0.0
    %1497 = vmatpush1.msra.mxu0 0.0
    %1498 = vmatprep.subr.mxu0 0.0
    %1499 = vmatpush1.msra.mxu0 0.0
    %1500 = vmatprep.subr.mxu0 0.0
    %1501 = vmatpush1.msra.mxu0 0.0
    %1502 = vmatprep.subr.mxu0 0.0
    %1503 = vmatpush1.msra.mxu0 0.0
    %1504 = vmatprep.subr.mxu0 0.0
    %1505 = vmatpush1.msra.mxu0 0.0
    %1506 = vmatprep.subr.mxu0 0.0
    %1507 = vmatpush1.msra.mxu0 0.0
    %1508 = vmatprep.subr.mxu0 0.0
    %1509 = vmatpush1.msra.mxu0 0.0
    %1510 = vmatprep.subr.mxu0 0.0
    %1511 = vmatpush1.msra.mxu0 0.0
    %1512 = vmatprep.subr.mxu0 0.0
    %1513 = vmatpush1.msra.mxu0 0.0
    %1514 = vmatprep.subr.mxu0 0.0
    %1515 = vmatpush1.msra.mxu0 0.0
    %1516 = vmatprep.mubr.f32.mxu0 0.0
    %1517 = vmatmul.mubr.f32.gmra.mrb[0].mxu0 %v1450
    %v1518 = vpop.f32.mrb[0].mxu0
    %v1519 = vadd.f32 0.0, %v1518
    %v1520 = vpop.f32.mrb[0].mxu0
    %1521 = vdwg.mxu0
    %v1523 = vrot.slane %v1519, 2
    %v1525 = vadd.f32 %v708, %v1523
    %v1526 = vxor.u32 %v1525, 2147483648
    %v1527 = vmul.f32 %v1526, 1.442695
    %v1528 = vpow.pop %v1527
    %v1529 = vadd.f32 %v1528, 1.0
    %v1530 = vrcp.pop %v1529
    %v1531 = vmul.f32 1.0, %v1530
    %v1532 = vtanh.pop %v1525
    %v1534 = vrot.slane %v1439, 6
    %v1536 = vmul.f32 %v1531, %v1534
    %1538 = vrot.lane.b32.xlu0 %v1532, 64
    %v1539 = vpop.permute.xlu0 %1538
    %v1541 = vmul.f32 %v1531, %v1539
    %1543 = vrot.lane.b32.xlu0 %v1541, 32
    %v1544 = vpop.permute.xlu0 %1543
    %v1546 = vadd.f32 %v1536, %v1544
    %v1547 = vtanh.pop %v1546
    %1549 = vrot.lane.b32.xlu0 %v1547, 64
    %v1550 = vpop.permute.xlu0 %1549
    %v1552 = vmul.f32 %v1531, %v1550
    %vm1553 = vcmask 1041408
    %v1554 = vsel %vm1553, %v808, %v914
    %vm1555 = vcmask 1043456
    %v1556 = vsel %vm1555, %v1554, %v1021
    %vm1557 = vcmask 1045504
    %v1558 = vsel %vm1557, %v1556, %v1128
    %v1559 = vsel %vm1553, %v1232, %v1338
    %v1560 = vsel %vm1555, %v1559, %v1445
    %v1561 = vsel %vm1557, %v1560, %v1552
    %v1562 = vld [vmem:[%s10] sm:$0xff]
    %v1563 = vld [vmem:[%s10 + $0x8] sm:$0xff]
    %v1564 = vld [vmem:[%s10 + $0x10] sm:$0xff]
    %v1565 = vld [vmem:[%s10 + $0x18] sm:$0xff]
    %v1566 = vld [vmem:[%s11] sm:$0xff]
    %v1567 = vld [vmem:[%s11 + $0x8] sm:$0xff]
    %v1568 = vld [vmem:[%s11 + $0x10] sm:$0xff]
    %v1569 = vld [vmem:[%s11 + $0x18] sm:$0xff]
    %v1570 = vld [vmem:[%s12] sm:$0x1]
    %v1572 = vlaneseq
    %v1573 = vshrl.u32 %v1572, 7
    %v1574 = vsub.s32 0, %v1573
    %v1575 = vrot.slane %v1570, %v1574
    %1579 = vrot.lane.b32.xlu0 %v1558, 32
    %v1580 = vpop.permute.xlu0 %1579
    %1581 = vrot.lane.b32.xlu0 %v1561, 32
    %v1582 = vpop.permute.xlu0 %1581
    %v1583 = vsel %vm629, %v1580, 0
    %v1585 = vsel %vm629, %v1582, 0
    %1587 = vmatprep.subr.mxu0 0.0
    %1588 = vmatpush1.msra.mxu0 %v1562
    %1589 = vmatprep.subr.mxu0 0.0
    %1590 = vmatpush1.msra.mxu0 %v1563
    %1591 = vmatprep.subr.mxu0 0.0
    %1592 = vmatpush1.msra.mxu0 %v1564
    %1593 = vmatprep.subr.mxu0 0.0
    %1594 = vmatpush1.msra.mxu0 %v1565
    %1595 = vmatprep.subr.mxu0 0.0
    %1596 = vmatpush1.msra.mxu0 0.0
    %1597 = vmatprep.subr.mxu0 0.0
    %1598 = vmatpush1.msra.mxu0 0.0
    %1599 = vmatprep.subr.mxu0 0.0
    %1600 = vmatpush1.msra.mxu0 0.0
    %1601 = vmatprep.subr.mxu0 0.0
    %1602 = vmatpush1.msra.mxu0 0.0
    %1603 = vmatprep.subr.mxu0 0.0
    %1604 = vmatpush1.msra.mxu0 0.0
    %1605 = vmatprep.subr.mxu0 0.0
    %1606 = vmatpush1.msra.mxu0 0.0
    %1607 = vmatprep.subr.mxu0 0.0
    %1608 = vmatpush1.msra.mxu0 0.0
    %1609 = vmatprep.subr.mxu0 0.0
    %1610 = vmatpush1.msra.mxu0 0.0
    %1611 = vmatprep.subr.mxu0 0.0
    %1612 = vmatpush1.msra.mxu0 0.0
    %1613 = vmatprep.subr.mxu0 0.0
    %1614 = vmatpush1.msra.mxu0 0.0
    %1615 = vmatprep.subr.mxu0 0.0
    %1616 = vmatpush1.msra.mxu0 0.0
    %1617 = vmatprep.subr.mxu0 0.0
    %1618 = vmatpush1.msra.mxu0 0.0
    %1619 = vmatprep.subr.mxu0 0.0
    %1620 = vmatpush1.msra.mxu0 0.0
    %1621 = vmatprep.subr.mxu0 0.0
    %1622 = vmatpush1.msra.mxu0 0.0
    %1623 = vmatprep.subr.mxu0 0.0
    %1624 = vmatpush1.msra.mxu0 0.0
    %1625 = vmatprep.subr.mxu0 0.0
    %1626 = vmatpush1.msra.mxu0 0.0
    %1627 = vmatprep.subr.mxu0 0.0
    %1628 = vmatpush1.msra.mxu0 0.0
    %1629 = vmatprep.subr.mxu0 0.0
    %1630 = vmatpush1.msra.mxu0 0.0
    %1631 = vmatprep.subr.mxu0 0.0
    %1632 = vmatpush1.msra.mxu0 0.0
    %1633 = vmatprep.subr.mxu0 0.0
    %1634 = vmatpush1.msra.mxu0 0.0
    %1635 = vmatprep.subr.mxu0 0.0
    %1636 = vmatpush1.msra.mxu0 0.0
    %1637 = vmatprep.subr.mxu0 0.0
    %1638 = vmatpush1.msra.mxu0 0.0
    %1639 = vmatprep.subr.mxu0 0.0
    %1640 = vmatpush1.msra.mxu0 0.0
    %1641 = vmatprep.subr.mxu0 0.0
    %1642 = vmatpush1.msra.mxu0 0.0
    %1643 = vmatprep.subr.mxu0 0.0
    %1644 = vmatpush1.msra.mxu0 0.0
    %1645 = vmatprep.subr.mxu0 0.0
    %1646 = vmatpush1.msra.mxu0 0.0
    %1647 = vmatprep.subr.mxu0 0.0
    %1648 = vmatpush1.msra.mxu0 0.0
    %1649 = vmatprep.subr.mxu0 0.0
    %1650 = vmatpush1.msra.mxu0 0.0
    %1651 = vmatprep.mubr.f32.mxu0 0.0
    %1652 = vmatmul.mubr.f32.gmra.mrb[0].mxu0 %v1583
    %v1653 = vpop.f32.mrb[0].mxu0
    %v1654 = vadd.f32 %v1575, %v1653
    %v1655 = vpop.f32.mrb[0].mxu0
    %1656 = vmatprep.mubr.f32.mxu0 0.0
    %1657 = vmatmul.mubr.f32.gmra.mrb[0].mxu0 %v1585
    %v1658 = vpop.f32.mrb[0].mxu0
    %v1659 = vadd.f32 %v1575, %v1658
    %v1660 = vpop.f32.mrb[0].mxu0
    %1661 = vdwg.mxu0
    %1662 = vmatprep.subr.mxu0 0.0
    %1663 = vmatpush1.msra.mxu0 %v1566
    %1664 = vmatprep.subr.mxu0 0.0
    %1665 = vmatpush1.msra.mxu0 %v1567
    %1666 = vmatprep.subr.mxu0 0.0
    %1667 = vmatpush1.msra.mxu0 %v1568
    %1668 = vmatprep.subr.mxu0 0.0
    %1669 = vmatpush1.msra.mxu0 %v1569
    %1670 = vmatprep.subr.mxu0 0.0
    %1671 = vmatpush1.msra.mxu0 0.0
    %1672 = vmatprep.subr.mxu0 0.0
    %1673 = vmatpush1.msra.mxu0 0.0
    %1674 = vmatprep.subr.mxu0 0.0
    %1675 = vmatpush1.msra.mxu0 0.0
    %1676 = vmatprep.subr.mxu0 0.0
    %1677 = vmatpush1.msra.mxu0 0.0
    %1678 = vmatprep.subr.mxu0 0.0
    %1679 = vmatpush1.msra.mxu0 0.0
    %1680 = vmatprep.subr.mxu0 0.0
    %1681 = vmatpush1.msra.mxu0 0.0
    %1682 = vmatprep.subr.mxu0 0.0
    %1683 = vmatpush1.msra.mxu0 0.0
    %1684 = vmatprep.subr.mxu0 0.0
    %1685 = vmatpush1.msra.mxu0 0.0
    %1686 = vmatprep.subr.mxu0 0.0
    %1687 = vmatpush1.msra.mxu0 0.0
    %1688 = vmatprep.subr.mxu0 0.0
    %1689 = vmatpush1.msra.mxu0 0.0
    %1690 = vmatprep.subr.mxu0 0.0
    %1691 = vmatpush1.msra.mxu0 0.0
    %1692 = vmatprep.subr.mxu0 0.0
    %1693 = vmatpush1.msra.mxu0 0.0
    %1694 = vmatprep.subr.mxu0 0.0
    %1695 = vmatpush1.msra.mxu0 0.0
    %1696 = vmatprep.subr.mxu0 0.0
    %1697 = vmatpush1.msra.mxu0 0.0
    %1698 = vmatprep.subr.mxu0 0.0
    %1699 = vmatpush1.msra.mxu0 0.0
    %1700 = vmatprep.subr.mxu0 0.0
    %1701 = vmatpush1.msra.mxu0 0.0
    %1702 = vmatprep.subr.mxu0 0.0
    %1703 = vmatpush1.msra.mxu0 0.0
    %1704 = vmatprep.subr.mxu0 0.0
    %1705 = vmatpush1.msra.mxu0 0.0
    %1706 = vmatprep.subr.mxu0 0.0
    %1707 = vmatpush1.msra.mxu0 0.0
    %1708 = vmatprep.subr.mxu0 0.0
    %1709 = vmatpush1.msra.mxu0 0.0
    %1710 = vmatprep.subr.mxu0 0.0
    %1711 = vmatpush1.msra.mxu0 0.0
    %1712 = vmatprep.subr.mxu0 0.0
    %1713 = vmatpush1.msra.mxu0 0.0
    %1714 = vmatprep.subr.mxu0 0.0
    %1715 = vmatpush1.msra.mxu0 0.0
    %1716 = vmatprep.subr.mxu0 0.0
    %1717 = vmatpush1.msra.mxu0 0.0
    %1718 = vmatprep.subr.mxu0 0.0
    %1719 = vmatpush1.msra.mxu0 0.0
    %1720 = vmatprep.subr.mxu0 0.0
    %1721 = vmatpush1.msra.mxu0 0.0
    %1722 = vmatprep.subr.mxu0 0.0
    %1723 = vmatpush1.msra.mxu0 0.0
    %1724 = vmatprep.subr.mxu0 0.0
    %1725 = vmatpush1.msra.mxu0 0.0
    %1726 = vmatprep.mubr.f32.mxu0 0.0
    %1727 = vmatmul.mubr.f32.gmra.mrb[0].mxu0 %v712
    %v1728 = vpop.f32.mrb[0].mxu0
    %v1729 = vadd.f32 0.0, %v1728
    %v1730 = vpop.f32.mrb[0].mxu0
    %1731 = vdwg.mxu0
    %v1732 = vadd.f32 %v1654, %v1729
    %v1733 = vxor.u32 %v1732, 2147483648
    %v1734 = vmul.f32 %v1733, 1.442695
    %v1735 = vpow.pop %v1734
    %v1736 = vadd.f32 %v1735, 1.0
    %v1737 = vrcp.pop %v1736
    %v1738 = vmul.f32 1.0, %v1737
    %v1739 = vtanh.pop %v1732
    %v1740 = vmul.f32 %v1738, 0.0
    %1742 = vrot.lane.b32.xlu0 %v1739, 64
    %v1743 = vpop.permute.xlu0 %1742
    %v1745 = vmul.f32 %v1738, %v1743
    %1747 = vrot.lane.b32.xlu0 %v1745, 32
    %v1748 = vpop.permute.xlu0 %1747
    %v1750 = vadd.f32 %v1740, %v1748
    %v1751 = vtanh.pop %v1750
    %1753 = vrot.lane.b32.xlu0 %v1751, 64
    %v1754 = vpop.permute.xlu0 %1753
    %v1756 = vmul.f32 %v1738, %v1754
    %1758 = vrot.lane.b32.xlu0 %v1756, 32
    %v1759 = vpop.permute.xlu0 %1758
    %v1760 = vsel %vm629, %v1759, 0
    %1762 = vmatprep.subr.mxu0 0.0
    %1763 = vmatpush1.msra.mxu0 %v1566
    %1764 = vmatprep.subr.mxu0 0.0
    %1765 = vmatpush1.msra.mxu0 %v1567
    %1766 = vmatprep.subr.mxu0 0.0
    %1767 = vmatpush1.msra.mxu0 %v1568
    %1768 = vmatprep.subr.mxu0 0.0
    %1769 = vmatpush1.msra.mxu0 %v1569
    %1770 = vmatprep.subr.mxu0 0.0
    %1771 = vmatpush1.msra.mxu0 0.0
    %1772 = vmatprep.subr.mxu0 0.0
    %1773 = vmatpush1.msra.mxu0 0.0
    %1774 = vmatprep.subr.mxu0 0.0
    %1775 = vmatpush1.msra.mxu0 0.0
    %1776 = vmatprep.subr.mxu0 0.0
    %1777 = vmatpush1.msra.mxu0 0.0
    %1778 = vmatprep.subr.mxu0 0.0
    %1779 = vmatpush1.msra.mxu0 0.0
    %1780 = vmatprep.subr.mxu0 0.0
    %1781 = vmatpush1.msra.mxu0 0.0
    %1782 = vmatprep.subr.mxu0 0.0
    %1783 = vmatpush1.msra.mxu0 0.0
    %1784 = vmatprep.subr.mxu0 0.0
    %1785 = vmatpush1.msra.mxu0 0.0
    %1786 = vmatprep.subr.mxu0 0.0
    %1787 = vmatpush1.msra.mxu0 0.0
    %1788 = vmatprep.subr.mxu0 0.0
    %1789 = vmatpush1.msra.mxu0 0.0
    %1790 = vmatprep.subr.mxu0 0.0
    %1791 = vmatpush1.msra.mxu0 0.0
    %1792 = vmatprep.subr.mxu0 0.0
    %1793 = vmatpush1.msra.mxu0 0.0
    %1794 = vmatprep.subr.mxu0 0.0
    %1795 = vmatpush1.msra.mxu0 0.0
    %1796 = vmatprep.subr.mxu0 0.0
    %1797 = vmatpush1.msra.mxu0 0.0
    %1798 = vmatprep.subr.mxu0 0.0
    %1799 = vmatpush1.msra.mxu0 0.0
    %1800 = vmatprep.subr.mxu0 0.0
    %1801 = vmatpush1.msra.mxu0 0.0
    %1802 = vmatprep.subr.mxu0 0.0
    %1803 = vmatpush1.msra.mxu0 0.0
    %1804 = vmatprep.subr.mxu0 0.0
    %1805 = vmatpush1.msra.mxu0 0.0
    %1806 = vmatprep.subr.mxu0 0.0
    %1807 = vmatpush1.msra.mxu0 0.0
    %1808 = vmatprep.subr.mxu0 0.0
    %1809 = vmatpush1.msra.mxu0 0.0
    %1810 = vmatprep.subr.mxu0 0.0
    %1811 = vmatpush1.msra.mxu0 0.0
    %1812 = vmatprep.subr.mxu0 0.0
    %1813 = vmatpush1.msra.mxu0 0.0
    %1814 = vmatprep.subr.mxu0 0.0
    %1815 = vmatpush1.msra.mxu0 0.0
    %1816 = vmatprep.subr.mxu0 0.0
    %1817 = vmatpush1.msra.mxu0 0.0
    %1818 = vmatprep.subr.mxu0 0.0
    %1819 = vmatpush1.msra.mxu0 0.0
    %1820 = vmatprep.subr.mxu0 0.0
    %1821 = vmatpush1.msra.mxu0 0.0
    %1822 = vmatprep.subr.mxu0 0.0
    %1823 = vmatpush1.msra.mxu0 0.0
    %1824 = vmatprep.subr.mxu0 0.0
    %1825 = vmatpush1.msra.mxu0 0.0
    %1826 = vmatprep.mubr.f32.mxu0 0.0
    %1827 = vmatmul.mubr.f32.gmra.mrb[0].mxu0 %v1760
    %v1828 = vpop.f32.mrb[0].mxu0
    %v1829 = vadd.f32 0.0, %v1828
    %v1830 = vpop.f32.mrb[0].mxu0
    %1831 = vdwg.mxu0
    %v1833 = vrot.slane %v1829, 6
    %v1835 = vadd.f32 %v1654, %v1833
    %v1836 = vxor.u32 %v1835, 2147483648
    %v1837 = vmul.f32 %v1836, 1.442695
    %v1838 = vpow.pop %v1837
    %v1839 = vadd.f32 %v1838, 1.0
    %v1840 = vrcp.pop %v1839
    %v1841 = vmul.f32 1.0, %v1840
    %v1842 = vtanh.pop %v1835
    %v1844 = vrot.slane %v1750, 6
    %v1846 = vmul.f32 %v1841, %v1844
    %1848 = vrot.lane.b32.xlu0 %v1842, 64
    %v1849 = vpop.permute.xlu0 %1848
    %v1851 = vmul.f32 %v1841, %v1849
    %1853 = vrot.lane.b32.xlu0 %v1851, 32
    %v1854 = vpop.permute.xlu0 %1853
    %v1856 = vadd.f32 %v1846, %v1854
    %v1857 = vtanh.pop %v1856
    %1859 = vrot.lane.b32.xlu0 %v1857, 64
    %v1860 = vpop.permute.xlu0 %1859
    %v1862 = vmul.f32 %v1841, %v1860
    %v1864 = vrot.slane %v1862, 2
    %1865 = vrot.lane.b32.xlu0 %v1864, 32
    %v1866 = vpop.permute.xlu0 %1865
    %v1867 = vsel %vm629, %v1866, 0
    %1869 = vmatprep.subr.mxu0 0.0
    %1870 = vmatpush1.msra.mxu0 %v1566
    %1871 = vmatprep.subr.mxu0 0.0
    %1872 = vmatpush1.msra.mxu0 %v1567
    %1873 = vmatprep.subr.mxu0 0.0
    %1874 = vmatpush1.msra.mxu0 %v1568
    %1875 = vmatprep.subr.mxu0 0.0
    %1876 = vmatpush1.msra.mxu0 %v1569
    %1877 = vmatprep.subr.mxu0 0.0
    %1878 = vmatpush1.msra.mxu0 0.0
    %1879 = vmatprep.subr.mxu0 0.0
    %1880 = vmatpush1.msra.mxu0 0.0
    %1881 = vmatprep.subr.mxu0 0.0
    %1882 = vmatpush1.msra.mxu0 0.0
    %1883 = vmatprep.subr.mxu0 0.0
    %1884 = vmatpush1.msra.mxu0 0.0
    %1885 = vmatprep.subr.mxu0 0.0
    %1886 = vmatpush1.msra.mxu0 0.0
    %1887 = vmatprep.subr.mxu0 0.0
    %1888 = vmatpush1.msra.mxu0 0.0
    %1889 = vmatprep.subr.mxu0 0.0
    %1890 = vmatpush1.msra.mxu0 0.0
    %1891 = vmatprep.subr.mxu0 0.0
    %1892 = vmatpush1.msra.mxu0 0.0
    %1893 = vmatprep.subr.mxu0 0.0
    %1894 = vmatpush1.msra.mxu0 0.0
    %1895 = vmatprep.subr.mxu0 0.0
    %1896 = vmatpush1.msra.mxu0 0.0
    %1897 = vmatprep.subr.mxu0 0.0
    %1898 = vmatpush1.msra.mxu0 0.0
    %1899 = vmatprep.subr.mxu0 0.0
    %1900 = vmatpush1.msra.mxu0 0.0
    %1901 = vmatprep.subr.mxu0 0.0
    %1902 = vmatpush1.msra.mxu0 0.0
    %1903 = vmatprep.subr.mxu0 0.0
    %1904 = vmatpush1.msra.mxu0 0.0
    %1905 = vmatprep.subr.mxu0 0.0
    %1906 = vmatpush1.msra.mxu0 0.0
    %1907 = vmatprep.subr.mxu0 0.0
    %1908 = vmatpush1.msra.mxu0 0.0
    %1909 = vmatprep.subr.mxu0 0.0
    %1910 = vmatpush1.msra.mxu0 0.0
    %1911 = vmatprep.subr.mxu0 0.0
    %1912 = vmatpush1.msra.mxu0 0.0
    %1913 = vmatprep.subr.mxu0 0.0
    %1914 = vmatpush1.msra.mxu0 0.0
    %1915 = vmatprep.subr.mxu0 0.0
    %1916 = vmatpush1.msra.mxu0 0.0
    %1917 = vmatprep.subr.mxu0 0.0
    %1918 = vmatpush1.msra.mxu0 0.0
    %1919 = vmatprep.subr.mxu0 0.0
    %1920 = vmatpush1.msra.mxu0 0.0
    %1921 = vmatprep.subr.mxu0 0.0
    %1922 = vmatpush1.msra.mxu0 0.0
    %1923 = vmatprep.subr.mxu0 0.0
    %1924 = vmatpush1.msra.mxu0 0.0
    %1925 = vmatprep.subr.mxu0 0.0
    %1926 = vmatpush1.msra.mxu0 0.0
    %1927 = vmatprep.subr.mxu0 0.0
    %1928 = vmatpush1.msra.mxu0 0.0
    %1929 = vmatprep.subr.mxu0 0.0
    %1930 = vmatpush1.msra.mxu0 0.0
    %1931 = vmatprep.subr.mxu0 0.0
    %1932 = vmatpush1.msra.mxu0 0.0
    %1933 = vmatprep.mubr.f32.mxu0 0.0
    %1934 = vmatmul.mubr.f32.gmra.mrb[0].mxu0 %v1867
    %v1935 = vpop.f32.mrb[0].mxu0
    %v1936 = vadd.f32 0.0, %v1935
    %v1937 = vpop.f32.mrb[0].mxu0
    %1938 = vdwg.mxu0
    %v1940 = vrot.slane %v1936, 4
    %v1942 = vadd.f32 %v1654, %v1940
    %v1943 = vxor.u32 %v1942, 2147483648
    %v1944 = vmul.f32 %v1943, 1.442695
    %v1945 = vpow.pop %v1944
    %v1946 = vadd.f32 %v1945, 1.0
    %v1947 = vrcp.pop %v1946
    %v1948 = vmul.f32 1.0, %v1947
    %v1949 = vtanh.pop %v1942
    %v1951 = vrot.slane %v1856, 6
    %v1953 = vmul.f32 %v1948, %v1951
    %1955 = vrot.lane.b32.xlu0 %v1949, 64
    %v1956 = vpop.permute.xlu0 %1955
    %v1958 = vmul.f32 %v1948, %v1956
    %1960 = vrot.lane.b32.xlu0 %v1958, 32
    %v1961 = vpop.permute.xlu0 %1960
    %v1963 = vadd.f32 %v1953, %v1961
    %v1964 = vtanh.pop %v1963
    %1966 = vrot.lane.b32.xlu0 %v1964, 64
    %v1967 = vpop.permute.xlu0 %1966
    %v1969 = vmul.f32 %v1948, %v1967
    %v1971 = vrot.slane %v1969, 4
    %1972 = vrot.lane.b32.xlu0 %v1971, 32
    %v1973 = vpop.permute.xlu0 %1972
    %v1974 = vsel %vm629, %v1973, 0
    %1976 = vmatprep.subr.mxu0 0.0
    %1977 = vmatpush1.msra.mxu0 %v1566
    %1978 = vmatprep.subr.mxu0 0.0
    %1979 = vmatpush1.msra.mxu0 %v1567
    %1980 = vmatprep.subr.mxu0 0.0
    %1981 = vmatpush1.msra.mxu0 %v1568
    %1982 = vmatprep.subr.mxu0 0.0
    %1983 = vmatpush1.msra.mxu0 %v1569
    %1984 = vmatprep.subr.mxu0 0.0
    %1985 = vmatpush1.msra.mxu0 0.0
    %1986 = vmatprep.subr.mxu0 0.0
    %1987 = vmatpush1.msra.mxu0 0.0
    %1988 = vmatprep.subr.mxu0 0.0
    %1989 = vmatpush1.msra.mxu0 0.0
    %1990 = vmatprep.subr.mxu0 0.0
    %1991 = vmatpush1.msra.mxu0 0.0
    %1992 = vmatprep.subr.mxu0 0.0
    %1993 = vmatpush1.msra.mxu0 0.0
    %1994 = vmatprep.subr.mxu0 0.0
    %1995 = vmatpush1.msra.mxu0 0.0
    %1996 = vmatprep.subr.mxu0 0.0
    %1997 = vmatpush1.msra.mxu0 0.0
    %1998 = vmatprep.subr.mxu0 0.0
    %1999 = vmatpush1.msra.mxu0 0.0
    %2000 = vmatprep.subr.mxu0 0.0
    %2001 = vmatpush1.msra.mxu0 0.0
    %2002 = vmatprep.subr.mxu0 0.0
    %2003 = vmatpush1.msra.mxu0 0.0
    %2004 = vmatprep.subr.mxu0 0.0
    %2005 = vmatpush1.msra.mxu0 0.0
    %2006 = vmatprep.subr.mxu0 0.0
    %2007 = vmatpush1.msra.mxu0 0.0
    %2008 = vmatprep.subr.mxu0 0.0
    %2009 = vmatpush1.msra.mxu0 0.0
    %2010 = vmatprep.subr.mxu0 0.0
    %2011 = vmatpush1.msra.mxu0 0.0
    %2012 = vmatprep.subr.mxu0 0.0
    %2013 = vmatpush1.msra.mxu0 0.0
    %2014 = vmatprep.subr.mxu0 0.0
    %2015 = vmatpush1.msra.mxu0 0.0
    %2016 = vmatprep.subr.mxu0 0.0
    %2017 = vmatpush1.msra.mxu0 0.0
    %2018 = vmatprep.subr.mxu0 0.0
    %2019 = vmatpush1.msra.mxu0 0.0
    %2020 = vmatprep.subr.mxu0 0.0
    %2021 = vmatpush1.msra.mxu0 0.0
    %2022 = vmatprep.subr.mxu0 0.0
    %2023 = vmatpush1.msra.mxu0 0.0
    %2024 = vmatprep.subr.mxu0 0.0
    %2025 = vmatpush1.msra.mxu0 0.0
    %2026 = vmatprep.subr.mxu0 0.0
    %2027 = vmatpush1.msra.mxu0 0.0
    %2028 = vmatprep.subr.mxu0 0.0
    %2029 = vmatpush1.msra.mxu0 0.0
    %2030 = vmatprep.subr.mxu0 0.0
    %2031 = vmatpush1.msra.mxu0 0.0
    %2032 = vmatprep.subr.mxu0 0.0
    %2033 = vmatpush1.msra.mxu0 0.0
    %2034 = vmatprep.subr.mxu0 0.0
    %2035 = vmatpush1.msra.mxu0 0.0
    %2036 = vmatprep.subr.mxu0 0.0
    %2037 = vmatpush1.msra.mxu0 0.0
    %2038 = vmatprep.subr.mxu0 0.0
    %2039 = vmatpush1.msra.mxu0 0.0
    %2040 = vmatprep.mubr.f32.mxu0 0.0
    %2041 = vmatmul.mubr.f32.gmra.mrb[0].mxu0 %v1974
    %v2042 = vpop.f32.mrb[0].mxu0
    %v2043 = vadd.f32 0.0, %v2042
    %v2044 = vpop.f32.mrb[0].mxu0
    %2045 = vdwg.mxu0
    %v2047 = vrot.slane %v2043, 2
    %v2049 = vadd.f32 %v1654, %v2047
    %v2050 = vxor.u32 %v2049, 2147483648
    %v2051 = vmul.f32 %v2050, 1.442695
    %v2052 = vpow.pop %v2051
    %v2053 = vadd.f32 %v2052, 1.0
    %v2054 = vrcp.pop %v2053
    %v2055 = vmul.f32 1.0, %v2054
    %v2056 = vtanh.pop %v2049
    %v2058 = vrot.slane %v1963, 6
    %v2060 = vmul.f32 %v2055, %v2058
    %2062 = vrot.lane.b32.xlu0 %v2056, 64
    %v2063 = vpop.permute.xlu0 %2062
    %v2065 = vmul.f32 %v2055, %v2063
    %2067 = vrot.lane.b32.xlu0 %v2065, 32
    %v2068 = vpop.permute.xlu0 %2067
    %v2070 = vadd.f32 %v2060, %v2068
    %v2071 = vtanh.pop %v2070
    %2073 = vrot.lane.b32.xlu0 %v2071, 64
    %v2074 = vpop.permute.xlu0 %2073
    %v2076 = vmul.f32 %v2055, %v2074
    %v2078 = vrot.slane %v2076, 6
    %2079 = vrot.lane.b32.xlu0 %v2078, 32
    %v2080 = vpop.permute.xlu0 %2079
    %v2081 = vsel %vm629, %v2080, 0
    %2083 = vmatprep.subr.mxu0 0.0
    %2084 = vmatpush1.msra.mxu0 %v1566
    %2085 = vmatprep.subr.mxu0 0.0
    %2086 = vmatpush1.msra.mxu0 %v1567
    %2087 = vmatprep.subr.mxu0 0.0
    %2088 = vmatpush1.msra.mxu0 %v1568
    %2089 = vmatprep.subr.mxu0 0.0
    %2090 = vmatpush1.msra.mxu0 %v1569
    %2091 = vmatprep.subr.mxu0 0.0
    %2092 = vmatpush1.msra.mxu0 0.0
    %2093 = vmatprep.subr.mxu0 0.0
    %2094 = vmatpush1.msra.mxu0 0.0
    %2095 = vmatprep.subr.mxu0 0.0
    %2096 = vmatpush1.msra.mxu0 0.0
    %2097 = vmatprep.subr.mxu0 0.0
    %2098 = vmatpush1.msra.mxu0 0.0
    %2099 = vmatprep.subr.mxu0 0.0
    %2100 = vmatpush1.msra.mxu0 0.0
    %2101 = vmatprep.subr.mxu0 0.0
    %2102 = vmatpush1.msra.mxu0 0.0
    %2103 = vmatprep.subr.mxu0 0.0
    %2104 = vmatpush1.msra.mxu0 0.0
    %2105 = vmatprep.subr.mxu0 0.0
    %2106 = vmatpush1.msra.mxu0 0.0
    %2107 = vmatprep.subr.mxu0 0.0
    %2108 = vmatpush1.msra.mxu0 0.0
    %2109 = vmatprep.subr.mxu0 0.0
    %2110 = vmatpush1.msra.mxu0 0.0
    %2111 = vmatprep.subr.mxu0 0.0
    %2112 = vmatpush1.msra.mxu0 0.0
    %2113 = vmatprep.subr.mxu0 0.0
    %2114 = vmatpush1.msra.mxu0 0.0
    %2115 = vmatprep.subr.mxu0 0.0
    %2116 = vmatpush1.msra.mxu0 0.0
    %2117 = vmatprep.subr.mxu0 0.0
    %2118 = vmatpush1.msra.mxu0 0.0
    %2119 = vmatprep.subr.mxu0 0.0
    %2120 = vmatpush1.msra.mxu0 0.0
    %2121 = vmatprep.subr.mxu0 0.0
    %2122 = vmatpush1.msra.mxu0 0.0
    %2123 = vmatprep.subr.mxu0 0.0
    %2124 = vmatpush1.msra.mxu0 0.0
    %2125 = vmatprep.subr.mxu0 0.0
    %2126 = vmatpush1.msra.mxu0 0.0
    %2127 = vmatprep.subr.mxu0 0.0
    %2128 = vmatpush1.msra.mxu0 0.0
    %2129 = vmatprep.subr.mxu0 0.0
    %2130 = vmatpush1.msra.mxu0 0.0
    %2131 = vmatprep.subr.mxu0 0.0
    %2132 = vmatpush1.msra.mxu0 0.0
    %2133 = vmatprep.subr.mxu0 0.0
    %2134 = vmatpush1.msra.mxu0 0.0
    %2135 = vmatprep.subr.mxu0 0.0
    %2136 = vmatpush1.msra.mxu0 0.0
    %2137 = vmatprep.subr.mxu0 0.0
    %2138 = vmatpush1.msra.mxu0 0.0
    %2139 = vmatprep.subr.mxu0 0.0
    %2140 = vmatpush1.msra.mxu0 0.0
    %2141 = vmatprep.subr.mxu0 0.0
    %2142 = vmatpush1.msra.mxu0 0.0
    %2143 = vmatprep.subr.mxu0 0.0
    %2144 = vmatpush1.msra.mxu0 0.0
    %2145 = vmatprep.subr.mxu0 0.0
    %2146 = vmatpush1.msra.mxu0 0.0
    %2147 = vmatprep.mubr.f32.mxu0 0.0
    %2148 = vmatmul.mubr.f32.gmra.mrb[0].mxu0 %v2081
    %v2149 = vpop.f32.mrb[0].mxu0
    %v2150 = vadd.f32 0.0, %v2149
    %v2151 = vpop.f32.mrb[0].mxu0
    %2152 = vdwg.mxu0
    %v2153 = vadd.f32 %v1659, %v2150
    %v2154 = vxor.u32 %v2153, 2147483648
    %v2155 = vmul.f32 %v2154, 1.442695
    %v2156 = vpow.pop %v2155
    %v2157 = vadd.f32 %v2156, 1.0
    %v2158 = vrcp.pop %v2157
    %v2159 = vmul.f32 1.0, %v2158
    %v2160 = vtanh.pop %v2153
    %v2162 = vrot.slane %v2070, 6
    %v2164 = vmul.f32 %v2159, %v2162
    %2166 = vrot.lane.b32.xlu0 %v2160, 64
    %v2167 = vpop.permute.xlu0 %2166
    %v2169 = vmul.f32 %v2159, %v2167
    %2171 = vrot.lane.b32.xlu0 %v2169, 32
    %v2172 = vpop.permute.xlu0 %2171
    %v2174 = vadd.f32 %v2164, %v2172
    %v2175 = vtanh.pop %v2174
    %2177 = vrot.lane.b32.xlu0 %v2175, 64
    %v2178 = vpop.permute.xlu0 %2177
    %v2180 = vmul.f32 %v2159, %v2178
    %2182 = vrot.lane.b32.xlu0 %v2180, 32
    %v2183 = vpop.permute.xlu0 %2182
    %v2184 = vsel %vm629, %v2183, 0
    %2186 = vmatprep.subr.mxu0 0.0
    %2187 = vmatpush1.msra.mxu0 %v1566
    %2188 = vmatprep.subr.mxu0 0.0
    %2189 = vmatpush1.msra.mxu0 %v1567
    %2190 = vmatprep.subr.mxu0 0.0
    %2191 = vmatpush1.msra.mxu0 %v1568
    %2192 = vmatprep.subr.mxu0 0.0
    %2193 = vmatpush1.msra.mxu0 %v1569
    %2194 = vmatprep.subr.mxu0 0.0
    %2195 = vmatpush1.msra.mxu0 0.0
    %2196 = vmatprep.subr.mxu0 0.0
    %2197 = vmatpush1.msra.mxu0 0.0
    %2198 = vmatprep.subr.mxu0 0.0
    %2199 = vmatpush1.msra.mxu0 0.0
    %2200 = vmatprep.subr.mxu0 0.0
    %2201 = vmatpush1.msra.mxu0 0.0
    %2202 = vmatprep.subr.mxu0 0.0
    %2203 = vmatpush1.msra.mxu0 0.0
    %2204 = vmatprep.subr.mxu0 0.0
    %2205 = vmatpush1.msra.mxu0 0.0
    %2206 = vmatprep.subr.mxu0 0.0
    %2207 = vmatpush1.msra.mxu0 0.0
    %2208 = vmatprep.subr.mxu0 0.0
    %2209 = vmatpush1.msra.mxu0 0.0
    %2210 = vmatprep.subr.mxu0 0.0
    %2211 = vmatpush1.msra.mxu0 0.0
    %2212 = vmatprep.subr.mxu0 0.0
    %2213 = vmatpush1.msra.mxu0 0.0
    %2214 = vmatprep.subr.mxu0 0.0
    %2215 = vmatpush1.msra.mxu0 0.0
    %2216 = vmatprep.subr.mxu0 0.0
    %2217 = vmatpush1.msra.mxu0 0.0
    %2218 = vmatprep.subr.mxu0 0.0
    %2219 = vmatpush1.msra.mxu0 0.0
    %2220 = vmatprep.subr.mxu0 0.0
    %2221 = vmatpush1.msra.mxu0 0.0
    %2222 = vmatprep.subr.mxu0 0.0
    %2223 = vmatpush1.msra.mxu0 0.0
    %2224 = vmatprep.subr.mxu0 0.0
    %2225 = vmatpush1.msra.mxu0 0.0
    %2226 = vmatprep.subr.mxu0 0.0
    %2227 = vmatpush1.msra.mxu0 0.0
    %2228 = vmatprep.subr.mxu0 0.0
    %2229 = vmatpush1.msra.mxu0 0.0
    %2230 = vmatprep.subr.mxu0 0.0
    %2231 = vmatpush1.msra.mxu0 0.0
    %2232 = vmatprep.subr.mxu0 0.0
    %2233 = vmatpush1.msra.mxu0 0.0
    %2234 = vmatprep.subr.mxu0 0.0
    %2235 = vmatpush1.msra.mxu0 0.0
    %2236 = vmatprep.subr.mxu0 0.0
    %2237 = vmatpush1.msra.mxu0 0.0
    %2238 = vmatprep.subr.mxu0 0.0
    %2239 = vmatpush1.msra.mxu0 0.0
    %2240 = vmatprep.subr.mxu0 0.0
    %2241 = vmatpush1.msra.mxu0 0.0
    %2242 = vmatprep.subr.mxu0 0.0
    %2243 = vmatpush1.msra.mxu0 0.0
    %2244 = vmatprep.subr.mxu0 0.0
    %2245 = vmatpush1.msra.mxu0 0.0
    %2246 = vmatprep.subr.mxu0 0.0
    %2247 = vmatpush1.msra.mxu0 0.0
    %2248 = vmatprep.subr.mxu0 0.0
    %2249 = vmatpush1.msra.mxu0 0.0
    %2250 = vmatprep.mubr.f32.mxu0 0.0
    %2251 = vmatmul.mubr.f32.gmra.mrb[0].mxu0 %v2184
    %v2252 = vpop.f32.mrb[0].mxu0
    %v2253 = vadd.f32 0.0, %v2252
    %v2254 = vpop.f32.mrb[0].mxu0
    %2255 = vdwg.mxu0
    %v2257 = vrot.slane %v2253, 6
    %v2259 = vadd.f32 %v1659, %v2257
    %v2260 = vxor.u32 %v2259, 2147483648
    %v2261 = vmul.f32 %v2260, 1.442695
    %v2262 = vpow.pop %v2261
    %v2263 = vadd.f32 %v2262, 1.0
    %v2264 = vrcp.pop %v2263
    %v2265 = vmul.f32 1.0, %v2264
    %v2266 = vtanh.pop %v2259
    %v2268 = vrot.slane %v2174, 6
    %v2270 = vmul.f32 %v2265, %v2268
    %2272 = vrot.lane.b32.xlu0 %v2266, 64
    %v2273 = vpop.permute.xlu0 %2272
    %v2275 = vmul.f32 %v2265, %v2273
    %2277 = vrot.lane.b32.xlu0 %v2275, 32
    %v2278 = vpop.permute.xlu0 %2277
    %v2280 = vadd.f32 %v2270, %v2278
    %v2281 = vtanh.pop %v2280
    %2283 = vrot.lane.b32.xlu0 %v2281, 64
    %v2284 = vpop.permute.xlu0 %2283
    %v2286 = vmul.f32 %v2265, %v2284
    %v2288 = vrot.slane %v2286, 2
    %2289 = vrot.lane.b32.xlu0 %v2288, 32
    %v2290 = vpop.permute.xlu0 %2289
    %v2291 = vsel %vm629, %v2290, 0
    %2293 = vmatprep.subr.mxu0 0.0
    %2294 = vmatpush1.msra.mxu0 %v1566
    %2295 = vmatprep.subr.mxu0 0.0
    %2296 = vmatpush1.msra.mxu0 %v1567
    %2297 = vmatprep.subr.mxu0 0.0
    %2298 = vmatpush1.msra.mxu0 %v1568
    %2299 = vmatprep.subr.mxu0 0.0
    %2300 = vmatpush1.msra.mxu0 %v1569
    %2301 = vmatprep.subr.mxu0 0.0
    %2302 = vmatpush1.msra.mxu0 0.0
    %2303 = vmatprep.subr.mxu0 0.0
    %2304 = vmatpush1.msra.mxu0 0.0
    %2305 = vmatprep.subr.mxu0 0.0
    %2306 = vmatpush1.msra.mxu0 0.0
    %2307 = vmatprep.subr.mxu0 0.0
    %2308 = vmatpush1.msra.mxu0 0.0
    %2309 = vmatprep.subr.mxu0 0.0
    %2310 = vmatpush1.msra.mxu0 0.0
    %2311 = vmatprep.subr.mxu0 0.0
    %2312 = vmatpush1.msra.mxu0 0.0
    %2313 = vmatprep.subr.mxu0 0.0
    %2314 = vmatpush1.msra.mxu0 0.0
    %2315 = vmatprep.subr.mxu0 0.0
    %2316 = vmatpush1.msra.mxu0 0.0
    %2317 = vmatprep.subr.mxu0 0.0
    %2318 = vmatpush1.msra.mxu0 0.0
    %2319 = vmatprep.subr.mxu0 0.0
    %2320 = vmatpush1.msra.mxu0 0.0
    %2321 = vmatprep.subr.mxu0 0.0
    %2322 = vmatpush1.msra.mxu0 0.0
    %2323 = vmatprep.subr.mxu0 0.0
    %2324 = vmatpush1.msra.mxu0 0.0
    %2325 = vmatprep.subr.mxu0 0.0
    %2326 = vmatpush1.msra.mxu0 0.0
    %2327 = vmatprep.subr.mxu0 0.0
    %2328 = vmatpush1.msra.mxu0 0.0
    %2329 = vmatprep.subr.mxu0 0.0
    %2330 = vmatpush1.msra.mxu0 0.0
    %2331 = vmatprep.subr.mxu0 0.0
    %2332 = vmatpush1.msra.mxu0 0.0
    %2333 = vmatprep.subr.mxu0 0.0
    %2334 = vmatpush1.msra.mxu0 0.0
    %2335 = vmatprep.subr.mxu0 0.0
    %2336 = vmatpush1.msra.mxu0 0.0
    %2337 = vmatprep.subr.mxu0 0.0
    %2338 = vmatpush1.msra.mxu0 0.0
    %2339 = vmatprep.subr.mxu0 0.0
    %2340 = vmatpush1.msra.mxu0 0.0
    %2341 = vmatprep.subr.mxu0 0.0
    %2342 = vmatpush1.msra.mxu0 0.0
    %2343 = vmatprep.subr.mxu0 0.0
    %2344 = vmatpush1.msra.mxu0 0.0
    %2345 = vmatprep.subr.mxu0 0.0
    %2346 = vmatpush1.msra.mxu0 0.0
    %2347 = vmatprep.subr.mxu0 0.0
    %2348 = vmatpush1.msra.mxu0 0.0
    %2349 = vmatprep.subr.mxu0 0.0
    %2350 = vmatpush1.msra.mxu0 0.0
    %2351 = vmatprep.subr.mxu0 0.0
    %2352 = vmatpush1.msra.mxu0 0.0
    %2353 = vmatprep.subr.mxu0 0.0
    %2354 = vmatpush1.msra.mxu0 0.0
    %2355 = vmatprep.subr.mxu0 0.0
    %2356 = vmatpush1.msra.mxu0 0.0
    %2357 = vmatprep.mubr.f32.mxu0 0.0
    %2358 = vmatmul.mubr.f32.gmra.mrb[0].mxu0 %v2291
    %v2359 = vpop.f32.mrb[0].mxu0
    %v2360 = vadd.f32 0.0, %v2359
    %v2361 = vpop.f32.mrb[0].mxu0
    %2362 = vdwg.mxu0
    %v2364 = vrot.slane %v2360, 4
    %v2366 = vadd.f32 %v1659, %v2364
    %v2367 = vxor.u32 %v2366, 2147483648
    %v2368 = vmul.f32 %v2367, 1.442695
    %v2369 = vpow.pop %v2368
    %v2370 = vadd.f32 %v2369, 1.0
    %v2371 = vrcp.pop %v2370
    %v2372 = vmul.f32 1.0, %v2371
    %v2373 = vtanh.pop %v2366
    %v2375 = vrot.slane %v2280, 6
    %v2377 = vmul.f32 %v2372, %v2375
    %2379 = vrot.lane.b32.xlu0 %v2373, 64
    %v2380 = vpop.permute.xlu0 %2379
    %v2382 = vmul.f32 %v2372, %v2380
    %2384 = vrot.lane.b32.xlu0 %v2382, 32
    %v2385 = vpop.permute.xlu0 %2384
    %v2387 = vadd.f32 %v2377, %v2385
    %v2388 = vtanh.pop %v2387
    %2390 = vrot.lane.b32.xlu0 %v2388, 64
    %v2391 = vpop.permute.xlu0 %2390
    %v2393 = vmul.f32 %v2372, %v2391
    %v2395 = vrot.slane %v2393, 4
    %2396 = vrot.lane.b32.xlu0 %v2395, 32
    %v2397 = vpop.permute.xlu0 %2396
    %v2398 = vsel %vm629, %v2397, 0
    %2400 = vmatprep.subr.mxu0 0.0
    %2401 = vmatpush1.msra.mxu0 %v1566
    %2402 = vmatprep.subr.mxu0 0.0
    %2403 = vmatpush1.msra.mxu0 %v1567
    %2404 = vmatprep.subr.mxu0 0.0
    %2405 = vmatpush1.msra.mxu0 %v1568
    %2406 = vmatprep.subr.mxu0 0.0
    %2407 = vmatpush1.msra.mxu0 %v1569
    %2408 = vmatprep.subr.mxu0 0.0
    %2409 = vmatpush1.msra.mxu0 0.0
    %2410 = vmatprep.subr.mxu0 0.0
    %2411 = vmatpush1.msra.mxu0 0.0
    %2412 = vmatprep.subr.mxu0 0.0
    %2413 = vmatpush1.msra.mxu0 0.0
    %2414 = vmatprep.subr.mxu0 0.0
    %2415 = vmatpush1.msra.mxu0 0.0
    %2416 = vmatprep.subr.mxu0 0.0
    %2417 = vmatpush1.msra.mxu0 0.0
    %2418 = vmatprep.subr.mxu0 0.0
    %2419 = vmatpush1.msra.mxu0 0.0
    %2420 = vmatprep.subr.mxu0 0.0
    %2421 = vmatpush1.msra.mxu0 0.0
    %2422 = vmatprep.subr.mxu0 0.0
    %2423 = vmatpush1.msra.mxu0 0.0
    %2424 = vmatprep.subr.mxu0 0.0
    %2425 = vmatpush1.msra.mxu0 0.0
    %2426 = vmatprep.subr.mxu0 0.0
    %2427 = vmatpush1.msra.mxu0 0.0
    %2428 = vmatprep.subr.mxu0 0.0
    %2429 = vmatpush1.msra.mxu0 0.0
    %2430 = vmatprep.subr.mxu0 0.0
    %2431 = vmatpush1.msra.mxu0 0.0
    %2432 = vmatprep.subr.mxu0 0.0
    %2433 = vmatpush1.msra.mxu0 0.0
    %2434 = vmatprep.subr.mxu0 0.0
    %2435 = vmatpush1.msra.mxu0 0.0
    %2436 = vmatprep.subr.mxu0 0.0
    %2437 = vmatpush1.msra.mxu0 0.0
    %2438 = vmatprep.subr.mxu0 0.0
    %2439 = vmatpush1.msra.mxu0 0.0
    %2440 = vmatprep.subr.mxu0 0.0
    %2441 = vmatpush1.msra.mxu0 0.0
    %2442 = vmatprep.subr.mxu0 0.0
    %2443 = vmatpush1.msra.mxu0 0.0
    %2444 = vmatprep.subr.mxu0 0.0
    %2445 = vmatpush1.msra.mxu0 0.0
    %2446 = vmatprep.subr.mxu0 0.0
    %2447 = vmatpush1.msra.mxu0 0.0
    %2448 = vmatprep.subr.mxu0 0.0
    %2449 = vmatpush1.msra.mxu0 0.0
    %2450 = vmatprep.subr.mxu0 0.0
    %2451 = vmatpush1.msra.mxu0 0.0
    %2452 = vmatprep.subr.mxu0 0.0
    %2453 = vmatpush1.msra.mxu0 0.0
    %2454 = vmatprep.subr.mxu0 0.0
    %2455 = vmatpush1.msra.mxu0 0.0
    %2456 = vmatprep.subr.mxu0 0.0
    %2457 = vmatpush1.msra.mxu0 0.0
    %2458 = vmatprep.subr.mxu0 0.0
    %2459 = vmatpush1.msra.mxu0 0.0
    %2460 = vmatprep.subr.mxu0 0.0
    %2461 = vmatpush1.msra.mxu0 0.0
    %2462 = vmatprep.subr.mxu0 0.0
    %2463 = vmatpush1.msra.mxu0 0.0
    %2464 = vmatprep.mubr.f32.mxu0 0.0
    %2465 = vmatmul.mubr.f32.gmra.mrb[0].mxu0 %v2398
    %v2466 = vpop.f32.mrb[0].mxu0
    %v2467 = vadd.f32 0.0, %v2466
    %v2468 = vpop.f32.mrb[0].mxu0
    %2469 = vdwg.mxu0
    %v2471 = vrot.slane %v2467, 2
    %v2473 = vadd.f32 %v1659, %v2471
    %v2474 = vxor.u32 %v2473, 2147483648
    %v2475 = vmul.f32 %v2474, 1.442695
    %v2476 = vpow.pop %v2475
    %v2477 = vadd.f32 %v2476, 1.0
    %v2478 = vrcp.pop %v2477
    %v2479 = vmul.f32 1.0, %v2478
    %v2480 = vtanh.pop %v2473
    %v2482 = vrot.slane %v2387, 6
    %v2484 = vmul.f32 %v2479, %v2482
    %2486 = vrot.lane.b32.xlu0 %v2480, 64
    %v2487 = vpop.permute.xlu0 %2486
    %v2489 = vmul.f32 %v2479, %v2487
    %2491 = vrot.lane.b32.xlu0 %v2489, 32
    %v2492 = vpop.permute.xlu0 %2491
    %v2494 = vadd.f32 %v2484, %v2492
    %v2495 = vtanh.pop %v2494
    %2497 = vrot.lane.b32.xlu0 %v2495, 64
    %v2498 = vpop.permute.xlu0 %2497
    %v2500 = vmul.f32 %v2479, %v2498
    %2502 = vrot.lane.b32.xlu0 %v1552, 32
    %v2503 = vpop.permute.xlu0 %2502
    %2506 = vrot.lane.b32.xlu0 %v2500, 96
    %v2507 = vpop.permute.xlu0 %2506
    %2510 = vrot.lane.b32.xlu0 %v2494, 64
    %v2511 = vpop.permute.xlu0 %2510
    %v2513 = vsel %vm629, %v2503, %v1546
    %v2514 = vsel %vm426, %v2513, %v2507
    %vm2515 = vcmask 785408
    %v2516 = vsel %vm2515, %v2514, %v2511
    %v2517 = vtanh.pop %v2516
    %v2518 = vld [vmem:[%s13] sm:$0xff]
    %v2519 = vld [vmem:[%s13 + $0x8] sm:$0xff]
    %v2520 = vld [vmem:[%s13 + $0x10] sm:$0xff]
    %v2521 = vld [vmem:[%s13 + $0x18] sm:$0xff]
    %v2522 = vld [vmem:[%s13 + $0x20] sm:$0xff]
    %v2523 = vld [vmem:[%s13 + $0x28] sm:$0xff]
    %v2524 = vld [vmem:[%s13 + $0x30] sm:$0xff]
    %v2525 = vld [vmem:[%s13 + $0x38] sm:$0xff]
    %v2526 = vld [vmem:[%s13 + $0x40] sm:$0xff]
    %v2527 = vld [vmem:[%s13 + $0x48] sm:$0xff]
    %v2528 = vld [vmem:[%s13 + $0x50] sm:$0xff]
    %v2529 = vld [vmem:[%s13 + $0x58] sm:$0xff]
    %v2530 = vld [vmem:[%s13 + $0x60] sm:$0xff]
    %v2531 = vld [vmem:[%s13 + $0x68] sm:$0xff]
    %v2532 = vld [vmem:[%s13 + $0x70] sm:$0xff]
    %v2533 = vld [vmem:[%s13 + $0x78] sm:$0xff]
    %v2534 = vld [vmem:[%s14] sm:$0x1]
    %v2536 = vlaneseq
    %v2537 = vshrl.u32 %v2536, 7
    %v2538 = vsub.s32 0, %v2537
    %v2539 = vrot.slane %v2534, %v2538
    %v2542 = vrot.slane %v2517, 6
    %2544 = vmatprep.subr.mxu0 0.0
    %2545 = vmatpush1.msra.mxu0 %v2518
    %2546 = vmatprep.subr.mxu0 0.0
    %2547 = vmatpush1.msra.mxu0 %v2519
    %2548 = vmatprep.subr.mxu0 0.0
    %2549 = vmatpush1.msra.mxu0 %v2520
    %2550 = vmatprep.subr.mxu0 0.0
    %2551 = vmatpush1.msra.mxu0 %v2521
    %2552 = vmatprep.subr.mxu0 0.0
    %2553 = vmatpush1.msra.mxu0 %v2522
    %2554 = vmatprep.subr.mxu0 0.0
    %2555 = vmatpush1.msra.mxu0 %v2523
    %2556 = vmatprep.subr.mxu0 0.0
    %2557 = vmatpush1.msra.mxu0 %v2524
    %2558 = vmatprep.subr.mxu0 0.0
    %2559 = vmatpush1.msra.mxu0 %v2525
    %2560 = vmatprep.subr.mxu0 0.0
    %2561 = vmatpush1.msra.mxu0 %v2526
    %2562 = vmatprep.subr.mxu0 0.0
    %2563 = vmatpush1.msra.mxu0 %v2527
    %2564 = vmatprep.subr.mxu0 0.0
    %2565 = vmatpush1.msra.mxu0 %v2528
    %2566 = vmatprep.subr.mxu0 0.0
    %2567 = vmatpush1.msra.mxu0 %v2529
    %2568 = vmatprep.subr.mxu0 0.0
    %2569 = vmatpush1.msra.mxu0 %v2530
    %2570 = vmatprep.subr.mxu0 0.0
    %2571 = vmatpush1.msra.mxu0 %v2531
    %2572 = vmatprep.subr.mxu0 0.0
    %2573 = vmatpush1.msra.mxu0 %v2532
    %2574 = vmatprep.subr.mxu0 0.0
    %2575 = vmatpush1.msra.mxu0 %v2533
    %2576 = vmatprep.subr.mxu0 0.0
    %2577 = vmatpush1.msra.mxu0 0.0
    %2578 = vmatprep.subr.mxu0 0.0
    %2579 = vmatpush1.msra.mxu0 0.0
    %2580 = vmatprep.subr.mxu0 0.0
    %2581 = vmatpush1.msra.mxu0 0.0
    %2582 = vmatprep.subr.mxu0 0.0
    %2583 = vmatpush1.msra.mxu0 0.0
    %2584 = vmatprep.subr.mxu0 0.0
    %2585 = vmatpush1.msra.mxu0 0.0
    %2586 = vmatprep.subr.mxu0 0.0
    %2587 = vmatpush1.msra.mxu0 0.0
    %2588 = vmatprep.subr.mxu0 0.0
    %2589 = vmatpush1.msra.mxu0 0.0
    %2590 = vmatprep.subr.mxu0 0.0
    %2591 = vmatpush1.msra.mxu0 0.0
    %2592 = vmatprep.subr.mxu0 0.0
    %2593 = vmatpush1.msra.mxu0 0.0
    %2594 = vmatprep.subr.mxu0 0.0
    %2595 = vmatpush1.msra.mxu0 0.0
    %2596 = vmatprep.subr.mxu0 0.0
    %2597 = vmatpush1.msra.mxu0 0.0
    %2598 = vmatprep.subr.mxu0 0.0
    %2599 = vmatpush1.msra.mxu0 0.0
    %2600 = vmatprep.subr.mxu0 0.0
    %2601 = vmatpush1.msra.mxu0 0.0
    %2602 = vmatprep.subr.mxu0 0.0
    %2603 = vmatpush1.msra.mxu0 0.0
    %2604 = vmatprep.subr.mxu0 0.0
    %2605 = vmatpush1.msra.mxu0 0.0
    %2606 = vmatprep.subr.mxu0 0.0
    %2607 = vmatpush1.msra.mxu0 0.0
    %2608 = vmatprep.mubr.f32.mxu0 0.0
    %2609 = vmatmul.mubr.f32.gmra.mrb[0].mxu0 %v2542
    %v2610 = vpop.f32.mrb[0].mxu0
    %v2611 = vadd.f32 %v2539, %v2610
    %v2612 = vpop.f32.mrb[0].mxu0
    %2613 = vdwg.mxu0
    %v2614 = vmul.f32 %v506, %v2611
    %v2615 = vtanh.pop %v2614
    %v2616 = vld [vmem:[%s15] sm:$0xff]
    %v2617 = vld [vmem:[%s15 + $0x8] sm:$0xff]
    %v2618 = vld [vmem:[%s15 + $0x10] sm:$0xff]
    %v2619 = vld [vmem:[%s15 + $0x18] sm:$0xff]
    %v2620 = vld [vmem:[%s16] sm:$0x1]
    %v2622 = vlaneseq
    %v2623 = vshrl.u32 %v2622, 7
    %v2624 = vsub.s32 0, %v2623
    %v2625 = vrot.slane %v2620, %v2624
    %v2628 = vsel %vm629, %v2615, 0
    %2630 = vmatprep.subr.mxu0 0.0
    %2631 = vmatpush1.msra.mxu0 %v2616
    %2632 = vmatprep.subr.mxu0 0.0
    %2633 = vmatpush1.msra.mxu0 %v2617
    %2634 = vmatprep.subr.mxu0 0.0
    %2635 = vmatpush1.msra.mxu0 %v2618
    %2636 = vmatprep.subr.mxu0 0.0
    %2637 = vmatpush1.msra.mxu0 %v2619
    %2638 = vmatprep.subr.mxu0 0.0
    %2639 = vmatpush1.msra.mxu0 0.0
    %2640 = vmatprep.subr.mxu0 0.0
    %2641 = vmatpush1.msra.mxu0 0.0
    %2642 = vmatprep.subr.mxu0 0.0
    %2643 = vmatpush1.msra.mxu0 0.0
    %2644 = vmatprep.subr.mxu0 0.0
    %2645 = vmatpush1.msra.mxu0 0.0
    %2646 = vmatprep.subr.mxu0 0.0
    %2647 = vmatpush1.msra.mxu0 0.0
    %2648 = vmatprep.subr.mxu0 0.0
    %2649 = vmatpush1.msra.mxu0 0.0
    %2650 = vmatprep.subr.mxu0 0.0
    %2651 = vmatpush1.msra.mxu0 0.0
    %2652 = vmatprep.subr.mxu0 0.0
    %2653 = vmatpush1.msra.mxu0 0.0
    %2654 = vmatprep.subr.mxu0 0.0
    %2655 = vmatpush1.msra.mxu0 0.0
    %2656 = vmatprep.subr.mxu0 0.0
    %2657 = vmatpush1.msra.mxu0 0.0
    %2658 = vmatprep.subr.mxu0 0.0
    %2659 = vmatpush1.msra.mxu0 0.0
    %2660 = vmatprep.subr.mxu0 0.0
    %2661 = vmatpush1.msra.mxu0 0.0
    %2662 = vmatprep.subr.mxu0 0.0
    %2663 = vmatpush1.msra.mxu0 0.0
    %2664 = vmatprep.subr.mxu0 0.0
    %2665 = vmatpush1.msra.mxu0 0.0
    %2666 = vmatprep.subr.mxu0 0.0
    %2667 = vmatpush1.msra.mxu0 0.0
    %2668 = vmatprep.subr.mxu0 0.0
    %2669 = vmatpush1.msra.mxu0 0.0
    %2670 = vmatprep.subr.mxu0 0.0
    %2671 = vmatpush1.msra.mxu0 0.0
    %2672 = vmatprep.subr.mxu0 0.0
    %2673 = vmatpush1.msra.mxu0 0.0
    %2674 = vmatprep.subr.mxu0 0.0
    %2675 = vmatpush1.msra.mxu0 0.0
    %2676 = vmatprep.subr.mxu0 0.0
    %2677 = vmatpush1.msra.mxu0 0.0
    %2678 = vmatprep.subr.mxu0 0.0
    %2679 = vmatpush1.msra.mxu0 0.0
    %2680 = vmatprep.subr.mxu0 0.0
    %2681 = vmatpush1.msra.mxu0 0.0
    %2682 = vmatprep.subr.mxu0 0.0
    %2683 = vmatpush1.msra.mxu0 0.0
    %2684 = vmatprep.subr.mxu0 0.0
    %2685 = vmatpush1.msra.mxu0 0.0
    %2686 = vmatprep.subr.mxu0 0.0
    %2687 = vmatpush1.msra.mxu0 0.0
    %2688 = vmatprep.subr.mxu0 0.0
    %2689 = vmatpush1.msra.mxu0 0.0
    %2690 = vmatprep.subr.mxu0 0.0
    %2691 = vmatpush1.msra.mxu0 0.0
    %2692 = vmatprep.subr.mxu0 0.0
    %2693 = vmatpush1.msra.mxu0 0.0
    %2694 = vmatprep.mubr.f32.mxu0 0.0
    %2695 = vmatmul.mubr.f32.gmra.mrb[0].mxu0 %v2628
    %v2696 = vpop.f32.mrb[0].mxu0
    %v2697 = vadd.f32 %v2625, %v2696
    %v2698 = vpop.f32.mrb[0].mxu0
    %2699 = vdwg.mxu0
    %v2700 = vtanh.pop %v2697
    %v2701 = vld [vmem:[%s17] sm:$0xff]
    %v2702 = vld [vmem:[%s17 + $0x8] sm:$0xff]
    %v2703 = vld [vmem:[%s18] sm:$0x1]
    %v2705 = vlaneseq
    %v2706 = vshrl.u32 %v2705, 7
    %v2707 = vsub.s32 0, %v2706
    %v2708 = vrot.slane %v2703, %v2707
    %vm2710 = vcmask 130048
    %v2712 = vsel %vm2710, %v2700, 0
    %2714 = vmatprep.subr.mxu0 0.0
    %2715 = vmatpush1.msra.mxu0 %v2701
    %2716 = vmatprep.subr.mxu0 0.0
    %2717 = vmatpush1.msra.mxu0 %v2702
    %2718 = vmatprep.subr.mxu0 0.0
    %2719 = vmatpush1.msra.mxu0 0.0
    %2720 = vmatprep.subr.mxu0 0.0
    %2721 = vmatpush1.msra.mxu0 0.0
    %2722 = vmatprep.subr.mxu0 0.0
    %2723 = vmatpush1.msra.mxu0 0.0
    %2724 = vmatprep.subr.mxu0 0.0
    %2725 = vmatpush1.msra.mxu0 0.0
    %2726 = vmatprep.subr.mxu0 0.0
    %2727 = vmatpush1.msra.mxu0 0.0
    %2728 = vmatprep.subr.mxu0 0.0
    %2729 = vmatpush1.msra.mxu0 0.0
    %2730 = vmatprep.subr.mxu0 0.0
    %2731 = vmatpush1.msra.mxu0 0.0
    %2732 = vmatprep.subr.mxu0 0.0
    %2733 = vmatpush1.msra.mxu0 0.0
    %2734 = vmatprep.subr.mxu0 0.0
    %2735 = vmatpush1.msra.mxu0 0.0
    %2736 = vmatprep.subr.mxu0 0.0
    %2737 = vmatpush1.msra.mxu0 0.0
    %2738 = vmatprep.subr.mxu0 0.0
    %2739 = vmatpush1.msra.mxu0 0.0
    %2740 = vmatprep.subr.mxu0 0.0
    %2741 = vmatpush1.msra.mxu0 0.0
    %2742 = vmatprep.subr.mxu0 0.0
    %2743 = vmatpush1.msra.mxu0 0.0
    %2744 = vmatprep.subr.mxu0 0.0
    %2745 = vmatpush1.msra.mxu0 0.0
    %2746 = vmatprep.subr.mxu0 0.0
    %2747 = vmatpush1.msra.mxu0 0.0
    %2748 = vmatprep.subr.mxu0 0.0
    %2749 = vmatpush1.msra.mxu0 0.0
    %2750 = vmatprep.subr.mxu0 0.0
    %2751 = vmatpush1.msra.mxu0 0.0
    %2752 = vmatprep.subr.mxu0 0.0
    %2753 = vmatpush1.msra.mxu0 0.0
    %2754 = vmatprep.subr.mxu0 0.0
    %2755 = vmatpush1.msra.mxu0 0.0
    %2756 = vmatprep.subr.mxu0 0.0
    %2757 = vmatpush1.msra.mxu0 0.0
    %2758 = vmatprep.subr.mxu0 0.0
    %2759 = vmatpush1.msra.mxu0 0.0
    %2760 = vmatprep.subr.mxu0 0.0
    %2761 = vmatpush1.msra.mxu0 0.0
    %2762 = vmatprep.subr.mxu0 0.0
    %2763 = vmatpush1.msra.mxu0 0.0
    %2764 = vmatprep.subr.mxu0 0.0
    %2765 = vmatpush1.msra.mxu0 0.0
    %2766 = vmatprep.subr.mxu0 0.0
    %2767 = vmatpush1.msra.mxu0 0.0
    %2768 = vmatprep.subr.mxu0 0.0
    %2769 = vmatpush1.msra.mxu0 0.0
    %2770 = vmatprep.subr.mxu0 0.0
    %2771 = vmatpush1.msra.mxu0 0.0
    %2772 = vmatprep.subr.mxu0 0.0
    %2773 = vmatpush1.msra.mxu0 0.0
    %2774 = vmatprep.subr.mxu0 0.0
    %2775 = vmatpush1.msra.mxu0 0.0
    %2776 = vmatprep.subr.mxu0 0.0
    %2777 = vmatpush1.msra.mxu0 0.0
    %2778 = vmatprep.mubr.f32.mxu0 0.0
    %2779 = vmatmul.mubr.f32.gmra.mrb[0].mxu0 %v2712
    %v2780 = vpop.f32.mrb[0].mxu0
    %v2781 = vadd.f32 %v2708, %v2780
    %v2782 = vpop.f32.mrb[0].mxu0
    %2783 = vdwg.mxu0
    %vm2784 = vcmask 123904
    %2785 = vst.msk [vmem:[#allocation2] sm:$0x3] %vm2784, %v2781
    // Predicated region
    $region78: #{vqa_forward.1} parent=1 // pred_check
      _
    $region79: #{vqa_forward.1} parent=1 // pred_check_branch
      %2787 = sbr.rel (0) target = $region81
    $region80: #{vqa_forward.1} parent=1 // pred_region
      %s2789 = ssub.s32 32, 32
      %2790 = vsyncadd [#allocation3], %s2789
      %s2792 = sshll.u32 [#allocation2], 4
      %s2793 = int_to_ptr.vmem [resolvable:$true] %s2792
      %2795 = dma.vmem_to_hbm [thread:$0]  %s2793, 32, %s19, [#allocation3]
    $region81: #{vqa_forward.1} parent=1 // pred_fallthru
      _
    // Predicated region
    $region82: #{vqa_forward.1} parent=1 // pred_check
      _
    $region83: #{vqa_forward.1} parent=1 // pred_check_branch
      %2797 = sbr.rel (0) target = $region85
    $region84: #{vqa_forward.1} parent=1 // pred_region
      %2798 = dma.done [#allocation3], 32
    $region85: #{vqa_forward.1} parent=1 // pred_fallthru
      _
    %2799 = vsyncpa [#allocation3], 1

</llo_original>
